<compile_context>
chip_gen: v6e
topology: v6e:2x2x1
jax: 0.10.0
libtpu: 0.0.40
codegen_flags: <defaults>
</compile_context>

<pallas_src>
import functools

import jax
import jax.numpy as jnp
from jax.experimental import pallas as pl
from jax.experimental.pallas import tpu as pltpu


# ----------------------------------------------------------------------------
# Kernel 1: space-to-depth conv = 2x2 stride-1 conv
#           (in-kernel window extraction + 4 accumulating MXU dots + bias + ReLU)
# ----------------------------------------------------------------------------
def _conv_s2d_kernel(x_ref, w_ref, b_ref, o_ref, *, wp, m_out, relu):
    # x_ref: [1, Npad, Kc]       bf16  (flattened H'*W' grouped cells, zero-padded)
    # w_ref: [2, 2, Kc, Cout]    bf16
    # b_ref: [1, Cout]           f32
    # o_ref: [1, m_out, Cout]    bf16, m_out = (H'-1) * W'
    cout = o_ref.shape[-1]
    acc = jnp.zeros((m_out, cout), jnp.float32)
    for di in range(2):
        for dj in range(2):
            off = di * wp + dj                       # static offset
            win = x_ref[0, pl.ds(off, m_out), :]     # [m_out, Kc] shifted window
            acc = acc + jnp.dot(win, w_ref[di, dj],
                                preferred_element_type=jnp.float32)
    acc = acc + b_ref[...]
    if relu:
        acc = jnp.maximum(acc, 0.0)
    o_ref[0] = acc.astype(o_ref.dtype)


def conv2d_s2d(x_grouped, w_s2d, b, *, relu):
    """2x2 stride-1 'valid' conv over grouped cells (space-to-depth form of a
    k=2s, stride=s Conv2d).

    x_grouped: [B, H', W', Kc] bf16, w_s2d: [2, 2, Kc, Cout] bf16,
    b: [1, Cout] f32  ->  [B, H'-1, W'-1, Cout] bf16 (NHWC).
    """
    B, hp, wp, kc = x_grouped.shape
    cout = w_s2d.shape[-1]
    oh, ow = hp - 1, wp - 1
    m_out = oh * wp                      # compute a full (garbage) last column,
                                         # sliced off below; keeps reads contiguous
    n = hp * wp
    npad = ((n + 1) + 7) // 8 * 8        # +1 covers the overshoot of discarded cols
    xf = x_grouped.reshape(B, n, kc)
    xf = jnp.pad(xf, ((0, 0), (0, npad - n), (0, 0)))

    kernel = functools.partial(_conv_s2d_kernel, wp=wp, m_out=m_out, relu=relu)
    y = pl.pallas_call(
        kernel,
        out_shape=jax.ShapeDtypeStruct((B, m_out, cout), jnp.bfloat16),
        grid=(B,),
        in_specs=[
            pl.BlockSpec((1, npad, kc), lambda i: (i, 0, 0)),
            pl.BlockSpec((2, 2, kc, cout), lambda i: (0, 0, 0, 0)),
            pl.BlockSpec((1, cout), lambda i: (0, 0)),
        ],
        out_specs=pl.BlockSpec((1, m_out, cout), lambda i: (i, 0, 0)),
        compiler_params=pltpu.CompilerParams(
            dimension_semantics=("parallel",)),
    )(xf, w_s2d, b)
    # [B, oh, W', Cout] -> drop the garbage last column -> [B, oh, ow, Cout]
    return y.reshape(B, oh, wp, cout)[:, :, :ow, :]


# ----------------------------------------------------------------------------
# Kernel 2: fused MLP  fc1(+ReLU) -> fc2(+ReLU) -> fc3, all weights VMEM-resident
# ----------------------------------------------------------------------------
def _mlp_kernel(x_ref, w1_ref, b1_ref, w2_ref, b2_ref, w3_ref, b3_ref, o_ref):
    h = jnp.dot(x_ref[...], w1_ref[...], preferred_element_type=jnp.float32)
    h = jnp.maximum(h + b1_ref[...], 0.0)
    h = jnp.dot(h.astype(jnp.bfloat16), w2_ref[...],
                preferred_element_type=jnp.float32)
    h = jnp.maximum(h + b2_ref[...], 0.0)
    out = jnp.dot(h.astype(jnp.bfloat16), w3_ref[...],
                  preferred_element_type=jnp.float32) + b3_ref[...]
    o_ref[...] = out.astype(o_ref.dtype)


def mlp_forward(x, w1, b1, w2, b2, w3, b3):
    """x: [B, K] bf16; w*: [K_i, N_i] bf16; b*: [1, N_i] f32  ->  [B, N3] f32."""
    B, K = x.shape
    N1, N2, N3 = w1.shape[1], w2.shape[1], w3.shape[1]
    tile_m = B if B <= 256 else 256      # M-tiled grid: pipelines at train batch
    grid = (pl.cdiv(B, tile_m),)
    return pl.pallas_call(
        _mlp_kernel,
        out_shape=jax.ShapeDtypeStruct((B, N3), jnp.float32),
        grid=grid,
        in_specs=[
            pl.BlockSpec((tile_m, K), lambda i: (i, 0)),
            pl.BlockSpec((K, N1), lambda i: (0, 0)),
            pl.BlockSpec((1, N1), lambda i: (0, 0)),
            pl.BlockSpec((N1, N2), lambda i: (0, 0)),
            pl.BlockSpec((1, N2), lambda i: (0, 0)),
            pl.BlockSpec((N2, N3), lambda i: (0, 0)),
            pl.BlockSpec((1, N3), lambda i: (0, 0)),
        ],
        out_specs=pl.BlockSpec((tile_m, N3), lambda i: (i, 0)),
        compiler_params=pltpu.CompilerParams(
            dimension_semantics=("parallel",)),
    )(x, w1, b1, w2, b2, w3, b3)


# ----------------------------------------------------------------------------
# Layout plumbing (one-time at init / cheap XLA glue on tiny tensors)
# ----------------------------------------------------------------------------
def _space_to_depth_nchw(x, s):
    B, C, H, W = x.shape
    x = x.reshape(B, C, H // s, s, W // s, s)
    x = x.transpose(0, 2, 4, 3, 5, 1)            # [B, H', W', p, q, C]
    return x.reshape(B, H // s, W // s, s * s * C)


def _space_to_depth_nhwc(x, s):
    B, H, W, C = x.shape
    x = x.reshape(B, H // s, s, W // s, s, C)
    x = x.transpose(0, 1, 3, 2, 4, 5)            # [B, H', W', p, q, C]
    return x.reshape(B, H // s, W // s, s * s * C)


def _s2d_conv_weight(w, s):
    """PyTorch [Cout, Cin, 2s, 2s] -> [2, 2, s*s*Cin, Cout] bf16, rows ordered
    (p, q, cin) to match the space-to-depth channel grouping."""
    cout, cin, k, _ = w.shape
    assert k == 2 * s, (k, s)
    w = w.reshape(cout, cin, 2, s, 2, s)         # [co, ci, di, p, dj, q]
    w = w.transpose(2, 4, 3, 5, 1, 0)            # [di, dj, p, q, ci, co]
    return w.reshape(2, 2, s * s * cin, cout).astype(jnp.bfloat16)


def init_params(key, action_dim):
    """PyTorch-layout f32 parameters (same init scheme as nn.Conv2d / nn.Linear)."""
    ks = jax.random.split(key, 10)

    def u(k, shape, fan_in):
        bound = 1.0 / jnp.sqrt(jnp.float32(fan_in))
        return jax.random.uniform(k, shape, jnp.float32, -bound, bound)

    return {
        "c1_w": u(ks[0], (16, 4, 8, 8), 4 * 8 * 8),      # Conv2d(4, 16, 8, 4)
        "c1_b": u(ks[1], (16,), 4 * 8 * 8),
        "c2_w": u(ks[2], (32, 16, 4, 4), 16 * 4 * 4),    # Conv2d(16, 32, 4, 2)
        "c2_b": u(ks[3], (32,), 16 * 4 * 4),
        "fc1_w": u(ks[4], (256, 32 * 9 * 9), 32 * 9 * 9),  # Linear(2592, 256)
        "fc1_b": u(ks[5], (256,), 32 * 9 * 9),
        "fc2_w": u(ks[6], (64, 256), 256),                 # Linear(256, 64)
        "fc2_b": u(ks[7], (64,), 256),
        "fc3_w": u(ks[8], (action_dim, 64), 64),           # Linear(64, action_dim)
        "fc3_b": u(ks[9], (action_dim,), 64),
    }


def prepare_params(p):
    """One-time conversion to kernel-friendly layouts: s2d conv weights,
    [K, N] bf16 FC weights (fc1 rows permuted (c,h,w)->(h,w,c)), [1, N] f32 biases."""
    fc1 = p["fc1_w"].reshape(256, 32, 9, 9).transpose(0, 2, 3, 1).reshape(256, 32 * 9 * 9)
    return {
        "c1_w": _s2d_conv_weight(p["c1_w"], 4),
        "c1_b": p["c1_b"].reshape(1, -1).astype(jnp.float32),
        "c2_w": _s2d_conv_weight(p["c2_w"], 2),
        "c2_b": p["c2_b"].reshape(1, -1).astype(jnp.float32),
        "fc1_w": fc1.T.astype(jnp.bfloat16),               # [2592, 256], rows (h,w,c)
        "fc1_b": p["fc1_b"].reshape(1, -1).astype(jnp.float32),
        "fc2_w": p["fc2_w"].T.astype(jnp.bfloat16),        # [256, 64]
        "fc2_b": p["fc2_b"].reshape(1, -1).astype(jnp.float32),
        "fc3_w": p["fc3_w"].T.astype(jnp.bfloat16),        # [64, action_dim]
        "fc3_b": p["fc3_b"].reshape(1, -1).astype(jnp.float32),
    }


# ----------------------------------------------------------------------------
# Forward pass (matches Cnn_Model.forward)
# ----------------------------------------------------------------------------
def cnn_model_forward(params, x, batch_size):
    B = batch_size
    # f1: Conv(4->16, k=8, s=4) + ReLU
    xg = _space_to_depth_nchw(x, 4).astype(jnp.bfloat16)             # [B,21,21,64]
    y1 = conv2d_s2d(xg, params["c1_w"], params["c1_b"], relu=True)   # [B,20,20,16]
    #     Conv(16->32, k=4, s=2) + ReLU
    y1g = _space_to_depth_nhwc(y1, 2)                                # [B,10,10,64]
    y2 = conv2d_s2d(y1g, params["c2_w"], params["c2_b"], relu=True)  # [B,9,9,32]
    # x.view(batch, -1): channels-last flatten; fc1 rows were permuted to
    # (h, w, c) at prepare time so this equals PyTorch's NCHW flatten.
    flat = y2.reshape(B, -1)                                         # [B, 2592] bf16
    # f2: fused Linear+ReLU, Linear+ReLU, Linear
    return mlp_forward(flat, params["fc1_w"], params["fc1_b"],
                       params["fc2_w"], params["fc2_b"],
                       params["fc3_w"], params["fc3_b"])


if __name__ == "__main__":
    # Spatial size is forced to 84x84 by the module ((84-8)/4+1=20, (20-4)/2+1=9,
    # first Linear expects 32*9*9).  Batch and action_dim kept small.
    B = 2
    ACTION_DIM = 4

    key = jax.random.PRNGKey(0)
    k_params, k_x = jax.random.split(key)
    params = prepare_params(init_params(k_params, ACTION_DIM))
    x = jax.random.normal(k_x, (B, 4, 84, 84), dtype=jnp.float32)

    fwd = jax.jit(functools.partial(cnn_model_forward, batch_size=B))
    out = jax.block_until_ready(fwd(params, x))
    assert out.shape == (B, ACTION_DIM), out.shape
    print("KERNEL_OK")
</pallas_src>

<mosaic_0001>
module attributes {stable_mosaic.version = 11 : i64} {
  func.func @_conv_s2d_kernel(%arg0: i32, %arg1: memref<1x448x64xbf16, #tpu.memory_space<vmem>>, %arg2: memref<2x2x64x16xbf16, #tpu.memory_space<vmem>>, %arg3: memref<1x16xf32, #tpu.memory_space<vmem>>, %arg4: memref<1x420x16xbf16, #tpu.memory_space<vmem>>) attributes {dimension_semantics = [#tpu.dimension_semantics<parallel>], iteration_bounds = array<i64: 2>, scalar_prefetch = 0 : i64, scratch_operands = 0 : i64, tpu.core_type = #tpu.core_type<tc>, window_params = [{transform_indices = @transform_0, window_bounds = array<i64: 1, 448, 64>}, {pipeline_mode = #tpu.pipeline_mode<synchronous>, transform_indices = @transform_1, window_bounds = array<i64: 2, 2, 64, 16>}, {pipeline_mode = #tpu.pipeline_mode<synchronous>, transform_indices = @transform_2, window_bounds = array<i64: 1, 16>}, {transform_indices = @transform_3, window_bounds = array<i64: 1, 420, 16>}]} {
    %cst = arith.constant 0.000000e+00 : f32
    %0 = vector.broadcast %cst : f32 to vector<420x16xf32>
    %c0 = arith.constant 0 : index
    %c0_0 = arith.constant 0 : index
    %c0_1 = arith.constant 0 : index
    %1 = vector.load %arg1[%c0, %c0_0, %c0_1] : memref<1x448x64xbf16, #tpu.memory_space<vmem>>, vector<1x420x64xbf16>
    %2 = vector.shape_cast %1 : vector<1x420x64xbf16> to vector<420x64xbf16>
    %c0_2 = arith.constant 0 : index
    %c0_3 = arith.constant 0 : index
    %c0_4 = arith.constant 0 : index
    %c0_5 = arith.constant 0 : index
    %3 = vector.load %arg2[%c0_2, %c0_3, %c0_4, %c0_5] : memref<2x2x64x16xbf16, #tpu.memory_space<vmem>>, vector<1x1x64x16xbf16>
    %4 = vector.shape_cast %3 : vector<1x1x64x16xbf16> to vector<64x16xbf16>
    %cst_6 = arith.constant dense<0.000000e+00> : vector<420x16xf32>
    %5 = tpu.matmul %2, %4, %cst_6 {dimension_numbers = #tpu.dot_dimension_numbers<[1], [0], [0], [1], [0, 0, 1, 1], [], []>} : vector<420x64xbf16>, vector<64x16xbf16>, vector<420x16xf32> -> vector<420x16xf32>
    %6 = arith.addf %0, %5 : vector<420x16xf32>
    %c0_7 = arith.constant 0 : index
    %c1 = arith.constant 1 : index
    %c0_8 = arith.constant 0 : index
    %7 = vector.load %arg1[%c0_7, %c1, %c0_8] : memref<1x448x64xbf16, #tpu.memory_space<vmem>>, vector<1x420x64xbf16>
    %8 = vector.shape_cast %7 : vector<1x420x64xbf16> to vector<420x64xbf16>
    %c0_9 = arith.constant 0 : index
    %c1_10 = arith.constant 1 : index
    %c0_11 = arith.constant 0 : index
    %c0_12 = arith.constant 0 : index
    %9 = vector.load %arg2[%c0_9, %c1_10, %c0_11, %c0_12] : memref<2x2x64x16xbf16, #tpu.memory_space<vmem>>, vector<1x1x64x16xbf16>
    %10 = vector.shape_cast %9 : vector<1x1x64x16xbf16> to vector<64x16xbf16>
    %cst_13 = arith.constant dense<0.000000e+00> : vector<420x16xf32>
    %11 = tpu.matmul %8, %10, %cst_13 {dimension_numbers = #tpu.dot_dimension_numbers<[1], [0], [0], [1], [0, 0, 1, 1], [], []>} : vector<420x64xbf16>, vector<64x16xbf16>, vector<420x16xf32> -> vector<420x16xf32>
    %12 = arith.addf %6, %11 : vector<420x16xf32>
    %c0_14 = arith.constant 0 : index
    %c21 = arith.constant 21 : index
    %c0_15 = arith.constant 0 : index
    %13 = vector.load %arg1[%c0_14, %c21, %c0_15] : memref<1x448x64xbf16, #tpu.memory_space<vmem>>, vector<1x420x64xbf16>
    %14 = vector.shape_cast %13 : vector<1x420x64xbf16> to vector<420x64xbf16>
    %c1_16 = arith.constant 1 : index
    %c0_17 = arith.constant 0 : index
    %c0_18 = arith.constant 0 : index
    %c0_19 = arith.constant 0 : index
    %15 = vector.load %arg2[%c1_16, %c0_17, %c0_18, %c0_19] : memref<2x2x64x16xbf16, #tpu.memory_space<vmem>>, vector<1x1x64x16xbf16>
    %16 = vector.shape_cast %15 : vector<1x1x64x16xbf16> to vector<64x16xbf16>
    %cst_20 = arith.constant dense<0.000000e+00> : vector<420x16xf32>
    %17 = tpu.matmul %14, %16, %cst_20 {dimension_numbers = #tpu.dot_dimension_numbers<[1], [0], [0], [1], [0, 0, 1, 1], [], []>} : vector<420x64xbf16>, vector<64x16xbf16>, vector<420x16xf32> -> vector<420x16xf32>
    %18 = arith.addf %12, %17 : vector<420x16xf32>
    %c0_21 = arith.constant 0 : index
    %c22 = arith.constant 22 : index
    %c0_22 = arith.constant 0 : index
    %19 = vector.load %arg1[%c0_21, %c22, %c0_22] : memref<1x448x64xbf16, #tpu.memory_space<vmem>>, vector<1x420x64xbf16>
    %20 = vector.shape_cast %19 : vector<1x420x64xbf16> to vector<420x64xbf16>
    %c1_23 = arith.constant 1 : index
    %c1_24 = arith.constant 1 : index
    %c0_25 = arith.constant 0 : index
    %c0_26 = arith.constant 0 : index
    %21 = vector.load %arg2[%c1_23, %c1_24, %c0_25, %c0_26] : memref<2x2x64x16xbf16, #tpu.memory_space<vmem>>, vector<1x1x64x16xbf16>
    %22 = vector.shape_cast %21 : vector<1x1x64x16xbf16> to vector<64x16xbf16>
    %cst_27 = arith.constant dense<0.000000e+00> : vector<420x16xf32>
    %23 = tpu.matmul %20, %22, %cst_27 {dimension_numbers = #tpu.dot_dimension_numbers<[1], [0], [0], [1], [0, 0, 1, 1], [], []>} : vector<420x64xbf16>, vector<64x16xbf16>, vector<420x16xf32> -> vector<420x16xf32>
    %24 = arith.addf %18, %23 : vector<420x16xf32>
    %c0_28 = arith.constant 0 : index
    %c0_29 = arith.constant 0 : index
    %25 = vector.load %arg3[%c0_28, %c0_29] : memref<1x16xf32, #tpu.memory_space<vmem>>, vector<1x16xf32>
    %26 = vector.broadcast %25 : vector<1x16xf32> to vector<420x16xf32>
    %27 = arith.addf %24, %26 : vector<420x16xf32>
    %cst_30 = arith.constant 0.000000e+00 : f32
    %28 = vector.broadcast %cst_30 : f32 to vector<420x16xf32>
    %29 = arith.maximumf %27, %28 : vector<420x16xf32>
    %30 = arith.truncf %29 : vector<420x16xf32> to vector<420x16xbf16>
    %c0_31 = arith.constant 0 : index
    %c0_32 = arith.constant 0 : index
    %c0_33 = arith.constant 0 : index
    %31 = vector.load %arg4[%c0_31, %c0_32, %c0_33] : memref<1x420x16xbf16, #tpu.memory_space<vmem>>, vector<1x420x16xbf16>
    %32 = vector.shape_cast %31 : vector<1x420x16xbf16> to vector<420x16xbf16>
    %33 = vector.shape_cast %30 : vector<420x16xbf16> to vector<1x420x16xbf16>
    tpu.vector_store %arg4[%c0_31, %c0_32, %c0_33], %33 {strides = array<i32>} : memref<1x420x16xbf16, #tpu.memory_space<vmem>>, vector<1x420x16xbf16>,
    return
  }
  func.func @transform_0(%arg0: i32) -> (i32, i32, i32) {
    %c0_i32 = arith.constant 0 : i32
    %c0_i32_0 = arith.constant 0 : i32
    %c0_i32_1 = arith.constant 0 : i32
    return %arg0, %c0_i32, %c0_i32_0 : i32, i32, i32
  }
  func.func @transform_1(%arg0: i32) -> (i32, i32, i32, i32) {
    %c0_i32 = arith.constant 0 : i32
    %c0_i32_0 = arith.constant 0 : i32
    %c0_i32_1 = arith.constant 0 : i32
    %c0_i32_2 = arith.constant 0 : i32
    %c0_i32_3 = arith.constant 0 : i32
    return %c0_i32, %c0_i32_0, %c0_i32_1, %c0_i32_2 : i32, i32, i32, i32
  }
  func.func @transform_2(%arg0: i32) -> (i32, i32) {
    %c0_i32 = arith.constant 0 : i32
    %c0_i32_0 = arith.constant 0 : i32
    %c0_i32_1 = arith.constant 0 : i32
    return %c0_i32, %c0_i32_0 : i32, i32
  }
  func.func @transform_3(%arg0: i32) -> (i32, i32, i32) {
    %c0_i32 = arith.constant 0 : i32
    %c0_i32_0 = arith.constant 0 : i32
    %c0_i32_1 = arith.constant 0 : i32
    return %arg0, %c0_i32, %c0_i32_0 : i32, i32, i32
  }
}

module attributes {stable_mosaic.version = 11 : i64} {
  func.func @_conv_s2d_kernel(%arg0: i32, %arg1: memref<1x104x64xbf16, #tpu.memory_space<vmem>>, %arg2: memref<2x2x64x32xbf16, #tpu.memory_space<vmem>>, %arg3: memref<1x32xf32, #tpu.memory_space<vmem>>, %arg4: memref<1x90x32xbf16, #tpu.memory_space<vmem>>) attributes {dimension_semantics = [#tpu.dimension_semantics<parallel>], iteration_bounds = array<i64: 2>, scalar_prefetch = 0 : i64, scratch_operands = 0 : i64, tpu.core_type = #tpu.core_type<tc>, window_params = [{transform_indices = @transform_0, window_bounds = array<i64: 1, 104, 64>}, {pipeline_mode = #tpu.pipeline_mode<synchronous>, transform_indices = @transform_1, window_bounds = array<i64: 2, 2, 64, 32>}, {pipeline_mode = #tpu.pipeline_mode<synchronous>, transform_indices = @transform_2, window_bounds = array<i64: 1, 32>}, {transform_indices = @transform_3, window_bounds = array<i64: 1, 90, 32>}]} {
    %cst = arith.constant 0.000000e+00 : f32
    %0 = vector.broadcast %cst : f32 to vector<90x32xf32>
    %c0 = arith.constant 0 : index
    %c0_0 = arith.constant 0 : index
    %c0_1 = arith.constant 0 : index
    %1 = vector.load %arg1[%c0, %c0_0, %c0_1] : memref<1x104x64xbf16, #tpu.memory_space<vmem>>, vector<1x90x64xbf16>
    %2 = vector.shape_cast %1 : vector<1x90x64xbf16> to vector<90x64xbf16>
    %c0_2 = arith.constant 0 : index
    %c0_3 = arith.constant 0 : index
    %c0_4 = arith.constant 0 : index
    %c0_5 = arith.constant 0 : index
    %3 = vector.load %arg2[%c0_2, %c0_3, %c0_4, %c0_5] : memref<2x2x64x32xbf16, #tpu.memory_space<vmem>>, vector<1x1x64x32xbf16>
    %4 = vector.shape_cast %3 : vector<1x1x64x32xbf16> to vector<64x32xbf16>
    %cst_6 = arith.constant dense<0.000000e+00> : vector<90x32xf32>
    %5 = tpu.matmul %2, %4, %cst_6 {dimension_numbers = #tpu.dot_dimension_numbers<[1], [0], [0], [1], [0, 0, 1, 1], [], []>} : vector<90x64xbf16>, vector<64x32xbf16>, vector<90x32xf32> -> vector<90x32xf32>
    %6 = arith.addf %0, %5 : vector<90x32xf32>
    %c0_7 = arith.constant 0 : index
    %c1 = arith.constant 1 : index
    %c0_8 = arith.constant 0 : index
    %7 = vector.load %arg1[%c0_7, %c1, %c0_8] : memref<1x104x64xbf16, #tpu.memory_space<vmem>>, vector<1x90x64xbf16>
    %8 = vector.shape_cast %7 : vector<1x90x64xbf16> to vector<90x64xbf16>
    %c0_9 = arith.constant 0 : index
    %c1_10 = arith.constant 1 : index
    %c0_11 = arith.constant 0 : index
    %c0_12 = arith.constant 0 : index
    %9 = vector.load %arg2[%c0_9, %c1_10, %c0_11, %c0_12] : memref<2x2x64x32xbf16, #tpu.memory_space<vmem>>, vector<1x1x64x32xbf16>
    %10 = vector.shape_cast %9 : vector<1x1x64x32xbf16> to vector<64x32xbf16>
    %cst_13 = arith.constant dense<0.000000e+00> : vector<90x32xf32>
    %11 = tpu.matmul %8, %10, %cst_13 {dimension_numbers = #tpu.dot_dimension_numbers<[1], [0], [0], [1], [0, 0, 1, 1], [], []>} : vector<90x64xbf16>, vector<64x32xbf16>, vector<90x32xf32> -> vector<90x32xf32>
    %12 = arith.addf %6, %11 : vector<90x32xf32>
    %c0_14 = arith.constant 0 : index
    %c10 = arith.constant 10 : index
    %c0_15 = arith.constant 0 : index
    %13 = vector.load %arg1[%c0_14, %c10, %c0_15] : memref<1x104x64xbf16, #tpu.memory_space<vmem>>, vector<1x90x64xbf16>
    %14 = vector.shape_cast %13 : vector<1x90x64xbf16> to vector<90x64xbf16>
    %c1_16 = arith.constant 1 : index
    %c0_17 = arith.constant 0 : index
    %c0_18 = arith.constant 0 : index
    %c0_19 = arith.constant 0 : index
    %15 = vector.load %arg2[%c1_16, %c0_17, %c0_18, %c0_19] : memref<2x2x64x32xbf16, #tpu.memory_space<vmem>>, vector<1x1x64x32xbf16>
    %16 = vector.shape_cast %15 : vector<1x1x64x32xbf16> to vector<64x32xbf16>
    %cst_20 = arith.constant dense<0.000000e+00> : vector<90x32xf32>
    %17 = tpu.matmul %14, %16, %cst_20 {dimension_numbers = #tpu.dot_dimension_numbers<[1], [0], [0], [1], [0, 0, 1, 1], [], []>} : vector<90x64xbf16>, vector<64x32xbf16>, vector<90x32xf32> -> vector<90x32xf32>
    %18 = arith.addf %12, %17 : vector<90x32xf32>
    %c0_21 = arith.constant 0 : index
    %c11 = arith.constant 11 : index
    %c0_22 = arith.constant 0 : index
    %19 = vector.load %arg1[%c0_21, %c11, %c0_22] : memref<1x104x64xbf16, #tpu.memory_space<vmem>>, vector<1x90x64xbf16>
    %20 = vector.shape_cast %19 : vector<1x90x64xbf16> to vector<90x64xbf16>
    %c1_23 = arith.constant 1 : index
    %c1_24 = arith.constant 1 : index
    %c0_25 = arith.constant 0 : index
    %c0_26 = arith.constant 0 : index
    %21 = vector.load %arg2[%c1_23, %c1_24, %c0_25, %c0_26] : memref<2x2x64x32xbf16, #tpu.memory_space<vmem>>, vector<1x1x64x32xbf16>
    %22 = vector.shape_cast %21 : vector<1x1x64x32xbf16> to vector<64x32xbf16>
    %cst_27 = arith.constant dense<0.000000e+00> : vector<90x32xf32>
    %23 = tpu.matmul %20, %22, %cst_27 {dimension_numbers = #tpu.dot_dimension_numbers<[1], [0], [0], [1], [0, 0, 1, 1], [], []>} : vector<90x64xbf16>, vector<64x32xbf16>, vector<90x32xf32> -> vector<90x32xf32>
    %24 = arith.addf %18, %23 : vector<90x32xf32>
    %c0_28 = arith.constant 0 : index
    %c0_29 = arith.constant 0 : index
    %25 = vector.load %arg3[%c0_28, %c0_29] : memref<1x32xf32, #tpu.memory_space<vmem>>, vector<1x32xf32>
    %26 = vector.broadcast %25 : vector<1x32xf32> to vector<90x32xf32>
    %27 = arith.addf %24, %26 : vector<90x32xf32>
    %cst_30 = arith.constant 0.000000e+00 : f32
    %28 = vector.broadcast %cst_30 : f32 to vector<90x32xf32>
    %29 = arith.maximumf %27, %28 : vector<90x32xf32>
    %30 = arith.truncf %29 : vector<90x32xf32> to vector<90x32xbf16>
    %c0_31 = arith.constant 0 : index
    %c0_32 = arith.constant 0 : index
    %c0_33 = arith.constant 0 : index
    %31 = vector.load %arg4[%c0_31, %c0_32, %c0_33] : memref<1x90x32xbf16, #tpu.memory_space<vmem>>, vector<1x90x32xbf16>
    %32 = vector.shape_cast %31 : vector<1x90x32xbf16> to vector<90x32xbf16>
    %33 = vector.shape_cast %30 : vector<90x32xbf16> to vector<1x90x32xbf16>
    tpu.vector_store %arg4[%c0_31, %c0_32, %c0_33], %33 {strides = array<i32>} : memref<1x90x32xbf16, #tpu.memory_space<vmem>>, vector<1x90x32xbf16>,
    return
  }
  func.func @transform_0(%arg0: i32) -> (i32, i32, i32) {
    %c0_i32 = arith.constant 0 : i32
    %c0_i32_0 = arith.constant 0 : i32
    %c0_i32_1 = arith.constant 0 : i32
    return %arg0, %c0_i32, %c0_i32_0 : i32, i32, i32
  }
  func.func @transform_1(%arg0: i32) -> (i32, i32, i32, i32) {
    %c0_i32 = arith.constant 0 : i32
    %c0_i32_0 = arith.constant 0 : i32
    %c0_i32_1 = arith.constant 0 : i32
    %c0_i32_2 = arith.constant 0 : i32
    %c0_i32_3 = arith.constant 0 : i32
    return %c0_i32, %c0_i32_0, %c0_i32_1, %c0_i32_2 : i32, i32, i32, i32
  }
  func.func @transform_2(%arg0: i32) -> (i32, i32) {
    %c0_i32 = arith.constant 0 : i32
    %c0_i32_0 = arith.constant 0 : i32
    %c0_i32_1 = arith.constant 0 : i32
    return %c0_i32, %c0_i32_0 : i32, i32
  }
  func.func @transform_3(%arg0: i32) -> (i32, i32, i32) {
    %c0_i32 = arith.constant 0 : i32
    %c0_i32_0 = arith.constant 0 : i32
    %c0_i32_1 = arith.constant 0 : i32
    return %arg0, %c0_i32, %c0_i32_0 : i32, i32, i32
  }
}

module attributes {stable_mosaic.version = 11 : i64} {
  func.func @_mlp_kernel(%arg0: i32, %arg1: memref<2x2592xbf16, #tpu.memory_space<vmem>>, %arg2: memref<2592x256xbf16, #tpu.memory_space<vmem>>, %arg3: memref<1x256xf32, #tpu.memory_space<vmem>>, %arg4: memref<256x64xbf16, #tpu.memory_space<vmem>>, %arg5: memref<1x64xf32, #tpu.memory_space<vmem>>, %arg6: memref<64x4xbf16, #tpu.memory_space<vmem>>, %arg7: memref<1x4xf32, #tpu.memory_space<vmem>>, %arg8: memref<2x4xf32, #tpu.memory_space<vmem>>) attributes {dimension_semantics = [#tpu.dimension_semantics<parallel>], iteration_bounds = array<i64: 1>, scalar_prefetch = 0 : i64, scratch_operands = 0 : i64, tpu.core_type = #tpu.core_type<tc>, window_params = [{transform_indices = @transform_0, window_bounds = array<i64: 2, 2592>}, {pipeline_mode = #tpu.pipeline_mode<synchronous>, transform_indices = @transform_1, window_bounds = array<i64: 2592, 256>}, {pipeline_mode = #tpu.pipeline_mode<synchronous>, transform_indices = @transform_2, window_bounds = array<i64: 1, 256>}, {pipeline_mode = #tpu.pipeline_mode<synchronous>, transform_indices = @transform_3, window_bounds = array<i64: 256, 64>}, {pipeline_mode = #tpu.pipeline_mode<synchronous>, transform_indices = @transform_4, window_bounds = array<i64: 1, 64>}, {pipeline_mode = #tpu.pipeline_mode<synchronous>, transform_indices = @transform_5, window_bounds = array<i64: 64, 4>}, {pipeline_mode = #tpu.pipeline_mode<synchronous>, transform_indices = @transform_6, window_bounds = array<i64: 1, 4>}, {transform_indices = @transform_7, window_bounds = array<i64: 2, 4>}]} {
    %c0 = arith.constant 0 : index
    %c0_0 = arith.constant 0 : index
    %0 = vector.load %arg1[%c0, %c0_0] : memref<2x2592xbf16, #tpu.memory_space<vmem>>, vector<2x2592xbf16>
    %c0_1 = arith.constant 0 : index
    %c0_2 = arith.constant 0 : index
    %1 = vector.load %arg2[%c0_1, %c0_2] : memref<2592x256xbf16, #tpu.memory_space<vmem>>, vector<2592x256xbf16>
    %cst = arith.constant dense<0.000000e+00> : vector<2x256xf32>
    %2 = tpu.matmul %0, %1, %cst {dimension_numbers = #tpu.dot_dimension_numbers<[1], [0], [0], [1], [0, 0, 1, 1], [], []>} : vector<2x2592xbf16>, vector<2592x256xbf16>, vector<2x256xf32> -> vector<2x256xf32>
    %c0_3 = arith.constant 0 : index
    %c0_4 = arith.constant 0 : index
    %3 = vector.load %arg3[%c0_3, %c0_4] : memref<1x256xf32, #tpu.memory_space<vmem>>, vector<1x256xf32>
    %4 = vector.broadcast %3 : vector<1x256xf32> to vector<2x256xf32>
    %5 = arith.addf %2, %4 : vector<2x256xf32>
    %cst_5 = arith.constant 0.000000e+00 : f32
    %6 = vector.broadcast %cst_5 : f32 to vector<2x256xf32>
    %7 = arith.maximumf %5, %6 : vector<2x256xf32>
    %8 = arith.truncf %7 : vector<2x256xf32> to vector<2x256xbf16>
    %c0_6 = arith.constant 0 : index
    %c0_7 = arith.constant 0 : index
    %9 = vector.load %arg4[%c0_6, %c0_7] : memref<256x64xbf16, #tpu.memory_space<vmem>>, vector<256x64xbf16>
    %cst_8 = arith.constant dense<0.000000e+00> : vector<2x64xf32>
    %10 = tpu.matmul %8, %9, %cst_8 {dimension_numbers = #tpu.dot_dimension_numbers<[1], [0], [0], [1], [0, 0, 1, 1], [], []>} : vector<2x256xbf16>, vector<256x64xbf16>, vector<2x64xf32> -> vector<2x64xf32>
    %c0_9 = arith.constant 0 : index
    %c0_10 = arith.constant 0 : index
    %11 = vector.load %arg5[%c0_9, %c0_10] : memref<1x64xf32, #tpu.memory_space<vmem>>, vector<1x64xf32>
    %12 = vector.broadcast %11 : vector<1x64xf32> to vector<2x64xf32>
    %13 = arith.addf %10, %12 : vector<2x64xf32>
    %cst_11 = arith.constant 0.000000e+00 : f32
    %14 = vector.broadcast %cst_11 : f32 to vector<2x64xf32>
    %15 = arith.maximumf %13, %14 : vector<2x64xf32>
    %16 = arith.truncf %15 : vector<2x64xf32> to vector<2x64xbf16>
    %c0_12 = arith.constant 0 : index
    %c0_13 = arith.constant 0 : index
    %17 = vector.load %arg6[%c0_12, %c0_13] : memref<64x4xbf16, #tpu.memory_space<vmem>>, vector<64x4xbf16>
    %cst_14 = arith.constant dense<0.000000e+00> : vector<2x4xf32>
    %18 = tpu.matmul %16, %17, %cst_14 {dimension_numbers = #tpu.dot_dimension_numbers<[1], [0], [0], [1], [0, 0, 1, 1], [], []>} : vector<2x64xbf16>, vector<64x4xbf16>, vector<2x4xf32> -> vector<2x4xf32>
    %c0_15 = arith.constant 0 : index
    %c0_16 = arith.constant 0 : index
    %19 = vector.load %arg7[%c0_15, %c0_16] : memref<1x4xf32, #tpu.memory_space<vmem>>, vector<1x4xf32>
    %20 = vector.broadcast %19 : vector<1x4xf32> to vector<2x4xf32>
    %21 = arith.addf %18, %20 : vector<2x4xf32>
    %c0_17 = arith.constant 0 : index
    %c0_18 = arith.constant 0 : index
    %22 = vector.load %arg8[%c0_17, %c0_18] : memref<2x4xf32, #tpu.memory_space<vmem>>, vector<2x4xf32>
    tpu.vector_store %arg8[%c0_17, %c0_18], %21 {strides = array<i32>} : memref<2x4xf32, #tpu.memory_space<vmem>>, vector<2x4xf32>,
    return
  }
  func.func @transform_0(%arg0: i32) -> (i32, i32) {
    %c0_i32 = arith.constant 0 : i32
    %c0_i32_0 = arith.constant 0 : i32
    return %arg0, %c0_i32 : i32, i32
  }
  func.func @transform_1(%arg0: i32) -> (i32, i32) {
    %c0_i32 = arith.constant 0 : i32
    %c0_i32_0 = arith.constant 0 : i32
    %c0_i32_1 = arith.constant 0 : i32
    return %c0_i32, %c0_i32_0 : i32, i32
  }
  func.func @transform_2(%arg0: i32) -> (i32, i32) {
    %c0_i32 = arith.constant 0 : i32
    %c0_i32_0 = arith.constant 0 : i32
    %c0_i32_1 = arith.constant 0 : i32
    return %c0_i32, %c0_i32_0 : i32, i32
  }
  func.func @transform_3(%arg0: i32) -> (i32, i32) {
    %c0_i32 = arith.constant 0 : i32
    %c0_i32_0 = arith.constant 0 : i32
    %c0_i32_1 = arith.constant 0 : i32
    return %c0_i32, %c0_i32_0 : i32, i32
  }
  func.func @transform_4(%arg0: i32) -> (i32, i32) {
    %c0_i32 = arith.constant 0 : i32
    %c0_i32_0 = arith.constant 0 : i32
    %c0_i32_1 = arith.constant 0 : i32
    return %c0_i32, %c0_i32_0 : i32, i32
  }
  func.func @transform_5(%arg0: i32) -> (i32, i32) {
    %c0_i32 = arith.constant 0 : i32
    %c0_i32_0 = arith.constant 0 : i32
    %c0_i32_1 = arith.constant 0 : i32
    return %c0_i32, %c0_i32_0 : i32, i32
  }
  func.func @transform_6(%arg0: i32) -> (i32, i32) {
    %c0_i32 = arith.constant 0 : i32
    %c0_i32_0 = arith.constant 0 : i32
    %c0_i32_1 = arith.constant 0 : i32
    return %c0_i32, %c0_i32_0 : i32, i32
  }
  func.func @transform_7(%arg0: i32) -> (i32, i32) {
    %c0_i32 = arith.constant 0 : i32
    %c0_i32_0 = arith.constant 0 : i32
    return %arg0, %c0_i32 : i32, i32
  }
}

</mosaic_0001>

<llo_original>
// kernel: cnn_model_forward.3
$region0: #{cnn_model_forward.3}
  #allocation0 [shape = 'u32[]', space=smem, size = 0x4, offset = 0x4, fixed_abs, tag = 'smem constant byte address 0x4 - core index']
  #allocation1 [shape = 'u32[144,128]{1,0:T(1,128)}', space=vmem, size = 0x12000, scoped, tag = 'internal scratch']
  %s0 = inlined_call_operand.vmem [shape: bf16[2,448,64], index: 0, kind: input, shape index: {}]
  %s1 = inlined_call_operand.vmem [shape: bf16[2,2,64,16], index: 1, kind: input, shape index: {}]
  %s2 = inlined_call_operand.vmem [shape: f32[1,16], index: 2, kind: input, shape index: {}]
  %s3 = inlined_call_operand.vmem [shape: bf16[2,420,16], index: 3, kind: output, shape index: {}]
  %s4 = sld [smem:[#allocation0]]
  $region45: #{cnn_model_forward.3} parent=0
    _
  %s6 = ssub.s32 1, %s4
  %s7 = scalar_select 0, %s6, %s4
  loop: start=0, step=1, limit=4
  $region2: #{cnn_model_forward.3} parent=0 // loop_pre_header
    _
  $region3: #{cnn_model_forward.3} parent=0 // loop_header
    %s9 = sphi 0, %s13
    %p10 = scmp.ge.s32.totalorder %s9, 4
    %s19 = sphi 0, %s21
    %s22 = sphi 0, %s19
    %s23 = sphi 0, %s22
    %s39 = sphi 0, %s23
    %s43 = sphi 0, %s43
    %s45 = sphi 0, %s43
    %s46 = sphi 0, %s45
    %s60 = sphi 0, %s46
    %s64 = sphi 0, %s64
    %s66 = sphi 0, %s64
    %s67 = sphi 0, %s66
    %s81 = sphi 0, %s67
    %s87 = sphi 0, %s89
    %s90 = sphi 0, %s87
    %s91 = sphi 0, %s90
    %s107 = sphi 0, %s91
  $region4: #{cnn_model_forward.3} parent=0 // loop_header_branch
    %12 = sbr.rel (%p10) target = $region8
  $region5: #{cnn_model_forward.3} parent=0 // loop_body
    %s14 = ssub.s32 %s9, 1
    %s15 = ssub.s32 %s9, 2
    %s16 = sadd.s32 %s9, 1
    %s17 = ssub.s32 %s9, %s16
    %p18 = scmp.eq.s32.totalorder %s17, 0
    %s20 = sadd.s32 %s19, 1
    %s21 = scalar_select %p18, %s19, %s20
    %p24 = pneg %p18
    %p25 = scmp.eq.s32.totalorder %s9, 1
    %p26 = por %p24, %p25
    %p27 = scmp.ne.s32.totalorder %s19, %s22
    %p28 = scmp.eq.s32.totalorder %s9, 0
    %p29 = por %p27, %p28
    %p30 = scmp.ne.s32.totalorder %s19, %s22
    %p31 = scmp.eq.s32.totalorder %s14, 1
    %p32 = por %p30, %p31
    %p33 = scmp.ne.s32.totalorder %s22, %s23
    %p34 = scmp.eq.s32.totalorder %s14, 0
    %p35 = por %p33, %p34
    %p36 = scmp.ne.s32.totalorder %s22, %s23
    %p37 = scmp.eq.s32.totalorder %s15, 1
    %p38 = por %p36, %p37
    %p40 = scmp.ne.s32.totalorder %s23, %s39
    %p41 = scmp.eq.s32.totalorder %s15, 0
    %p42 = por %p40, %p41
    %s44 = sadd.s32 %s43, 1
    %p47 = scmp.eq.s32.totalorder %s9, 1
    %p48 = scmp.ne.s32.totalorder %s43, %s45
    %p49 = scmp.eq.s32.totalorder %s9, 0
    %p50 = por %p48, %p49
    %p51 = scmp.ne.s32.totalorder %s43, %s45
    %p52 = scmp.eq.s32.totalorder %s14, 1
    %p53 = por %p51, %p52
    %p54 = scmp.ne.s32.totalorder %s45, %s46
    %p55 = scmp.eq.s32.totalorder %s14, 0
    %p56 = por %p54, %p55
    %p57 = scmp.ne.s32.totalorder %s45, %s46
    %p58 = scmp.eq.s32.totalorder %s15, 1
    %p59 = por %p57, %p58
    %p61 = scmp.ne.s32.totalorder %s46, %s60
    %p62 = scmp.eq.s32.totalorder %s15, 0
    %p63 = por %p61, %p62
    %s65 = sadd.s32 %s64, 1
    %p68 = scmp.eq.s32.totalorder %s9, 1
    %p69 = scmp.ne.s32.totalorder %s64, %s66
    %p70 = scmp.eq.s32.totalorder %s9, 0
    %p71 = por %p69, %p70
    %p72 = scmp.ne.s32.totalorder %s64, %s66
    %p73 = scmp.eq.s32.totalorder %s14, 1
    %p74 = por %p72, %p73
    %p75 = scmp.ne.s32.totalorder %s66, %s67
    %p76 = scmp.eq.s32.totalorder %s14, 0
    %p77 = por %p75, %p76
    %p78 = scmp.ne.s32.totalorder %s66, %s67
    %p79 = scmp.eq.s32.totalorder %s15, 1
    %p80 = por %p78, %p79
    %p82 = scmp.ne.s32.totalorder %s67, %s81
    %p83 = scmp.eq.s32.totalorder %s15, 0
    %p84 = por %p82, %p83
    %s85 = ssub.s32 %s9, %s16
    %p86 = scmp.eq.s32.totalorder %s85, 0
    %s88 = sadd.s32 %s87, 1
    %s89 = scalar_select %p86, %s87, %s88
    %p92 = pneg %p86
    %p93 = scmp.eq.s32.totalorder %s9, 1
    %p94 = por %p92, %p93
    %p95 = scmp.ne.s32.totalorder %s87, %s90
    %p96 = scmp.eq.s32.totalorder %s9, 0
    %p97 = por %p95, %p96
    %p98 = scmp.ne.s32.totalorder %s87, %s90
    %p99 = scmp.eq.s32.totalorder %s14, 1
    %p100 = por %p98, %p99
    %p101 = scmp.ne.s32.totalorder %s90, %s91
    %p102 = scmp.eq.s32.totalorder %s14, 0
    %p103 = por %p101, %p102
    %p104 = scmp.ne.s32.totalorder %s90, %s91
    %p105 = scmp.eq.s32.totalorder %s15, 1
    %p106 = por %p104, %p105
    %p108 = scmp.ne.s32.totalorder %s91, %s107
    %p109 = scmp.eq.s32.totalorder %s15, 0
    %p110 = por %p108, %p109
    %p111 = scmp.le.s32.totalorder 1, %s9
    %p112 = scmp.lt.s32.totalorder %s9, 3
    %p113 = pnand %p111, %p112
    %p114 = pneg %p113
    // Predicated region
    $region9: #{cnn_model_forward.3} parent=5 // pred_check
      _
    $region10: #{cnn_model_forward.3} parent=5 // pred_check_branch
      %116 = sbr.rel (%p113) target = $region12
    $region11: #{cnn_model_forward.3} parent=5 // pred_region
      %s117 = ssub.s32 %s9, 1
      // Predicated region
      $region13: #{cnn_model_forward.3} parent=11 // pred_check
        %p118 = pneg %p56
      $region14: #{cnn_model_forward.3} parent=11 // pred_check_branch
        %120 = sbr.rel (%p118) target = $region16
      $region15: #{cnn_model_forward.3} parent=11 // pred_region
        _
      $region16: #{cnn_model_forward.3} parent=11 // pred_fallthru
        _
      // Predicated region
      $region17: #{cnn_model_forward.3} parent=11 // pred_check
        %p121 = pneg %p77
      $region18: #{cnn_model_forward.3} parent=11 // pred_check_branch
        %123 = sbr.rel (%p121) target = $region20
      $region19: #{cnn_model_forward.3} parent=11 // pred_region
        _
      $region20: #{cnn_model_forward.3} parent=11 // pred_fallthru
        _
    $region12: #{cnn_model_forward.3} parent=5 // pred_fallthru
      _
    %p124 = scmp.lt.s32.totalorder %s9, 2
    // Predicated region
    $region21: #{cnn_model_forward.3} parent=5 // pred_check
      %p125 = pneg %p124
    $region22: #{cnn_model_forward.3} parent=5 // pred_check_branch
      %127 = sbr.rel (%p125) target = $region24
    $region23: #{cnn_model_forward.3} parent=5 // pred_region
      // Predicated region
      $region25: #{cnn_model_forward.3} parent=23 // pred_check
        %p128 = pneg %p29
      $region26: #{cnn_model_forward.3} parent=23 // pred_check_branch
        %130 = sbr.rel (%p128) target = $region28
      $region27: #{cnn_model_forward.3} parent=23 // pred_region
        %p131 = scmp.lt.s32.totalorder %s9, 1
        %s132 = scalar_select %p131, %s9, 1
        %s133 = smul.addr %s132, 56
        %s134 = smul.addr %s133, 4
        %s135 = scalar_lea.vmem %s0, %s134
      $region28: #{cnn_model_forward.3} parent=23 // pred_fallthru
        _
    $region24: #{cnn_model_forward.3} parent=5 // pred_fallthru
      _
    %p136 = scmp.le.s32.totalorder 1, %s9
    %p137 = scmp.lt.s32.totalorder %s9, 3
    %p138 = pnand %p136, %p137
    %p139 = pneg %p138
    // Predicated region
    $region29: #{cnn_model_forward.3} parent=5 // pred_check
      _
    $region30: #{cnn_model_forward.3} parent=5 // pred_check_branch
      %141 = sbr.rel (%p138) target = $region32
    $region31: #{cnn_model_forward.3} parent=5 // pred_region
      %s142 = ssub.s32 %s9, 1
      %p143 = scmp.lt.s32.totalorder %s14, 1
      %s144 = scalar_select %p143, %s14, 1
      %s145 = smul.addr %s144, 56
      %s146 = smul.addr %s145, 4
      %s147 = scalar_lea.vmem %s0, %s146
      %p148 = pneg %p35
      %p149 = pneg %p32
      %p150 = pneg %p56
      %p151 = pneg %p53
      %p152 = pneg %p77
      %p153 = pneg %p74
      %p154 = pneg %p103
      %p155 = pneg %p100
      %p156 = scmp.lt.s32.totalorder %s14, 1
      %s157 = scalar_select %p156, %s14, 1
      %s158 = smul.addr %s157, 53
      %s159 = smul.addr %s158, 4
      %s160 = scalar_lea.vmem %s3, %s159
      %p161 = scmp.lt.s32.totalorder %s14, 1
      %s162 = scalar_select %p161, %s14, 1
      %s163 = smul.addr %s162, 56
      %s164 = smul.addr %s163, 4
      %s165 = scalar_lea.vmem %s0, %s164
      %p166 = scmp.lt.s32.totalorder %s14, 1
      %s167 = scalar_select %p166, %s14, 1
      %s168 = smul.addr %s167, 53
      %s169 = smul.addr %s168, 4
      %s170 = scalar_lea.vmem %s3, %s169
      %v172 = vld [vmem:[%s165] sm:$0xf]
      %v173 = vld [vmem:[%s165 + $0x4] sm:$0xf]
      %v174 = vld [vmem:[%s165 + $0x8] sm:$0xf]
      %v175 = vld [vmem:[%s165 + $0xc] sm:$0xf]
      %v176 = vld [vmem:[%s165 + $0x10] sm:$0xf]
      %v177 = vld [vmem:[%s165 + $0x14] sm:$0xf]
      %v178 = vld [vmem:[%s165 + $0x18] sm:$0xf]
      %v179 = vld [vmem:[%s165 + $0x1c] sm:$0xf]
      %v180 = vld [vmem:[%s165 + $0x20] sm:$0xf]
      %v181 = vld [vmem:[%s165 + $0x24] sm:$0xf]
      %v182 = vld [vmem:[%s165 + $0x28] sm:$0xf]
      %v183 = vld [vmem:[%s165 + $0x2c] sm:$0xf]
      %v184 = vld [vmem:[%s165 + $0x30] sm:$0xf]
      %v185 = vld [vmem:[%s165 + $0x34] sm:$0xf]
      %v186 = vld [vmem:[%s165 + $0x38] sm:$0xf]
      %v187 = vld [vmem:[%s165 + $0x3c] sm:$0xf]
      %v188 = vld [vmem:[%s165 + $0x40] sm:$0xf]
      %v189 = vld [vmem:[%s165 + $0x44] sm:$0xf]
      %v190 = vld [vmem:[%s165 + $0x48] sm:$0xf]
      %v191 = vld [vmem:[%s165 + $0x4c] sm:$0xf]
      %v192 = vld [vmem:[%s165 + $0x50] sm:$0xf]
      %v193 = vld [vmem:[%s165 + $0x54] sm:$0xf]
      %v194 = vld [vmem:[%s165 + $0x58] sm:$0xf]
      %v195 = vld [vmem:[%s165 + $0x5c] sm:$0xf]
      %v196 = vld [vmem:[%s165 + $0x60] sm:$0xf]
      %v197 = vld [vmem:[%s165 + $0x64] sm:$0xf]
      %v198 = vld [vmem:[%s165 + $0x68] sm:$0xf]
      %v199 = vld [vmem:[%s165 + $0x6c] sm:$0xf]
      %v200 = vld [vmem:[%s165 + $0x70] sm:$0xf]
      %v201 = vld [vmem:[%s165 + $0x74] sm:$0xf]
      %v202 = vld [vmem:[%s165 + $0x78] sm:$0xf]
      %v203 = vld [vmem:[%s165 + $0x7c] sm:$0xf]
      %v204 = vld [vmem:[%s165 + $0x80] sm:$0xf]
      %v205 = vld [vmem:[%s165 + $0x84] sm:$0xf]
      %v206 = vld [vmem:[%s165 + $0x88] sm:$0xf]
      %v207 = vld [vmem:[%s165 + $0x8c] sm:$0xf]
      %v208 = vld [vmem:[%s165 + $0x90] sm:$0xf]
      %v209 = vld [vmem:[%s165 + $0x94] sm:$0xf]
      %v210 = vld [vmem:[%s165 + $0x98] sm:$0xf]
      %v211 = vld [vmem:[%s165 + $0x9c] sm:$0xf]
      %v212 = vld [vmem:[%s165 + $0xa0] sm:$0xf]
      %v213 = vld [vmem:[%s165 + $0xa4] sm:$0xf]
      %v214 = vld [vmem:[%s165 + $0xa8] sm:$0xf]
      %v215 = vld [vmem:[%s165 + $0xac] sm:$0xf]
      %v216 = vld [vmem:[%s165 + $0xb0] sm:$0xf]
      %v217 = vld [vmem:[%s165 + $0xb4] sm:$0xf]
      %v218 = vld [vmem:[%s165 + $0xb8] sm:$0xf]
      %v219 = vld [vmem:[%s165 + $0xbc] sm:$0xf]
      %v220 = vld [vmem:[%s165 + $0xc0] sm:$0xf]
      %v221 = vld [vmem:[%s165 + $0xc4] sm:$0xf]
      %v222 = vld [vmem:[%s165 + $0xc8] sm:$0xf]
      %v223 = vld [vmem:[%s165 + $0xcc] sm:$0xf]
      %v224 = vld [vmem:[%s165 + $0xd0] sm:$0x3]
      %v225 = vld [vmem:[%s1] sm:$0xf]
      %v226 = vld [vmem:[%s1 + $0x4] sm:$0xf]
      %v227 = vld [vmem:[%s1 + $0x8] sm:$0xf]
      %v228 = vld [vmem:[%s1 + $0xc] sm:$0xf]
      %v229 = vld [vmem:[%s1 + $0x10] sm:$0xf]
      %v230 = vld [vmem:[%s1 + $0x14] sm:$0xf]
      %v231 = vld [vmem:[%s1 + $0x18] sm:$0xf]
      %v232 = vld [vmem:[%s1 + $0x1c] sm:$0xf]
      %v233 = vld [vmem:[%s165 + $0xd0] sm:$0x7]
      %s234 = scalar_lea.vmem %s1, 32
      %v235 = vld [vmem:[%s234] sm:$0xf]
      %v236 = vld [vmem:[%s234 + $0x4] sm:$0xf]
      %v237 = vld [vmem:[%s234 + $0x8] sm:$0xf]
      %v238 = vld [vmem:[%s234 + $0xc] sm:$0xf]
      %v239 = vld [vmem:[%s234 + $0x10] sm:$0xf]
      %v240 = vld [vmem:[%s234 + $0x14] sm:$0xf]
      %v241 = vld [vmem:[%s234 + $0x18] sm:$0xf]
      %v242 = vld [vmem:[%s234 + $0x1c] sm:$0xf]
      %v296 = vunpack.c.l.b16 %v172
      %v297 = vunpack.c.l.b16 %v173
      %v298 = vunpack.c.l.b16 %v174
      %v299 = vunpack.c.l.b16 %v175
      %v300 = vunpack.c.l.b16 %v176
      %v301 = vunpack.c.l.b16 %v177
      %v302 = vunpack.c.l.b16 %v178
      %v303 = vunpack.c.l.b16 %v179
      %v304 = vunpack.c.l.b16 %v180
      %v305 = vunpack.c.l.b16 %v181
      %v306 = vunpack.c.l.b16 %v182
      %v307 = vunpack.c.l.b16 %v183
      %v308 = vunpack.c.l.b16 %v184
      %v309 = vunpack.c.l.b16 %v185
      %v310 = vunpack.c.l.b16 %v186
      %v311 = vunpack.c.l.b16 %v187
      %v312 = vunpack.c.l.b16 %v188
      %v313 = vunpack.c.l.b16 %v189
      %v314 = vunpack.c.l.b16 %v190
      %v315 = vunpack.c.l.b16 %v191
      %v316 = vunpack.c.l.b16 %v192
      %v317 = vunpack.c.l.b16 %v193
      %v318 = vunpack.c.l.b16 %v194
      %v319 = vunpack.c.l.b16 %v195
      %v320 = vunpack.c.l.b16 %v196
      %v321 = vunpack.c.l.b16 %v197
      %v322 = vunpack.c.l.b16 %v198
      %v323 = vunpack.c.l.b16 %v199
      %v324 = vunpack.c.l.b16 %v200
      %v325 = vunpack.c.l.b16 %v201
      %v326 = vunpack.c.l.b16 %v202
      %v327 = vunpack.c.l.b16 %v203
      %v328 = vunpack.c.l.b16 %v204
      %v329 = vunpack.c.l.b16 %v205
      %v330 = vunpack.c.l.b16 %v206
      %v331 = vunpack.c.l.b16 %v207
      %v332 = vunpack.c.l.b16 %v208
      %v333 = vunpack.c.l.b16 %v209
      %v334 = vunpack.c.l.b16 %v210
      %v335 = vunpack.c.l.b16 %v211
      %v336 = vunpack.c.l.b16 %v212
      %v337 = vunpack.c.l.b16 %v213
      %v338 = vunpack.c.l.b16 %v214
      %v339 = vunpack.c.l.b16 %v215
      %v340 = vunpack.c.l.b16 %v216
      %v341 = vunpack.c.l.b16 %v217
      %v342 = vunpack.c.l.b16 %v218
      %v343 = vunpack.c.l.b16 %v219
      %v344 = vunpack.c.l.b16 %v220
      %v345 = vunpack.c.l.b16 %v221
      %v346 = vunpack.c.l.b16 %v222
      %v347 = vunpack.c.l.b16 %v223
      %v348 = vunpack.c.l.b16 %v233
      %v349 = vpack.c.b16 %v297, %v296
      %v350 = vpack.c.b16 %v299, %v298
      %v351 = vpack.c.b16 %v301, %v300
      %v352 = vpack.c.b16 %v303, %v302
      %v353 = vpack.c.b16 %v305, %v304
      %v354 = vpack.c.b16 %v307, %v306
      %v355 = vpack.c.b16 %v309, %v308
      %v356 = vpack.c.b16 %v311, %v310
      %v357 = vpack.c.b16 %v313, %v312
      %v358 = vpack.c.b16 %v315, %v314
      %v359 = vpack.c.b16 %v317, %v316
      %v360 = vpack.c.b16 %v319, %v318
      %v361 = vpack.c.b16 %v321, %v320
      %v362 = vpack.c.b16 %v323, %v322
      %v363 = vpack.c.b16 %v325, %v324
      %v364 = vpack.c.b16 %v327, %v326
      %v365 = vpack.c.b16 %v329, %v328
      %v366 = vpack.c.b16 %v331, %v330
      %v367 = vpack.c.b16 %v333, %v332
      %v368 = vpack.c.b16 %v335, %v334
      %v369 = vpack.c.b16 %v337, %v336
      %v370 = vpack.c.b16 %v339, %v338
      %v371 = vpack.c.b16 %v341, %v340
      %v372 = vpack.c.b16 %v343, %v342
      %v373 = vpack.c.b16 %v345, %v344
      %v374 = vpack.c.b16 %v347, %v346
      %v375 = vpack.c.b16 %v348, %v348
      %vm376 = vsmask.f32 7424
      %v378 = vshrl.u32 %v349, 16
      %v380 = vshll.u32 %v349, 16
      %v382 = vrot.slane %v380, 1
      %v383 = vor.u32 %v378, %v382
      %v385 = vshll.u32 %v350, 16
      %v387 = vrot.slane %v385, 1
      %v388 = vsel %vm376, %v383, %v387
      %v389 = vshrl.u32 %v350, 16
      %v391 = vor.u32 %v389, %v387
      %v393 = vshll.u32 %v351, 16
      %v395 = vrot.slane %v393, 1
      %v396 = vsel %vm376, %v391, %v395
      %v397 = vshrl.u32 %v351, 16
      %v399 = vor.u32 %v397, %v395
      %v401 = vshll.u32 %v352, 16
      %v403 = vrot.slane %v401, 1
      %v404 = vsel %vm376, %v399, %v403
      %v405 = vshrl.u32 %v352, 16
      %v407 = vor.u32 %v405, %v403
      %v409 = vshll.u32 %v353, 16
      %v411 = vrot.slane %v409, 1
      %v412 = vsel %vm376, %v407, %v411
      %v413 = vshrl.u32 %v353, 16
      %v415 = vor.u32 %v413, %v411
      %v417 = vshll.u32 %v354, 16
      %v419 = vrot.slane %v417, 1
      %v420 = vsel %vm376, %v415, %v419
      %v421 = vshrl.u32 %v354, 16
      %v423 = vor.u32 %v421, %v419
      %v425 = vshll.u32 %v355, 16
      %v427 = vrot.slane %v425, 1
      %v428 = vsel %vm376, %v423, %v427
      %v429 = vshrl.u32 %v355, 16
      %v431 = vor.u32 %v429, %v427
      %v433 = vshll.u32 %v356, 16
      %v435 = vrot.slane %v433, 1
      %v436 = vsel %vm376, %v431, %v435
      %v437 = vshrl.u32 %v356, 16
      %v439 = vor.u32 %v437, %v435
      %v441 = vshll.u32 %v357, 16
      %v443 = vrot.slane %v441, 1
      %v444 = vsel %vm376, %v439, %v443
      %v445 = vshrl.u32 %v357, 16
      %v447 = vor.u32 %v445, %v443
      %v449 = vshll.u32 %v358, 16
      %v451 = vrot.slane %v449, 1
      %v452 = vsel %vm376, %v447, %v451
      %v453 = vshrl.u32 %v358, 16
      %v455 = vor.u32 %v453, %v451
      %v457 = vshll.u32 %v359, 16
      %v459 = vrot.slane %v457, 1
      %v460 = vsel %vm376, %v455, %v459
      %v461 = vshrl.u32 %v359, 16
      %v463 = vor.u32 %v461, %v459
      %v465 = vshll.u32 %v360, 16
      %v467 = vrot.slane %v465, 1
      %v468 = vsel %vm376, %v463, %v467
      %v469 = vshrl.u32 %v360, 16
      %v471 = vor.u32 %v469, %v467
      %v473 = vshll.u32 %v361, 16
      %v475 = vrot.slane %v473, 1
      %v476 = vsel %vm376, %v471, %v475
      %v477 = vshrl.u32 %v361, 16
      %v479 = vor.u32 %v477, %v475
      %v481 = vshll.u32 %v362, 16
      %v483 = vrot.slane %v481, 1
      %v484 = vsel %vm376, %v479, %v483
      %v485 = vshrl.u32 %v362, 16
      %v487 = vor.u32 %v485, %v483
      %v489 = vshll.u32 %v363, 16
      %v491 = vrot.slane %v489, 1
      %v492 = vsel %vm376, %v487, %v491
      %v493 = vshrl.u32 %v363, 16
      %v495 = vor.u32 %v493, %v491
      %v497 = vshll.u32 %v364, 16
      %v499 = vrot.slane %v497, 1
      %v500 = vsel %vm376, %v495, %v499
      %v501 = vshrl.u32 %v364, 16
      %v503 = vor.u32 %v501, %v499
      %v505 = vshll.u32 %v365, 16
      %v507 = vrot.slane %v505, 1
      %v508 = vsel %vm376, %v503, %v507
      %v509 = vshrl.u32 %v365, 16
      %v511 = vor.u32 %v509, %v507
      %v513 = vshll.u32 %v366, 16
      %v515 = vrot.slane %v513, 1
      %v516 = vsel %vm376, %v511, %v515
      %v517 = vshrl.u32 %v366, 16
      %v519 = vor.u32 %v517, %v515
      %v521 = vshll.u32 %v367, 16
      %v523 = vrot.slane %v521, 1
      %v524 = vsel %vm376, %v519, %v523
      %v525 = vshrl.u32 %v367, 16
      %v527 = vor.u32 %v525, %v523
      %v529 = vshll.u32 %v368, 16
      %v531 = vrot.slane %v529, 1
      %v532 = vsel %vm376, %v527, %v531
      %v533 = vshrl.u32 %v368, 16
      %v535 = vor.u32 %v533, %v531
      %v537 = vshll.u32 %v369, 16
      %v539 = vrot.slane %v537, 1
      %v540 = vsel %vm376, %v535, %v539
      %v541 = vshrl.u32 %v369, 16
      %v543 = vor.u32 %v541, %v539
      %v545 = vshll.u32 %v370, 16
      %v547 = vrot.slane %v545, 1
      %v548 = vsel %vm376, %v543, %v547
      %v549 = vshrl.u32 %v370, 16
      %v551 = vor.u32 %v549, %v547
      %v553 = vshll.u32 %v371, 16
      %v555 = vrot.slane %v553, 1
      %v556 = vsel %vm376, %v551, %v555
      %v557 = vshrl.u32 %v371, 16
      %v559 = vor.u32 %v557, %v555
      %v561 = vshll.u32 %v372, 16
      %v563 = vrot.slane %v561, 1
      %v564 = vsel %vm376, %v559, %v563
      %v565 = vshrl.u32 %v372, 16
      %v567 = vor.u32 %v565, %v563
      %v569 = vshll.u32 %v373, 16
      %v571 = vrot.slane %v569, 1
      %v572 = vsel %vm376, %v567, %v571
      %v573 = vshrl.u32 %v373, 16
      %v575 = vor.u32 %v573, %v571
      %v577 = vshll.u32 %v374, 16
      %v579 = vrot.slane %v577, 1
      %v580 = vsel %vm376, %v575, %v579
      %v581 = vshrl.u32 %v374, 16
      %v583 = vor.u32 %v581, %v579
      %v585 = vshll.u32 %v375, 16
      %v587 = vrot.slane %v585, 1
      %v588 = vsel %vm376, %v583, %v587
      %v589 = vshrl.u32 %v375, 16
      %v591 = vor.u32 %v589, %v587
      %v600 = vunpack.c.l.b16 %v235
      %v601 = vunpack.c.l.b16 %v236
      %v602 = vunpack.c.l.b16 %v237
      %v603 = vunpack.c.l.b16 %v238
      %v604 = vunpack.c.l.b16 %v239
      %v605 = vunpack.c.l.b16 %v240
      %v606 = vunpack.c.l.b16 %v241
      %v607 = vunpack.c.l.b16 %v242
      %v608 = vpack.c.b16 %v601, %v600
      %v609 = vpack.c.b16 %v603, %v602
      %v610 = vpack.c.b16 %v605, %v604
      %v611 = vpack.c.b16 %v607, %v606
      %vm616 = vcmask 523264
      %v618 = vsel %vm616, %v388, 0
      %v621 = vsel %vm616, %v396, 0
      %v624 = vsel %vm616, %v404, 0
      %v627 = vsel %vm616, %v412, 0
      %v630 = vsel %vm616, %v420, 0
      %v633 = vsel %vm616, %v428, 0
      %v636 = vsel %vm616, %v436, 0
      %v639 = vsel %vm616, %v444, 0
      %v642 = vsel %vm616, %v452, 0
      %v645 = vsel %vm616, %v460, 0
      %v648 = vsel %vm616, %v468, 0
      %v651 = vsel %vm616, %v476, 0
      %v654 = vsel %vm616, %v484, 0
      %v657 = vsel %vm616, %v492, 0
      %v660 = vsel %vm616, %v500, 0
      %v663 = vsel %vm616, %v508, 0
      %v666 = vsel %vm616, %v516, 0
      %v669 = vsel %vm616, %v524, 0
      %v672 = vsel %vm616, %v532, 0
      %v675 = vsel %vm616, %v540, 0
      %v678 = vsel %vm616, %v548, 0
      %v681 = vsel %vm616, %v556, 0
      %v684 = vsel %vm616, %v564, 0
      %v687 = vsel %vm616, %v572, 0
      %v690 = vsel %vm616, %v580, 0
      %v693 = vsel %vm616, %v588, 0
      %v696 = vsel %vm616, %v591, 0
      %698 = vmatprep.subr.bf16.mxu0 0
      %699 = vmatpush1.bf16.msra.mxu0 0
      %700 = vmatprep.subr.bf16.mxu0 0
      %701 = vmatpush1.bf16.msra.mxu0 0
      %702 = vmatprep.subr.bf16.mxu0 0
      %703 = vmatpush1.bf16.msra.mxu0 0
      %704 = vmatprep.subr.bf16.mxu0 0
      %705 = vmatpush1.bf16.msra.mxu0 0
      %706 = vmatprep.subr.bf16.mxu0 0
      %707 = vmatpush1.bf16.msra.mxu0 %v611
      %708 = vmatprep.subr.bf16.mxu0 0
      %709 = vmatpush1.bf16.msra.mxu0 %v610
      %710 = vmatprep.subr.bf16.mxu0 0
      %711 = vmatpush1.bf16.msra.mxu0 %v609
      %712 = vmatprep.subr.bf16.mxu0 0
      %713 = vmatpush1.bf16.msra.mxu0 %v608
      %714 = vmatprep.subr.bf16.mxu0 0
      %715 = vmatpush2.bf16.msra.mxu0 0
      %716 = vmatprep.subr.bf16.mxu0 0
      %717 = vmatpush2.bf16.msra.mxu0 0
      %718 = vmatprep.subr.bf16.mxu0 0
      %719 = vmatpush2.bf16.msra.mxu0 0
      %720 = vmatprep.subr.bf16.mxu0 0
      %721 = vmatpush2.bf16.msra.mxu0 0
      %722 = vmatprep.subr.bf16.mxu0 0
      %723 = vmatpush2.bf16.msra.mxu0 0
      %724 = vmatprep.subr.bf16.mxu0 0
      %725 = vmatpush2.bf16.msra.mxu0 0
      %726 = vmatprep.subr.bf16.mxu0 0
      %727 = vmatpush2.bf16.msra.mxu0 0
      %728 = vmatprep.subr.bf16.mxu0 0
      %729 = vmatpush2.bf16.msra.mxu0 0
      %730 = vmatprep.mubr.bf16.mxu0 0
      %731 = vmatmul.mubr.bf16.gmra.mxu0 %v618
      %v732 = vpop.f32.mrf.mxu0
      %v733 = vadd.f32 0.0, %v732
      %v734 = vpop.f32.mrf.mxu0
      %v735 = vpop.f32.mrf.mxu0
      %v736 = vadd.f32 0.0, %v735
      %v737 = vpop.f32.mrf.mxu0
      %738 = vmatprep.mubr.bf16.mxu0 0
      %739 = vmatmul.mubr.bf16.gmra.mxu0 %v621
      %v740 = vpop.f32.mrf.mxu0
      %v741 = vadd.f32 0.0, %v740
      %v742 = vpop.f32.mrf.mxu0
      %v743 = vpop.f32.mrf.mxu0
      %v744 = vadd.f32 0.0, %v743
      %v745 = vpop.f32.mrf.mxu0
      %746 = vmatprep.mubr.bf16.mxu0 0
      %747 = vmatmul.mubr.bf16.gmra.mxu0 %v624
      %v748 = vpop.f32.mrf.mxu0
      %v749 = vadd.f32 0.0, %v748
      %v750 = vpop.f32.mrf.mxu0
      %v751 = vpop.f32.mrf.mxu0
      %v752 = vadd.f32 0.0, %v751
      %v753 = vpop.f32.mrf.mxu0
      %754 = vmatprep.mubr.bf16.mxu0 0
      %755 = vmatmul.mubr.bf16.gmra.mxu0 %v627
      %v756 = vpop.f32.mrf.mxu0
      %v757 = vadd.f32 0.0, %v756
      %v758 = vpop.f32.mrf.mxu0
      %v759 = vpop.f32.mrf.mxu0
      %v760 = vadd.f32 0.0, %v759
      %v761 = vpop.f32.mrf.mxu0
      %762 = vmatprep.mubr.bf16.mxu0 0
      %763 = vmatmul.mubr.bf16.gmra.mxu0 %v630
      %v764 = vpop.f32.mrf.mxu0
      %v765 = vadd.f32 0.0, %v764
      %v766 = vpop.f32.mrf.mxu0
      %v767 = vpop.f32.mrf.mxu0
      %v768 = vadd.f32 0.0, %v767
      %v769 = vpop.f32.mrf.mxu0
      %770 = vmatprep.mubr.bf16.mxu0 0
      %771 = vmatmul.mubr.bf16.gmra.mxu0 %v633
      %v772 = vpop.f32.mrf.mxu0
      %v773 = vadd.f32 0.0, %v772
      %v774 = vpop.f32.mrf.mxu0
      %v775 = vpop.f32.mrf.mxu0
      %v776 = vadd.f32 0.0, %v775
      %v777 = vpop.f32.mrf.mxu0
      %778 = vmatprep.mubr.bf16.mxu0 0
      %779 = vmatmul.mubr.bf16.gmra.mxu0 %v636
      %v780 = vpop.f32.mrf.mxu0
      %v781 = vadd.f32 0.0, %v780
      %v782 = vpop.f32.mrf.mxu0
      %v783 = vpop.f32.mrf.mxu0
      %v784 = vadd.f32 0.0, %v783
      %v785 = vpop.f32.mrf.mxu0
      %786 = vmatprep.mubr.bf16.mxu0 0
      %787 = vmatmul.mubr.bf16.gmra.mxu0 %v639
      %v788 = vpop.f32.mrf.mxu0
      %v789 = vadd.f32 0.0, %v788
      %v790 = vpop.f32.mrf.mxu0
      %v791 = vpop.f32.mrf.mxu0
      %v792 = vadd.f32 0.0, %v791
      %v793 = vpop.f32.mrf.mxu0
      %794 = vmatprep.mubr.bf16.mxu0 0
      %795 = vmatmul.mubr.bf16.gmra.mxu0 %v642
      %v796 = vpop.f32.mrf.mxu0
      %v797 = vadd.f32 0.0, %v796
      %v798 = vpop.f32.mrf.mxu0
      %v799 = vpop.f32.mrf.mxu0
      %v800 = vadd.f32 0.0, %v799
      %v801 = vpop.f32.mrf.mxu0
      %802 = vmatprep.mubr.bf16.mxu0 0
      %803 = vmatmul.mubr.bf16.gmra.mxu0 %v645
      %v804 = vpop.f32.mrf.mxu0
      %v805 = vadd.f32 0.0, %v804
      %v806 = vpop.f32.mrf.mxu0
      %v807 = vpop.f32.mrf.mxu0
      %v808 = vadd.f32 0.0, %v807
      %v809 = vpop.f32.mrf.mxu0
      %810 = vmatprep.mubr.bf16.mxu0 0
      %811 = vmatmul.mubr.bf16.gmra.mxu0 %v648
      %v812 = vpop.f32.mrf.mxu0
      %v813 = vadd.f32 0.0, %v812
      %v814 = vpop.f32.mrf.mxu0
      %v815 = vpop.f32.mrf.mxu0
      %v816 = vadd.f32 0.0, %v815
      %v817 = vpop.f32.mrf.mxu0
      %818 = vmatprep.mubr.bf16.mxu0 0
      %819 = vmatmul.mubr.bf16.gmra.mxu0 %v651
      %v820 = vpop.f32.mrf.mxu0
      %v821 = vadd.f32 0.0, %v820
      %v822 = vpop.f32.mrf.mxu0
      %v823 = vpop.f32.mrf.mxu0
      %v824 = vadd.f32 0.0, %v823
      %v825 = vpop.f32.mrf.mxu0
      %826 = vmatprep.mubr.bf16.mxu0 0
      %827 = vmatmul.mubr.bf16.gmra.mxu0 %v654
      %v828 = vpop.f32.mrf.mxu0
      %v829 = vadd.f32 0.0, %v828
      %v830 = vpop.f32.mrf.mxu0
      %v831 = vpop.f32.mrf.mxu0
      %v832 = vadd.f32 0.0, %v831
      %v833 = vpop.f32.mrf.mxu0
      %834 = vmatprep.mubr.bf16.mxu0 0
      %835 = vmatmul.mubr.bf16.gmra.mxu0 %v657
      %v836 = vpop.f32.mrf.mxu0
      %v837 = vadd.f32 0.0, %v836
      %v838 = vpop.f32.mrf.mxu0
      %v839 = vpop.f32.mrf.mxu0
      %v840 = vadd.f32 0.0, %v839
      %v841 = vpop.f32.mrf.mxu0
      %842 = vmatprep.mubr.bf16.mxu0 0
      %843 = vmatmul.mubr.bf16.gmra.mxu0 %v660
      %v844 = vpop.f32.mrf.mxu0
      %v845 = vadd.f32 0.0, %v844
      %v846 = vpop.f32.mrf.mxu0
      %v847 = vpop.f32.mrf.mxu0
      %v848 = vadd.f32 0.0, %v847
      %v849 = vpop.f32.mrf.mxu0
      %850 = vmatprep.mubr.bf16.mxu0 0
      %851 = vmatmul.mubr.bf16.gmra.mxu0 %v663
      %v852 = vpop.f32.mrf.mxu0
      %v853 = vadd.f32 0.0, %v852
      %v854 = vpop.f32.mrf.mxu0
      %v855 = vpop.f32.mrf.mxu0
      %v856 = vadd.f32 0.0, %v855
      %v857 = vpop.f32.mrf.mxu0
      %858 = vmatprep.mubr.bf16.mxu0 0
      %859 = vmatmul.mubr.bf16.gmra.mxu0 %v666
      %v860 = vpop.f32.mrf.mxu0
      %v861 = vadd.f32 0.0, %v860
      %v862 = vpop.f32.mrf.mxu0
      %v863 = vpop.f32.mrf.mxu0
      %v864 = vadd.f32 0.0, %v863
      %v865 = vpop.f32.mrf.mxu0
      %866 = vmatprep.mubr.bf16.mxu0 0
      %867 = vmatmul.mubr.bf16.gmra.mxu0 %v669
      %v868 = vpop.f32.mrf.mxu0
      %v869 = vadd.f32 0.0, %v868
      %v870 = vpop.f32.mrf.mxu0
      %v871 = vpop.f32.mrf.mxu0
      %v872 = vadd.f32 0.0, %v871
      %v873 = vpop.f32.mrf.mxu0
      %874 = vmatprep.mubr.bf16.mxu0 0
      %875 = vmatmul.mubr.bf16.gmra.mxu0 %v672
      %v876 = vpop.f32.mrf.mxu0
      %v877 = vadd.f32 0.0, %v876
      %v878 = vpop.f32.mrf.mxu0
      %v879 = vpop.f32.mrf.mxu0
      %v880 = vadd.f32 0.0, %v879
      %v881 = vpop.f32.mrf.mxu0
      %882 = vmatprep.mubr.bf16.mxu0 0
      %883 = vmatmul.mubr.bf16.gmra.mxu0 %v675
      %v884 = vpop.f32.mrf.mxu0
      %v885 = vadd.f32 0.0, %v884
      %v886 = vpop.f32.mrf.mxu0
      %v887 = vpop.f32.mrf.mxu0
      %v888 = vadd.f32 0.0, %v887
      %v889 = vpop.f32.mrf.mxu0
      %890 = vmatprep.mubr.bf16.mxu0 0
      %891 = vmatmul.mubr.bf16.gmra.mxu0 %v678
      %v892 = vpop.f32.mrf.mxu0
      %v893 = vadd.f32 0.0, %v892
      %v894 = vpop.f32.mrf.mxu0
      %v895 = vpop.f32.mrf.mxu0
      %v896 = vadd.f32 0.0, %v895
      %v897 = vpop.f32.mrf.mxu0
      %898 = vmatprep.mubr.bf16.mxu0 0
      %899 = vmatmul.mubr.bf16.gmra.mxu0 %v681
      %v900 = vpop.f32.mrf.mxu0
      %v901 = vadd.f32 0.0, %v900
      %v902 = vpop.f32.mrf.mxu0
      %v903 = vpop.f32.mrf.mxu0
      %v904 = vadd.f32 0.0, %v903
      %v905 = vpop.f32.mrf.mxu0
      %906 = vmatprep.mubr.bf16.mxu0 0
      %907 = vmatmul.mubr.bf16.gmra.mxu0 %v684
      %v908 = vpop.f32.mrf.mxu0
      %v909 = vadd.f32 0.0, %v908
      %v910 = vpop.f32.mrf.mxu0
      %v911 = vpop.f32.mrf.mxu0
      %v912 = vadd.f32 0.0, %v911
      %v913 = vpop.f32.mrf.mxu0
      %914 = vmatprep.mubr.bf16.mxu0 0
      %915 = vmatmul.mubr.bf16.gmra.mxu0 %v687
      %v916 = vpop.f32.mrf.mxu0
      %v917 = vadd.f32 0.0, %v916
      %v918 = vpop.f32.mrf.mxu0
      %v919 = vpop.f32.mrf.mxu0
      %v920 = vadd.f32 0.0, %v919
      %v921 = vpop.f32.mrf.mxu0
      %922 = vmatprep.mubr.bf16.mxu0 0
      %923 = vmatmul.mubr.bf16.gmra.mxu0 %v690
      %v924 = vpop.f32.mrf.mxu0
      %v925 = vadd.f32 0.0, %v924
      %v926 = vpop.f32.mrf.mxu0
      %v927 = vpop.f32.mrf.mxu0
      %v928 = vadd.f32 0.0, %v927
      %v929 = vpop.f32.mrf.mxu0
      %930 = vmatprep.mubr.bf16.mxu0 0
      %931 = vmatmul.mubr.bf16.gmra.mxu0 %v693
      %v932 = vpop.f32.mrf.mxu0
      %v933 = vadd.f32 0.0, %v932
      %v934 = vpop.f32.mrf.mxu0
      %v935 = vpop.f32.mrf.mxu0
      %v936 = vadd.f32 0.0, %v935
      %v937 = vpop.f32.mrf.mxu0
      %938 = vmatprep.mubr.bf16.mxu0 0
      %939 = vmatmul.mubr.bf16.gmra.mxu0 %v696
      %v940 = vpop.f32.mrf.mxu0
      %v941 = vadd.f32 0.0, %v940
      %v942 = vpop.f32.mrf.mxu0
      %v943 = vpop.f32.mrf.mxu0
      %v944 = vpop.f32.mrf.mxu0
      %945 = vdwg.mxu0
      %v947 = vunpack.c.l.b16 %v224
      %v948 = vpack.c.b16 %v947, %v947
      %v957 = vunpack.c.l.b16 %v225
      %v958 = vunpack.c.l.b16 %v226
      %v959 = vunpack.c.l.b16 %v227
      %v960 = vunpack.c.l.b16 %v228
      %v961 = vunpack.c.l.b16 %v229
      %v962 = vunpack.c.l.b16 %v230
      %v963 = vunpack.c.l.b16 %v231
      %v964 = vunpack.c.l.b16 %v232
      %v965 = vpack.c.b16 %v958, %v957
      %v966 = vpack.c.b16 %v960, %v959
      %v967 = vpack.c.b16 %v962, %v961
      %v968 = vpack.c.b16 %v964, %v963
      %v973 = vsel %vm616, %v349, 0
      %v975 = vsel %vm616, %v350, 0
      %v977 = vsel %vm616, %v351, 0
      %v979 = vsel %vm616, %v352, 0
      %v981 = vsel %vm616, %v353, 0
      %v983 = vsel %vm616, %v354, 0
      %v985 = vsel %vm616, %v355, 0
      %v987 = vsel %vm616, %v356, 0
      %v989 = vsel %vm616, %v357, 0
      %v991 = vsel %vm616, %v358, 0
      %v993 = vsel %vm616, %v359, 0
      %v995 = vsel %vm616, %v360, 0
      %v997 = vsel %vm616, %v361, 0
      %v999 = vsel %vm616, %v362, 0
      %v1001 = vsel %vm616, %v363, 0
      %v1003 = vsel %vm616, %v364, 0
      %v1005 = vsel %vm616, %v365, 0
      %v1007 = vsel %vm616, %v366, 0
      %v1009 = vsel %vm616, %v367, 0
      %v1011 = vsel %vm616, %v368, 0
      %v1013 = vsel %vm616, %v369, 0
      %v1015 = vsel %vm616, %v370, 0
      %v1017 = vsel %vm616, %v371, 0
      %v1019 = vsel %vm616, %v372, 0
      %v1021 = vsel %vm616, %v373, 0
      %v1023 = vsel %vm616, %v374, 0
      %v1026 = vsel %vm616, %v948, 0
      %1028 = vmatprep.subr.bf16.mxu0 0
      %1029 = vmatpush1.bf16.msra.mxu0 0
      %1030 = vmatprep.subr.bf16.mxu0 0
      %1031 = vmatpush1.bf16.msra.mxu0 0
      %1032 = vmatprep.subr.bf16.mxu0 0
      %1033 = vmatpush1.bf16.msra.mxu0 0
      %1034 = vmatprep.subr.bf16.mxu0 0
      %1035 = vmatpush1.bf16.msra.mxu0 0
      %1036 = vmatprep.subr.bf16.mxu0 0
      %1037 = vmatpush1.bf16.msra.mxu0 %v968
      %1038 = vmatprep.subr.bf16.mxu0 0
      %1039 = vmatpush1.bf16.msra.mxu0 %v967
      %1040 = vmatprep.subr.bf16.mxu0 0
      %1041 = vmatpush1.bf16.msra.mxu0 %v966
      %1042 = vmatprep.subr.bf16.mxu0 0
      %1043 = vmatpush1.bf16.msra.mxu0 %v965
      %1044 = vmatprep.subr.bf16.mxu0 0
      %1045 = vmatpush2.bf16.msra.mxu0 0
      %1046 = vmatprep.subr.bf16.mxu0 0
      %1047 = vmatpush2.bf16.msra.mxu0 0
      %1048 = vmatprep.subr.bf16.mxu0 0
      %1049 = vmatpush2.bf16.msra.mxu0 0
      %1050 = vmatprep.subr.bf16.mxu0 0
      %1051 = vmatpush2.bf16.msra.mxu0 0
      %1052 = vmatprep.subr.bf16.mxu0 0
      %1053 = vmatpush2.bf16.msra.mxu0 0
      %1054 = vmatprep.subr.bf16.mxu0 0
      %1055 = vmatpush2.bf16.msra.mxu0 0
      %1056 = vmatprep.subr.bf16.mxu0 0
      %1057 = vmatpush2.bf16.msra.mxu0 0
      %1058 = vmatprep.subr.bf16.mxu0 0
      %1059 = vmatpush2.bf16.msra.mxu0 0
      %1060 = vmatprep.mubr.bf16.mxu0 0
      %1061 = vmatmul.mubr.bf16.gmra.mxu0 %v973
      %v1062 = vpop.f32.mrf.mxu0
      %v1063 = vadd.f32 %v733, %v1062
      %v1064 = vpop.f32.mrf.mxu0
      %v1065 = vpop.f32.mrf.mxu0
      %v1066 = vadd.f32 %v736, %v1065
      %v1067 = vpop.f32.mrf.mxu0
      %1068 = vmatprep.mubr.bf16.mxu0 0
      %1069 = vmatmul.mubr.bf16.gmra.mxu0 %v975
      %v1070 = vpop.f32.mrf.mxu0
      %v1071 = vadd.f32 %v741, %v1070
      %v1072 = vpop.f32.mrf.mxu0
      %v1073 = vpop.f32.mrf.mxu0
      %v1074 = vadd.f32 %v744, %v1073
      %v1075 = vpop.f32.mrf.mxu0
      %1076 = vmatprep.mubr.bf16.mxu0 0
      %1077 = vmatmul.mubr.bf16.gmra.mxu0 %v977
      %v1078 = vpop.f32.mrf.mxu0
      %v1079 = vadd.f32 %v749, %v1078
      %v1080 = vpop.f32.mrf.mxu0
      %v1081 = vpop.f32.mrf.mxu0
      %v1082 = vadd.f32 %v752, %v1081
      %v1083 = vpop.f32.mrf.mxu0
      %1084 = vmatprep.mubr.bf16.mxu0 0
      %1085 = vmatmul.mubr.bf16.gmra.mxu0 %v979
      %v1086 = vpop.f32.mrf.mxu0
      %v1087 = vadd.f32 %v757, %v1086
      %v1088 = vpop.f32.mrf.mxu0
      %v1089 = vpop.f32.mrf.mxu0
      %v1090 = vadd.f32 %v760, %v1089
      %v1091 = vpop.f32.mrf.mxu0
      %1092 = vmatprep.mubr.bf16.mxu0 0
      %1093 = vmatmul.mubr.bf16.gmra.mxu0 %v981
      %v1094 = vpop.f32.mrf.mxu0
      %v1095 = vadd.f32 %v765, %v1094
      %v1096 = vpop.f32.mrf.mxu0
      %v1097 = vpop.f32.mrf.mxu0
      %v1098 = vadd.f32 %v768, %v1097
      %v1099 = vpop.f32.mrf.mxu0
      %1100 = vmatprep.mubr.bf16.mxu0 0
      %1101 = vmatmul.mubr.bf16.gmra.mxu0 %v983
      %v1102 = vpop.f32.mrf.mxu0
      %v1103 = vadd.f32 %v773, %v1102
      %v1104 = vpop.f32.mrf.mxu0
      %v1105 = vpop.f32.mrf.mxu0
      %v1106 = vadd.f32 %v776, %v1105
      %v1107 = vpop.f32.mrf.mxu0
      %1108 = vmatprep.mubr.bf16.mxu0 0
      %1109 = vmatmul.mubr.bf16.gmra.mxu0 %v985
      %v1110 = vpop.f32.mrf.mxu0
      %v1111 = vadd.f32 %v781, %v1110
      %v1112 = vpop.f32.mrf.mxu0
      %v1113 = vpop.f32.mrf.mxu0
      %v1114 = vadd.f32 %v784, %v1113
      %v1115 = vpop.f32.mrf.mxu0
      %1116 = vmatprep.mubr.bf16.mxu0 0
      %1117 = vmatmul.mubr.bf16.gmra.mxu0 %v987
      %v1118 = vpop.f32.mrf.mxu0
      %v1119 = vadd.f32 %v789, %v1118
      %v1120 = vpop.f32.mrf.mxu0
      %v1121 = vpop.f32.mrf.mxu0
      %v1122 = vadd.f32 %v792, %v1121
      %v1123 = vpop.f32.mrf.mxu0
      %1124 = vmatprep.mubr.bf16.mxu0 0
      %1125 = vmatmul.mubr.bf16.gmra.mxu0 %v989
      %v1126 = vpop.f32.mrf.mxu0
      %v1127 = vadd.f32 %v797, %v1126
      %v1128 = vpop.f32.mrf.mxu0
      %v1129 = vpop.f32.mrf.mxu0
      %v1130 = vadd.f32 %v800, %v1129
      %v1131 = vpop.f32.mrf.mxu0
      %1132 = vmatprep.mubr.bf16.mxu0 0
      %1133 = vmatmul.mubr.bf16.gmra.mxu0 %v991
      %v1134 = vpop.f32.mrf.mxu0
      %v1135 = vadd.f32 %v805, %v1134
      %v1136 = vpop.f32.mrf.mxu0
      %v1137 = vpop.f32.mrf.mxu0
      %v1138 = vadd.f32 %v808, %v1137
      %v1139 = vpop.f32.mrf.mxu0
      %1140 = vmatprep.mubr.bf16.mxu0 0
      %1141 = vmatmul.mubr.bf16.gmra.mxu0 %v993
      %v1142 = vpop.f32.mrf.mxu0
      %v1143 = vadd.f32 %v813, %v1142
      %v1144 = vpop.f32.mrf.mxu0
      %v1145 = vpop.f32.mrf.mxu0
      %v1146 = vadd.f32 %v816, %v1145
      %v1147 = vpop.f32.mrf.mxu0
      %1148 = vmatprep.mubr.bf16.mxu0 0
      %1149 = vmatmul.mubr.bf16.gmra.mxu0 %v995
      %v1150 = vpop.f32.mrf.mxu0
      %v1151 = vadd.f32 %v821, %v1150
      %v1152 = vpop.f32.mrf.mxu0
      %v1153 = vpop.f32.mrf.mxu0
      %v1154 = vadd.f32 %v824, %v1153
      %v1155 = vpop.f32.mrf.mxu0
      %1156 = vmatprep.mubr.bf16.mxu0 0
      %1157 = vmatmul.mubr.bf16.gmra.mxu0 %v997
      %v1158 = vpop.f32.mrf.mxu0
      %v1159 = vadd.f32 %v829, %v1158
      %v1160 = vpop.f32.mrf.mxu0
      %v1161 = vpop.f32.mrf.mxu0
      %v1162 = vadd.f32 %v832, %v1161
      %v1163 = vpop.f32.mrf.mxu0
      %1164 = vmatprep.mubr.bf16.mxu0 0
      %1165 = vmatmul.mubr.bf16.gmra.mxu0 %v999
      %v1166 = vpop.f32.mrf.mxu0
      %v1167 = vadd.f32 %v837, %v1166
      %v1168 = vpop.f32.mrf.mxu0
      %v1169 = vpop.f32.mrf.mxu0
      %v1170 = vadd.f32 %v840, %v1169
      %v1171 = vpop.f32.mrf.mxu0
      %1172 = vmatprep.mubr.bf16.mxu0 0
      %1173 = vmatmul.mubr.bf16.gmra.mxu0 %v1001
      %v1174 = vpop.f32.mrf.mxu0
      %v1175 = vadd.f32 %v845, %v1174
      %v1176 = vpop.f32.mrf.mxu0
      %v1177 = vpop.f32.mrf.mxu0
      %v1178 = vadd.f32 %v848, %v1177
      %v1179 = vpop.f32.mrf.mxu0
      %1180 = vmatprep.mubr.bf16.mxu0 0
      %1181 = vmatmul.mubr.bf16.gmra.mxu0 %v1003
      %v1182 = vpop.f32.mrf.mxu0
      %v1183 = vadd.f32 %v853, %v1182
      %v1184 = vpop.f32.mrf.mxu0
      %v1185 = vpop.f32.mrf.mxu0
      %v1186 = vadd.f32 %v856, %v1185
      %v1187 = vpop.f32.mrf.mxu0
      %1188 = vmatprep.mubr.bf16.mxu0 0
      %1189 = vmatmul.mubr.bf16.gmra.mxu0 %v1005
      %v1190 = vpop.f32.mrf.mxu0
      %v1191 = vadd.f32 %v861, %v1190
      %v1192 = vpop.f32.mrf.mxu0
      %v1193 = vpop.f32.mrf.mxu0
      %v1194 = vadd.f32 %v864, %v1193
      %v1195 = vpop.f32.mrf.mxu0
      %1196 = vmatprep.mubr.bf16.mxu0 0
      %1197 = vmatmul.mubr.bf16.gmra.mxu0 %v1007
      %v1198 = vpop.f32.mrf.mxu0
      %v1199 = vadd.f32 %v869, %v1198
      %v1200 = vpop.f32.mrf.mxu0
      %v1201 = vpop.f32.mrf.mxu0
      %v1202 = vadd.f32 %v872, %v1201
      %v1203 = vpop.f32.mrf.mxu0
      %1204 = vmatprep.mubr.bf16.mxu0 0
      %1205 = vmatmul.mubr.bf16.gmra.mxu0 %v1009
      %v1206 = vpop.f32.mrf.mxu0
      %v1207 = vadd.f32 %v877, %v1206
      %v1208 = vpop.f32.mrf.mxu0
      %v1209 = vpop.f32.mrf.mxu0
      %v1210 = vadd.f32 %v880, %v1209
      %v1211 = vpop.f32.mrf.mxu0
      %1212 = vmatprep.mubr.bf16.mxu0 0
      %1213 = vmatmul.mubr.bf16.gmra.mxu0 %v1011
      %v1214 = vpop.f32.mrf.mxu0
      %v1215 = vadd.f32 %v885, %v1214
      %v1216 = vpop.f32.mrf.mxu0
      %v1217 = vpop.f32.mrf.mxu0
      %v1218 = vadd.f32 %v888, %v1217
      %v1219 = vpop.f32.mrf.mxu0
      %1220 = vmatprep.mubr.bf16.mxu0 0
      %1221 = vmatmul.mubr.bf16.gmra.mxu0 %v1013
      %v1222 = vpop.f32.mrf.mxu0
      %v1223 = vadd.f32 %v893, %v1222
      %v1224 = vpop.f32.mrf.mxu0
      %v1225 = vpop.f32.mrf.mxu0
      %v1226 = vadd.f32 %v896, %v1225
      %v1227 = vpop.f32.mrf.mxu0
      %1228 = vmatprep.mubr.bf16.mxu0 0
      %1229 = vmatmul.mubr.bf16.gmra.mxu0 %v1015
      %v1230 = vpop.f32.mrf.mxu0
      %v1231 = vadd.f32 %v901, %v1230
      %v1232 = vpop.f32.mrf.mxu0
      %v1233 = vpop.f32.mrf.mxu0
      %v1234 = vadd.f32 %v904, %v1233
      %v1235 = vpop.f32.mrf.mxu0
      %1236 = vmatprep.mubr.bf16.mxu0 0
      %1237 = vmatmul.mubr.bf16.gmra.mxu0 %v1017
      %v1238 = vpop.f32.mrf.mxu0
      %v1239 = vadd.f32 %v909, %v1238
      %v1240 = vpop.f32.mrf.mxu0
      %v1241 = vpop.f32.mrf.mxu0
      %v1242 = vadd.f32 %v912, %v1241
      %v1243 = vpop.f32.mrf.mxu0
      %1244 = vmatprep.mubr.bf16.mxu0 0
      %1245 = vmatmul.mubr.bf16.gmra.mxu0 %v1019
      %v1246 = vpop.f32.mrf.mxu0
      %v1247 = vadd.f32 %v917, %v1246
      %v1248 = vpop.f32.mrf.mxu0
      %v1249 = vpop.f32.mrf.mxu0
      %v1250 = vadd.f32 %v920, %v1249
      %v1251 = vpop.f32.mrf.mxu0
      %1252 = vmatprep.mubr.bf16.mxu0 0
      %1253 = vmatmul.mubr.bf16.gmra.mxu0 %v1021
      %v1254 = vpop.f32.mrf.mxu0
      %v1255 = vadd.f32 %v925, %v1254
      %v1256 = vpop.f32.mrf.mxu0
      %v1257 = vpop.f32.mrf.mxu0
      %v1258 = vadd.f32 %v928, %v1257
      %v1259 = vpop.f32.mrf.mxu0
      %1260 = vmatprep.mubr.bf16.mxu0 0
      %1261 = vmatmul.mubr.bf16.gmra.mxu0 %v1023
      %v1262 = vpop.f32.mrf.mxu0
      %v1263 = vadd.f32 %v933, %v1262
      %v1264 = vpop.f32.mrf.mxu0
      %v1265 = vpop.f32.mrf.mxu0
      %v1266 = vadd.f32 %v936, %v1265
      %v1267 = vpop.f32.mrf.mxu0
      %1268 = vmatprep.mubr.bf16.mxu0 0
      %1269 = vmatmul.mubr.bf16.gmra.mxu0 %v1026
      %v1270 = vpop.f32.mrf.mxu0
      %v1271 = vadd.f32 %v941, %v1270
      %v1272 = vpop.f32.mrf.mxu0
      %v1273 = vpop.f32.mrf.mxu0
      %v1274 = vpop.f32.mrf.mxu0
      %1275 = vdwg.mxu0
      %v1276 = vld [vmem:[%s165 + $0x8] sm:$0xc]
      %v1277 = vld [vmem:[%s165 + $0xc] sm:$0xf]
      %v1278 = vld [vmem:[%s165 + $0x10] sm:$0xf]
      %v1279 = vld [vmem:[%s165 + $0x14] sm:$0xf]
      %v1280 = vld [vmem:[%s165 + $0x18] sm:$0xf]
      %v1281 = vld [vmem:[%s165 + $0x1c] sm:$0xf]
      %v1282 = vld [vmem:[%s165 + $0x20] sm:$0xf]
      %v1283 = vld [vmem:[%s165 + $0x24] sm:$0xf]
      %v1284 = vld [vmem:[%s165 + $0x28] sm:$0xf]
      %v1285 = vld [vmem:[%s165 + $0x2c] sm:$0xf]
      %v1286 = vld [vmem:[%s165 + $0x30] sm:$0xf]
      %v1287 = vld [vmem:[%s165 + $0x34] sm:$0xf]
      %v1288 = vld [vmem:[%s165 + $0x38] sm:$0xf]
      %v1289 = vld [vmem:[%s165 + $0x3c] sm:$0xf]
      %v1290 = vld [vmem:[%s165 + $0x40] sm:$0xf]
      %v1291 = vld [vmem:[%s165 + $0x44] sm:$0xf]
      %v1292 = vld [vmem:[%s165 + $0x48] sm:$0xf]
      %v1293 = vld [vmem:[%s165 + $0x4c] sm:$0xf]
      %v1294 = vld [vmem:[%s165 + $0x50] sm:$0xf]
      %v1295 = vld [vmem:[%s165 + $0x54] sm:$0xf]
      %v1296 = vld [vmem:[%s165 + $0x58] sm:$0xf]
      %v1297 = vld [vmem:[%s165 + $0x5c] sm:$0xf]
      %v1298 = vld [vmem:[%s165 + $0x60] sm:$0xf]
      %v1299 = vld [vmem:[%s165 + $0x64] sm:$0xf]
      %v1300 = vld [vmem:[%s165 + $0x68] sm:$0xf]
      %v1301 = vld [vmem:[%s165 + $0x6c] sm:$0xf]
      %v1302 = vld [vmem:[%s165 + $0x70] sm:$0xf]
      %v1303 = vld [vmem:[%s165 + $0x74] sm:$0xf]
      %v1304 = vld [vmem:[%s165 + $0x78] sm:$0xf]
      %v1305 = vld [vmem:[%s165 + $0x7c] sm:$0xf]
      %v1306 = vld [vmem:[%s165 + $0x80] sm:$0xf]
      %v1307 = vld [vmem:[%s165 + $0x84] sm:$0xf]
      %v1308 = vld [vmem:[%s165 + $0x88] sm:$0xf]
      %v1309 = vld [vmem:[%s165 + $0x8c] sm:$0xf]
      %v1310 = vld [vmem:[%s165 + $0x90] sm:$0xf]
      %v1311 = vld [vmem:[%s165 + $0x94] sm:$0xf]
      %v1312 = vld [vmem:[%s165 + $0x98] sm:$0xf]
      %v1313 = vld [vmem:[%s165 + $0x9c] sm:$0xf]
      %v1314 = vld [vmem:[%s165 + $0xa0] sm:$0xf]
      %v1315 = vld [vmem:[%s165 + $0xa4] sm:$0xf]
      %v1316 = vld [vmem:[%s165 + $0xa8] sm:$0xf]
      %v1317 = vld [vmem:[%s165 + $0xac] sm:$0xf]
      %v1318 = vld [vmem:[%s165 + $0xb0] sm:$0xf]
      %v1319 = vld [vmem:[%s165 + $0xb4] sm:$0xf]
      %v1320 = vld [vmem:[%s165 + $0xb8] sm:$0xf]
      %v1321 = vld [vmem:[%s165 + $0xbc] sm:$0xf]
      %v1322 = vld [vmem:[%s165 + $0xc0] sm:$0xf]
      %v1323 = vld [vmem:[%s165 + $0xc4] sm:$0xf]
      %v1324 = vld [vmem:[%s165 + $0xc8] sm:$0xf]
      %v1325 = vld [vmem:[%s165 + $0xcc] sm:$0xf]
      %v1326 = vld [vmem:[%s165 + $0xd0] sm:$0xf]
      %v1327 = vld [vmem:[%s165 + $0xd4] sm:$0xf]
      %v1328 = vld [vmem:[%s165 + $0xd8] sm:$0xf]
      %v1329 = vld [vmem:[%s165 + $0xdc] sm:$0x1]
      %s1330 = scalar_lea.vmem %s1, 64
      %v1331 = vld [vmem:[%s1330] sm:$0xf]
      %v1332 = vld [vmem:[%s1330 + $0x4] sm:$0xf]
      %v1333 = vld [vmem:[%s1330 + $0x8] sm:$0xf]
      %v1334 = vld [vmem:[%s1330 + $0xc] sm:$0xf]
      %v1335 = vld [vmem:[%s1330 + $0x10] sm:$0xf]
      %v1336 = vld [vmem:[%s1330 + $0x14] sm:$0xf]
      %v1337 = vld [vmem:[%s1330 + $0x18] sm:$0xf]
      %v1338 = vld [vmem:[%s1330 + $0x1c] sm:$0xf]
      %v1393 = vunpack.c.l.b16 %v1276
      %v1394 = vunpack.c.l.b16 %v1277
      %v1395 = vunpack.c.l.b16 %v1278
      %v1396 = vunpack.c.l.b16 %v1279
      %v1397 = vunpack.c.l.b16 %v1280
      %v1398 = vunpack.c.l.b16 %v1281
      %v1399 = vunpack.c.l.b16 %v1282
      %v1400 = vunpack.c.l.b16 %v1283
      %v1401 = vunpack.c.l.b16 %v1284
      %v1402 = vunpack.c.l.b16 %v1285
      %v1403 = vunpack.c.l.b16 %v1286
      %v1404 = vunpack.c.l.b16 %v1287
      %v1405 = vunpack.c.l.b16 %v1288
      %v1406 = vunpack.c.l.b16 %v1289
      %v1407 = vunpack.c.l.b16 %v1290
      %v1408 = vunpack.c.l.b16 %v1291
      %v1409 = vunpack.c.l.b16 %v1292
      %v1410 = vunpack.c.l.b16 %v1293
      %v1411 = vunpack.c.l.b16 %v1294
      %v1412 = vunpack.c.l.b16 %v1295
      %v1413 = vunpack.c.l.b16 %v1296
      %v1414 = vunpack.c.l.b16 %v1297
      %v1415 = vunpack.c.l.b16 %v1298
      %v1416 = vunpack.c.l.b16 %v1299
      %v1417 = vunpack.c.l.b16 %v1300
      %v1418 = vunpack.c.l.b16 %v1301
      %v1419 = vunpack.c.l.b16 %v1302
      %v1420 = vunpack.c.l.b16 %v1303
      %v1421 = vunpack.c.l.b16 %v1304
      %v1422 = vunpack.c.l.b16 %v1305
      %v1423 = vunpack.c.l.b16 %v1306
      %v1424 = vunpack.c.l.b16 %v1307
      %v1425 = vunpack.c.l.b16 %v1308
      %v1426 = vunpack.c.l.b16 %v1309
      %v1427 = vunpack.c.l.b16 %v1310
      %v1428 = vunpack.c.l.b16 %v1311
      %v1429 = vunpack.c.l.b16 %v1312
      %v1430 = vunpack.c.l.b16 %v1313
      %v1431 = vunpack.c.l.b16 %v1314
      %v1432 = vunpack.c.l.b16 %v1315
      %v1433 = vunpack.c.l.b16 %v1316
      %v1434 = vunpack.c.l.b16 %v1317
      %v1435 = vunpack.c.l.b16 %v1318
      %v1436 = vunpack.c.l.b16 %v1319
      %v1437 = vunpack.c.l.b16 %v1320
      %v1438 = vunpack.c.l.b16 %v1321
      %v1439 = vunpack.c.l.b16 %v1322
      %v1440 = vunpack.c.l.b16 %v1323
      %v1441 = vunpack.c.l.b16 %v1324
      %v1442 = vunpack.c.l.b16 %v1325
      %v1443 = vunpack.c.l.b16 %v1326
      %v1444 = vunpack.c.l.b16 %v1327
      %v1445 = vunpack.c.l.b16 %v1328
      %v1446 = vunpack.c.l.b16 %v1329
      %v1447 = vpack.c.b16 %v1394, %v1393
      %v1448 = vpack.c.b16 %v1396, %v1395
      %v1449 = vpack.c.b16 %v1398, %v1397
      %v1450 = vpack.c.b16 %v1400, %v1399
      %v1451 = vpack.c.b16 %v1402, %v1401
      %v1452 = vpack.c.b16 %v1404, %v1403
      %v1453 = vpack.c.b16 %v1406, %v1405
      %v1454 = vpack.c.b16 %v1408, %v1407
      %v1455 = vpack.c.b16 %v1410, %v1409
      %v1456 = vpack.c.b16 %v1412, %v1411
      %v1457 = vpack.c.b16 %v1414, %v1413
      %v1458 = vpack.c.b16 %v1416, %v1415
      %v1459 = vpack.c.b16 %v1418, %v1417
      %v1460 = vpack.c.b16 %v1420, %v1419
      %v1461 = vpack.c.b16 %v1422, %v1421
      %v1462 = vpack.c.b16 %v1424, %v1423
      %v1463 = vpack.c.b16 %v1426, %v1425
      %v1464 = vpack.c.b16 %v1428, %v1427
      %v1465 = vpack.c.b16 %v1430, %v1429
      %v1466 = vpack.c.b16 %v1432, %v1431
      %v1467 = vpack.c.b16 %v1434, %v1433
      %v1468 = vpack.c.b16 %v1436, %v1435
      %v1469 = vpack.c.b16 %v1438, %v1437
      %v1470 = vpack.c.b16 %v1440, %v1439
      %v1471 = vpack.c.b16 %v1442, %v1441
      %v1472 = vpack.c.b16 %v1444, %v1443
      %v1473 = vpack.c.b16 %v1446, %v1445
      %vm1474 = vsmask.f32 5376
      %v1476 = vshrl.u32 %v1447, 16
      %v1478 = vrot.slane %v1476, 2
      %v1479 = vshll.u32 %v1447, 16
      %v1481 = vrot.slane %v1479, 3
      %v1482 = vor.u32 %v1478, %v1481
      %v1484 = vshrl.u32 %v1448, 16
      %v1486 = vrot.slane %v1484, 2
      %v1487 = vshll.u32 %v1448, 16
      %v1489 = vrot.slane %v1487, 3
      %v1490 = vor.u32 %v1486, %v1489
      %v1491 = vsel %vm1474, %v1482, %v1490
      %v1493 = vshrl.u32 %v1449, 16
      %v1495 = vrot.slane %v1493, 2
      %v1496 = vshll.u32 %v1449, 16
      %v1498 = vrot.slane %v1496, 3
      %v1499 = vor.u32 %v1495, %v1498
      %v1500 = vsel %vm1474, %v1490, %v1499
      %v1502 = vshrl.u32 %v1450, 16
      %v1504 = vrot.slane %v1502, 2
      %v1505 = vshll.u32 %v1450, 16
      %v1507 = vrot.slane %v1505, 3
      %v1508 = vor.u32 %v1504, %v1507
      %v1509 = vsel %vm1474, %v1499, %v1508
      %v1511 = vshrl.u32 %v1451, 16
      %v1513 = vrot.slane %v1511, 2
      %v1514 = vshll.u32 %v1451, 16
      %v1516 = vrot.slane %v1514, 3
      %v1517 = vor.u32 %v1513, %v1516
      %v1518 = vsel %vm1474, %v1508, %v1517
      %v1520 = vshrl.u32 %v1452, 16
      %v1522 = vrot.slane %v1520, 2
      %v1523 = vshll.u32 %v1452, 16
      %v1525 = vrot.slane %v1523, 3
      %v1526 = vor.u32 %v1522, %v1525
      %v1527 = vsel %vm1474, %v1517, %v1526
      %v1529 = vshrl.u32 %v1453, 16
      %v1531 = vrot.slane %v1529, 2
      %v1532 = vshll.u32 %v1453, 16
      %v1534 = vrot.slane %v1532, 3
      %v1535 = vor.u32 %v1531, %v1534
      %v1536 = vsel %vm1474, %v1526, %v1535
      %v1538 = vshrl.u32 %v1454, 16
      %v1540 = vrot.slane %v1538, 2
      %v1541 = vshll.u32 %v1454, 16
      %v1543 = vrot.slane %v1541, 3
      %v1544 = vor.u32 %v1540, %v1543
      %v1545 = vsel %vm1474, %v1535, %v1544
      %v1547 = vshrl.u32 %v1455, 16
      %v1549 = vrot.slane %v1547, 2
      %v1550 = vshll.u32 %v1455, 16
      %v1552 = vrot.slane %v1550, 3
      %v1553 = vor.u32 %v1549, %v1552
      %v1554 = vsel %vm1474, %v1544, %v1553
      %v1556 = vshrl.u32 %v1456, 16
      %v1558 = vrot.slane %v1556, 2
      %v1559 = vshll.u32 %v1456, 16
      %v1561 = vrot.slane %v1559, 3
      %v1562 = vor.u32 %v1558, %v1561
      %v1563 = vsel %vm1474, %v1553, %v1562
      %v1565 = vshrl.u32 %v1457, 16
      %v1567 = vrot.slane %v1565, 2
      %v1568 = vshll.u32 %v1457, 16
      %v1570 = vrot.slane %v1568, 3
      %v1571 = vor.u32 %v1567, %v1570
      %v1572 = vsel %vm1474, %v1562, %v1571
      %v1574 = vshrl.u32 %v1458, 16
      %v1576 = vrot.slane %v1574, 2
      %v1577 = vshll.u32 %v1458, 16
      %v1579 = vrot.slane %v1577, 3
      %v1580 = vor.u32 %v1576, %v1579
      %v1581 = vsel %vm1474, %v1571, %v1580
      %v1583 = vshrl.u32 %v1459, 16
      %v1585 = vrot.slane %v1583, 2
      %v1586 = vshll.u32 %v1459, 16
      %v1588 = vrot.slane %v1586, 3
      %v1589 = vor.u32 %v1585, %v1588
      %v1590 = vsel %vm1474, %v1580, %v1589
      %v1592 = vshrl.u32 %v1460, 16
      %v1594 = vrot.slane %v1592, 2
      %v1595 = vshll.u32 %v1460, 16
      %v1597 = vrot.slane %v1595, 3
      %v1598 = vor.u32 %v1594, %v1597
      %v1599 = vsel %vm1474, %v1589, %v1598
      %v1601 = vshrl.u32 %v1461, 16
      %v1603 = vrot.slane %v1601, 2
      %v1604 = vshll.u32 %v1461, 16
      %v1606 = vrot.slane %v1604, 3
      %v1607 = vor.u32 %v1603, %v1606
      %v1608 = vsel %vm1474, %v1598, %v1607
      %v1610 = vshrl.u32 %v1462, 16
      %v1612 = vrot.slane %v1610, 2
      %v1613 = vshll.u32 %v1462, 16
      %v1615 = vrot.slane %v1613, 3
      %v1616 = vor.u32 %v1612, %v1615
      %v1617 = vsel %vm1474, %v1607, %v1616
      %v1619 = vshrl.u32 %v1463, 16
      %v1621 = vrot.slane %v1619, 2
      %v1622 = vshll.u32 %v1463, 16
      %v1624 = vrot.slane %v1622, 3
      %v1625 = vor.u32 %v1621, %v1624
      %v1626 = vsel %vm1474, %v1616, %v1625
      %v1628 = vshrl.u32 %v1464, 16
      %v1630 = vrot.slane %v1628, 2
      %v1631 = vshll.u32 %v1464, 16
      %v1633 = vrot.slane %v1631, 3
      %v1634 = vor.u32 %v1630, %v1633
      %v1635 = vsel %vm1474, %v1625, %v1634
      %v1637 = vshrl.u32 %v1465, 16
      %v1639 = vrot.slane %v1637, 2
      %v1640 = vshll.u32 %v1465, 16
      %v1642 = vrot.slane %v1640, 3
      %v1643 = vor.u32 %v1639, %v1642
      %v1644 = vsel %vm1474, %v1634, %v1643
      %v1646 = vshrl.u32 %v1466, 16
      %v1648 = vrot.slane %v1646, 2
      %v1649 = vshll.u32 %v1466, 16
      %v1651 = vrot.slane %v1649, 3
      %v1652 = vor.u32 %v1648, %v1651
      %v1653 = vsel %vm1474, %v1643, %v1652
      %v1655 = vshrl.u32 %v1467, 16
      %v1657 = vrot.slane %v1655, 2
      %v1658 = vshll.u32 %v1467, 16
      %v1660 = vrot.slane %v1658, 3
      %v1661 = vor.u32 %v1657, %v1660
      %v1662 = vsel %vm1474, %v1652, %v1661
      %v1664 = vshrl.u32 %v1468, 16
      %v1666 = vrot.slane %v1664, 2
      %v1667 = vshll.u32 %v1468, 16
      %v1669 = vrot.slane %v1667, 3
      %v1670 = vor.u32 %v1666, %v1669
      %v1671 = vsel %vm1474, %v1661, %v1670
      %v1673 = vshrl.u32 %v1469, 16
      %v1675 = vrot.slane %v1673, 2
      %v1676 = vshll.u32 %v1469, 16
      %v1678 = vrot.slane %v1676, 3
      %v1679 = vor.u32 %v1675, %v1678
      %v1680 = vsel %vm1474, %v1670, %v1679
      %v1682 = vshrl.u32 %v1470, 16
      %v1684 = vrot.slane %v1682, 2
      %v1685 = vshll.u32 %v1470, 16
      %v1687 = vrot.slane %v1685, 3
      %v1688 = vor.u32 %v1684, %v1687
      %v1689 = vsel %vm1474, %v1679, %v1688
      %v1691 = vshrl.u32 %v1471, 16
      %v1693 = vrot.slane %v1691, 2
      %v1694 = vshll.u32 %v1471, 16
      %v1696 = vrot.slane %v1694, 3
      %v1697 = vor.u32 %v1693, %v1696
      %v1698 = vsel %vm1474, %v1688, %v1697
      %v1700 = vshrl.u32 %v1472, 16
      %v1702 = vrot.slane %v1700, 2
      %v1703 = vshll.u32 %v1472, 16
      %v1705 = vrot.slane %v1703, 3
      %v1706 = vor.u32 %v1702, %v1705
      %v1707 = vsel %vm1474, %v1697, %v1706
      %v1709 = vshrl.u32 %v1473, 16
      %v1711 = vrot.slane %v1709, 2
      %v1712 = vshll.u32 %v1473, 16
      %v1714 = vrot.slane %v1712, 3
      %v1715 = vor.u32 %v1711, %v1714
      %v1716 = vsel %vm1474, %v1706, %v1715
      %v1725 = vunpack.c.l.b16 %v1331
      %v1726 = vunpack.c.l.b16 %v1332
      %v1727 = vunpack.c.l.b16 %v1333
      %v1728 = vunpack.c.l.b16 %v1334
      %v1729 = vunpack.c.l.b16 %v1335
      %v1730 = vunpack.c.l.b16 %v1336
      %v1731 = vunpack.c.l.b16 %v1337
      %v1732 = vunpack.c.l.b16 %v1338
      %v1733 = vpack.c.b16 %v1726, %v1725
      %v1734 = vpack.c.b16 %v1728, %v1727
      %v1735 = vpack.c.b16 %v1730, %v1729
      %v1736 = vpack.c.b16 %v1732, %v1731
      %v1742 = vsel %vm616, %v1491, 0
      %v1745 = vsel %vm616, %v1500, 0
      %v1748 = vsel %vm616, %v1509, 0
      %v1751 = vsel %vm616, %v1518, 0
      %v1754 = vsel %vm616, %v1527, 0
      %v1757 = vsel %vm616, %v1536, 0
      %v1760 = vsel %vm616, %v1545, 0
      %v1763 = vsel %vm616, %v1554, 0
      %v1766 = vsel %vm616, %v1563, 0
      %v1769 = vsel %vm616, %v1572, 0
      %v1772 = vsel %vm616, %v1581, 0
      %v1775 = vsel %vm616, %v1590, 0
      %v1778 = vsel %vm616, %v1599, 0
      %v1781 = vsel %vm616, %v1608, 0
      %v1784 = vsel %vm616, %v1617, 0
      %v1787 = vsel %vm616, %v1626, 0
      %v1790 = vsel %vm616, %v1635, 0
      %v1793 = vsel %vm616, %v1644, 0
      %v1796 = vsel %vm616, %v1653, 0
      %v1799 = vsel %vm616, %v1662, 0
      %v1802 = vsel %vm616, %v1671, 0
      %v1805 = vsel %vm616, %v1680, 0
      %v1808 = vsel %vm616, %v1689, 0
      %v1811 = vsel %vm616, %v1698, 0
      %v1814 = vsel %vm616, %v1707, 0
      %v1817 = vsel %vm616, %v1716, 0
      %v1820 = vsel %vm616, %v1715, 0
      %1822 = vmatprep.subr.bf16.mxu0 0
      %1823 = vmatpush1.bf16.msra.mxu0 0
      %1824 = vmatprep.subr.bf16.mxu0 0
      %1825 = vmatpush1.bf16.msra.mxu0 0
      %1826 = vmatprep.subr.bf16.mxu0 0
      %1827 = vmatpush1.bf16.msra.mxu0 0
      %1828 = vmatprep.subr.bf16.mxu0 0
      %1829 = vmatpush1.bf16.msra.mxu0 0
      %1830 = vmatprep.subr.bf16.mxu0 0
      %1831 = vmatpush1.bf16.msra.mxu0 %v1736
      %1832 = vmatprep.subr.bf16.mxu0 0
      %1833 = vmatpush1.bf16.msra.mxu0 %v1735
      %1834 = vmatprep.subr.bf16.mxu0 0
      %1835 = vmatpush1.bf16.msra.mxu0 %v1734
      %1836 = vmatprep.subr.bf16.mxu0 0
      %1837 = vmatpush1.bf16.msra.mxu0 %v1733
      %1838 = vmatprep.subr.bf16.mxu0 0
      %1839 = vmatpush2.bf16.msra.mxu0 0
      %1840 = vmatprep.subr.bf16.mxu0 0
      %1841 = vmatpush2.bf16.msra.mxu0 0
      %1842 = vmatprep.subr.bf16.mxu0 0
      %1843 = vmatpush2.bf16.msra.mxu0 0
      %1844 = vmatprep.subr.bf16.mxu0 0
      %1845 = vmatpush2.bf16.msra.mxu0 0
      %1846 = vmatprep.subr.bf16.mxu0 0
      %1847 = vmatpush2.bf16.msra.mxu0 0
      %1848 = vmatprep.subr.bf16.mxu0 0
      %1849 = vmatpush2.bf16.msra.mxu0 0
      %1850 = vmatprep.subr.bf16.mxu0 0
      %1851 = vmatpush2.bf16.msra.mxu0 0
      %1852 = vmatprep.subr.bf16.mxu0 0
      %1853 = vmatpush2.bf16.msra.mxu0 0
      %1854 = vmatprep.mubr.bf16.mxu0 0
      %1855 = vmatmul.mubr.bf16.gmra.mxu0 %v1742
      %v1856 = vpop.f32.mrf.mxu0
      %v1857 = vadd.f32 0.0, %v1856
      %v1858 = vpop.f32.mrf.mxu0
      %v1859 = vpop.f32.mrf.mxu0
      %v1860 = vadd.f32 0.0, %v1859
      %v1861 = vpop.f32.mrf.mxu0
      %1862 = vmatprep.mubr.bf16.mxu0 0
      %1863 = vmatmul.mubr.bf16.gmra.mxu0 %v1745
      %v1864 = vpop.f32.mrf.mxu0
      %v1865 = vadd.f32 0.0, %v1864
      %v1866 = vpop.f32.mrf.mxu0
      %v1867 = vpop.f32.mrf.mxu0
      %v1868 = vadd.f32 0.0, %v1867
      %v1869 = vpop.f32.mrf.mxu0
      %1870 = vmatprep.mubr.bf16.mxu0 0
      %1871 = vmatmul.mubr.bf16.gmra.mxu0 %v1748
      %v1872 = vpop.f32.mrf.mxu0
      %v1873 = vadd.f32 0.0, %v1872
      %v1874 = vpop.f32.mrf.mxu0
      %v1875 = vpop.f32.mrf.mxu0
      %v1876 = vadd.f32 0.0, %v1875
      %v1877 = vpop.f32.mrf.mxu0
      %1878 = vmatprep.mubr.bf16.mxu0 0
      %1879 = vmatmul.mubr.bf16.gmra.mxu0 %v1751
      %v1880 = vpop.f32.mrf.mxu0
      %v1881 = vadd.f32 0.0, %v1880
      %v1882 = vpop.f32.mrf.mxu0
      %v1883 = vpop.f32.mrf.mxu0
      %v1884 = vadd.f32 0.0, %v1883
      %v1885 = vpop.f32.mrf.mxu0
      %1886 = vmatprep.mubr.bf16.mxu0 0
      %1887 = vmatmul.mubr.bf16.gmra.mxu0 %v1754
      %v1888 = vpop.f32.mrf.mxu0
      %v1889 = vadd.f32 0.0, %v1888
      %v1890 = vpop.f32.mrf.mxu0
      %v1891 = vpop.f32.mrf.mxu0
      %v1892 = vadd.f32 0.0, %v1891
      %v1893 = vpop.f32.mrf.mxu0
      %1894 = vmatprep.mubr.bf16.mxu0 0
      %1895 = vmatmul.mubr.bf16.gmra.mxu0 %v1757
      %v1896 = vpop.f32.mrf.mxu0
      %v1897 = vadd.f32 0.0, %v1896
      %v1898 = vpop.f32.mrf.mxu0
      %v1899 = vpop.f32.mrf.mxu0
      %v1900 = vadd.f32 0.0, %v1899
      %v1901 = vpop.f32.mrf.mxu0
      %1902 = vmatprep.mubr.bf16.mxu0 0
      %1903 = vmatmul.mubr.bf16.gmra.mxu0 %v1760
      %v1904 = vpop.f32.mrf.mxu0
      %v1905 = vadd.f32 0.0, %v1904
      %v1906 = vpop.f32.mrf.mxu0
      %v1907 = vpop.f32.mrf.mxu0
      %v1908 = vadd.f32 0.0, %v1907
      %v1909 = vpop.f32.mrf.mxu0
      %1910 = vmatprep.mubr.bf16.mxu0 0
      %1911 = vmatmul.mubr.bf16.gmra.mxu0 %v1763
      %v1912 = vpop.f32.mrf.mxu0
      %v1913 = vadd.f32 0.0, %v1912
      %v1914 = vpop.f32.mrf.mxu0
      %v1915 = vpop.f32.mrf.mxu0
      %v1916 = vadd.f32 0.0, %v1915
      %v1917 = vpop.f32.mrf.mxu0
      %1918 = vmatprep.mubr.bf16.mxu0 0
      %1919 = vmatmul.mubr.bf16.gmra.mxu0 %v1766
      %v1920 = vpop.f32.mrf.mxu0
      %v1921 = vadd.f32 0.0, %v1920
      %v1922 = vpop.f32.mrf.mxu0
      %v1923 = vpop.f32.mrf.mxu0
      %v1924 = vadd.f32 0.0, %v1923
      %v1925 = vpop.f32.mrf.mxu0
      %1926 = vmatprep.mubr.bf16.mxu0 0
      %1927 = vmatmul.mubr.bf16.gmra.mxu0 %v1769
      %v1928 = vpop.f32.mrf.mxu0
      %v1929 = vadd.f32 0.0, %v1928
      %v1930 = vpop.f32.mrf.mxu0
      %v1931 = vpop.f32.mrf.mxu0
      %v1932 = vadd.f32 0.0, %v1931
      %v1933 = vpop.f32.mrf.mxu0
      %1934 = vmatprep.mubr.bf16.mxu0 0
      %1935 = vmatmul.mubr.bf16.gmra.mxu0 %v1772
      %v1936 = vpop.f32.mrf.mxu0
      %v1937 = vadd.f32 0.0, %v1936
      %v1938 = vpop.f32.mrf.mxu0
      %v1939 = vpop.f32.mrf.mxu0
      %v1940 = vadd.f32 0.0, %v1939
      %v1941 = vpop.f32.mrf.mxu0
      %1942 = vmatprep.mubr.bf16.mxu0 0
      %1943 = vmatmul.mubr.bf16.gmra.mxu0 %v1775
      %v1944 = vpop.f32.mrf.mxu0
      %v1945 = vadd.f32 0.0, %v1944
      %v1946 = vpop.f32.mrf.mxu0
      %v1947 = vpop.f32.mrf.mxu0
      %v1948 = vadd.f32 0.0, %v1947
      %v1949 = vpop.f32.mrf.mxu0
      %1950 = vmatprep.mubr.bf16.mxu0 0
      %1951 = vmatmul.mubr.bf16.gmra.mxu0 %v1778
      %v1952 = vpop.f32.mrf.mxu0
      %v1953 = vadd.f32 0.0, %v1952
      %v1954 = vpop.f32.mrf.mxu0
      %v1955 = vpop.f32.mrf.mxu0
      %v1956 = vadd.f32 0.0, %v1955
      %v1957 = vpop.f32.mrf.mxu0
      %1958 = vmatprep.mubr.bf16.mxu0 0
      %1959 = vmatmul.mubr.bf16.gmra.mxu0 %v1781
      %v1960 = vpop.f32.mrf.mxu0
      %v1961 = vadd.f32 0.0, %v1960
      %v1962 = vpop.f32.mrf.mxu0
      %v1963 = vpop.f32.mrf.mxu0
      %v1964 = vadd.f32 0.0, %v1963
      %v1965 = vpop.f32.mrf.mxu0
      %1966 = vmatprep.mubr.bf16.mxu0 0
      %1967 = vmatmul.mubr.bf16.gmra.mxu0 %v1784
      %v1968 = vpop.f32.mrf.mxu0
      %v1969 = vadd.f32 0.0, %v1968
      %v1970 = vpop.f32.mrf.mxu0
      %v1971 = vpop.f32.mrf.mxu0
      %v1972 = vadd.f32 0.0, %v1971
      %v1973 = vpop.f32.mrf.mxu0
      %1974 = vmatprep.mubr.bf16.mxu0 0
      %1975 = vmatmul.mubr.bf16.gmra.mxu0 %v1787
      %v1976 = vpop.f32.mrf.mxu0
      %v1977 = vadd.f32 0.0, %v1976
      %v1978 = vpop.f32.mrf.mxu0
      %v1979 = vpop.f32.mrf.mxu0
      %v1980 = vadd.f32 0.0, %v1979
      %v1981 = vpop.f32.mrf.mxu0
      %1982 = vmatprep.mubr.bf16.mxu0 0
      %1983 = vmatmul.mubr.bf16.gmra.mxu0 %v1790
      %v1984 = vpop.f32.mrf.mxu0
      %v1985 = vadd.f32 0.0, %v1984
      %v1986 = vpop.f32.mrf.mxu0
      %v1987 = vpop.f32.mrf.mxu0
      %v1988 = vadd.f32 0.0, %v1987
      %v1989 = vpop.f32.mrf.mxu0
      %1990 = vmatprep.mubr.bf16.mxu0 0
      %1991 = vmatmul.mubr.bf16.gmra.mxu0 %v1793
      %v1992 = vpop.f32.mrf.mxu0
      %v1993 = vadd.f32 0.0, %v1992
      %v1994 = vpop.f32.mrf.mxu0
      %v1995 = vpop.f32.mrf.mxu0
      %v1996 = vadd.f32 0.0, %v1995
      %v1997 = vpop.f32.mrf.mxu0
      %1998 = vmatprep.mubr.bf16.mxu0 0
      %1999 = vmatmul.mubr.bf16.gmra.mxu0 %v1796
      %v2000 = vpop.f32.mrf.mxu0
      %v2001 = vadd.f32 0.0, %v2000
      %v2002 = vpop.f32.mrf.mxu0
      %v2003 = vpop.f32.mrf.mxu0
      %v2004 = vadd.f32 0.0, %v2003
      %v2005 = vpop.f32.mrf.mxu0
      %2006 = vmatprep.mubr.bf16.mxu0 0
      %2007 = vmatmul.mubr.bf16.gmra.mxu0 %v1799
      %v2008 = vpop.f32.mrf.mxu0
      %v2009 = vadd.f32 0.0, %v2008
      %v2010 = vpop.f32.mrf.mxu0
      %v2011 = vpop.f32.mrf.mxu0
      %v2012 = vadd.f32 0.0, %v2011
      %v2013 = vpop.f32.mrf.mxu0
      %2014 = vmatprep.mubr.bf16.mxu0 0
      %2015 = vmatmul.mubr.bf16.gmra.mxu0 %v1802
      %v2016 = vpop.f32.mrf.mxu0
      %v2017 = vadd.f32 0.0, %v2016
      %v2018 = vpop.f32.mrf.mxu0
      %v2019 = vpop.f32.mrf.mxu0
      %v2020 = vadd.f32 0.0, %v2019
      %v2021 = vpop.f32.mrf.mxu0
      %2022 = vmatprep.mubr.bf16.mxu0 0
      %2023 = vmatmul.mubr.bf16.gmra.mxu0 %v1805
      %v2024 = vpop.f32.mrf.mxu0
      %v2025 = vadd.f32 0.0, %v2024
      %v2026 = vpop.f32.mrf.mxu0
      %v2027 = vpop.f32.mrf.mxu0
      %v2028 = vadd.f32 0.0, %v2027
      %v2029 = vpop.f32.mrf.mxu0
      %2030 = vmatprep.mubr.bf16.mxu0 0
      %2031 = vmatmul.mubr.bf16.gmra.mxu0 %v1808
      %v2032 = vpop.f32.mrf.mxu0
      %v2033 = vadd.f32 0.0, %v2032
      %v2034 = vpop.f32.mrf.mxu0
      %v2035 = vpop.f32.mrf.mxu0
      %v2036 = vadd.f32 0.0, %v2035
      %v2037 = vpop.f32.mrf.mxu0
      %2038 = vmatprep.mubr.bf16.mxu0 0
      %2039 = vmatmul.mubr.bf16.gmra.mxu0 %v1811
      %v2040 = vpop.f32.mrf.mxu0
      %v2041 = vadd.f32 0.0, %v2040
      %v2042 = vpop.f32.mrf.mxu0
      %v2043 = vpop.f32.mrf.mxu0
      %v2044 = vadd.f32 0.0, %v2043
      %v2045 = vpop.f32.mrf.mxu0
      %2046 = vmatprep.mubr.bf16.mxu0 0
      %2047 = vmatmul.mubr.bf16.gmra.mxu0 %v1814
      %v2048 = vpop.f32.mrf.mxu0
      %v2049 = vadd.f32 0.0, %v2048
      %v2050 = vpop.f32.mrf.mxu0
      %v2051 = vpop.f32.mrf.mxu0
      %v2052 = vadd.f32 0.0, %v2051
      %v2053 = vpop.f32.mrf.mxu0
      %2054 = vmatprep.mubr.bf16.mxu0 0
      %2055 = vmatmul.mubr.bf16.gmra.mxu0 %v1817
      %v2056 = vpop.f32.mrf.mxu0
      %v2057 = vadd.f32 0.0, %v2056
      %v2058 = vpop.f32.mrf.mxu0
      %v2059 = vpop.f32.mrf.mxu0
      %v2060 = vadd.f32 0.0, %v2059
      %v2061 = vpop.f32.mrf.mxu0
      %2062 = vmatprep.mubr.bf16.mxu0 0
      %2063 = vmatmul.mubr.bf16.gmra.mxu0 %v1820
      %v2064 = vpop.f32.mrf.mxu0
      %v2065 = vadd.f32 0.0, %v2064
      %v2066 = vpop.f32.mrf.mxu0
      %v2067 = vpop.f32.mrf.mxu0
      %v2068 = vpop.f32.mrf.mxu0
      %2069 = vdwg.mxu0
      %v2070 = vadd.f32 %v1063, %v1857
      %v2071 = vadd.f32 %v1066, %v1860
      %v2072 = vadd.f32 %v1071, %v1865
      %v2073 = vadd.f32 %v1074, %v1868
      %v2074 = vadd.f32 %v1079, %v1873
      %v2075 = vadd.f32 %v1082, %v1876
      %v2076 = vadd.f32 %v1087, %v1881
      %v2077 = vadd.f32 %v1090, %v1884
      %v2078 = vadd.f32 %v1095, %v1889
      %v2079 = vadd.f32 %v1098, %v1892
      %v2080 = vadd.f32 %v1103, %v1897
      %v2081 = vadd.f32 %v1106, %v1900
      %v2082 = vadd.f32 %v1111, %v1905
      %v2083 = vadd.f32 %v1114, %v1908
      %v2084 = vadd.f32 %v1119, %v1913
      %v2085 = vadd.f32 %v1122, %v1916
      %v2086 = vadd.f32 %v1127, %v1921
      %v2087 = vadd.f32 %v1130, %v1924
      %v2088 = vadd.f32 %v1135, %v1929
      %v2089 = vadd.f32 %v1138, %v1932
      %v2090 = vadd.f32 %v1143, %v1937
      %v2091 = vadd.f32 %v1146, %v1940
      %v2092 = vadd.f32 %v1151, %v1945
      %v2093 = vadd.f32 %v1154, %v1948
      %v2094 = vadd.f32 %v1159, %v1953
      %v2095 = vadd.f32 %v1162, %v1956
      %v2096 = vadd.f32 %v1167, %v1961
      %v2097 = vadd.f32 %v1170, %v1964
      %v2098 = vadd.f32 %v1175, %v1969
      %v2099 = vadd.f32 %v1178, %v1972
      %v2100 = vadd.f32 %v1183, %v1977
      %v2101 = vadd.f32 %v1186, %v1980
      %v2102 = vadd.f32 %v1191, %v1985
      %v2103 = vadd.f32 %v1194, %v1988
      %v2104 = vadd.f32 %v1199, %v1993
      %v2105 = vadd.f32 %v1202, %v1996
      %v2106 = vadd.f32 %v1207, %v2001
      %v2107 = vadd.f32 %v1210, %v2004
      %v2108 = vadd.f32 %v1215, %v2009
      %v2109 = vadd.f32 %v1218, %v2012
      %v2110 = vadd.f32 %v1223, %v2017
      %v2111 = vadd.f32 %v1226, %v2020
      %v2112 = vadd.f32 %v1231, %v2025
      %v2113 = vadd.f32 %v1234, %v2028
      %v2114 = vadd.f32 %v1239, %v2033
      %v2115 = vadd.f32 %v1242, %v2036
      %v2116 = vadd.f32 %v1247, %v2041
      %v2117 = vadd.f32 %v1250, %v2044
      %v2118 = vadd.f32 %v1255, %v2049
      %v2119 = vadd.f32 %v1258, %v2052
      %v2120 = vadd.f32 %v1263, %v2057
      %v2121 = vadd.f32 %v1266, %v2060
      %v2122 = vadd.f32 %v1271, %v2065
      %v2123 = vld [vmem:[%s165 + $0x8] sm:$0x8]
      %s2124 = scalar_lea.vmem %s1, 96
      %v2125 = vld [vmem:[%s2124] sm:$0xf]
      %v2126 = vld [vmem:[%s2124 + $0x4] sm:$0xf]
      %v2127 = vld [vmem:[%s2124 + $0x8] sm:$0xf]
      %v2128 = vld [vmem:[%s2124 + $0xc] sm:$0xf]
      %v2129 = vld [vmem:[%s2124 + $0x10] sm:$0xf]
      %v2130 = vld [vmem:[%s2124 + $0x14] sm:$0xf]
      %v2131 = vld [vmem:[%s2124 + $0x18] sm:$0xf]
      %v2132 = vld [vmem:[%s2124 + $0x1c] sm:$0xf]
      %v2134 = vunpack.c.l.b16 %v2123
      %v2135 = vpack.c.b16 %v1394, %v2134
      %vm2136 = vcmask 1044480
      %v2137 = vrot.slane %v2135, 3
      %v2138 = vrot.slane %v1448, 3
      %v2139 = vsel %vm2136, %v2137, %v2138
      %v2140 = vrot.slane %v1449, 3
      %v2141 = vsel %vm2136, %v2138, %v2140
      %v2142 = vrot.slane %v1450, 3
      %v2143 = vsel %vm2136, %v2140, %v2142
      %v2144 = vrot.slane %v1451, 3
      %v2145 = vsel %vm2136, %v2142, %v2144
      %v2146 = vrot.slane %v1452, 3
      %v2147 = vsel %vm2136, %v2144, %v2146
      %v2148 = vrot.slane %v1453, 3
      %v2149 = vsel %vm2136, %v2146, %v2148
      %v2150 = vrot.slane %v1454, 3
      %v2151 = vsel %vm2136, %v2148, %v2150
      %v2152 = vrot.slane %v1455, 3
      %v2153 = vsel %vm2136, %v2150, %v2152
      %v2154 = vrot.slane %v1456, 3
      %v2155 = vsel %vm2136, %v2152, %v2154
      %v2156 = vrot.slane %v1457, 3
      %v2157 = vsel %vm2136, %v2154, %v2156
      %v2158 = vrot.slane %v1458, 3
      %v2159 = vsel %vm2136, %v2156, %v2158
      %v2160 = vrot.slane %v1459, 3
      %v2161 = vsel %vm2136, %v2158, %v2160
      %v2162 = vrot.slane %v1460, 3
      %v2163 = vsel %vm2136, %v2160, %v2162
      %v2164 = vrot.slane %v1461, 3
      %v2165 = vsel %vm2136, %v2162, %v2164
      %v2166 = vrot.slane %v1462, 3
      %v2167 = vsel %vm2136, %v2164, %v2166
      %v2168 = vrot.slane %v1463, 3
      %v2169 = vsel %vm2136, %v2166, %v2168
      %v2170 = vrot.slane %v1464, 3
      %v2171 = vsel %vm2136, %v2168, %v2170
      %v2172 = vrot.slane %v1465, 3
      %v2173 = vsel %vm2136, %v2170, %v2172
      %v2174 = vrot.slane %v1466, 3
      %v2175 = vsel %vm2136, %v2172, %v2174
      %v2176 = vrot.slane %v1467, 3
      %v2177 = vsel %vm2136, %v2174, %v2176
      %v2178 = vrot.slane %v1468, 3
      %v2179 = vsel %vm2136, %v2176, %v2178
      %v2180 = vrot.slane %v1469, 3
      %v2181 = vsel %vm2136, %v2178, %v2180
      %v2182 = vrot.slane %v1470, 3
      %v2183 = vsel %vm2136, %v2180, %v2182
      %v2184 = vrot.slane %v1471, 3
      %v2185 = vsel %vm2136, %v2182, %v2184
      %v2186 = vrot.slane %v1472, 3
      %v2187 = vsel %vm2136, %v2184, %v2186
      %v2188 = vrot.slane %v1473, 3
      %v2189 = vsel %vm2136, %v2186, %v2188
      %v2198 = vunpack.c.l.b16 %v2125
      %v2199 = vunpack.c.l.b16 %v2126
      %v2200 = vunpack.c.l.b16 %v2127
      %v2201 = vunpack.c.l.b16 %v2128
      %v2202 = vunpack.c.l.b16 %v2129
      %v2203 = vunpack.c.l.b16 %v2130
      %v2204 = vunpack.c.l.b16 %v2131
      %v2205 = vunpack.c.l.b16 %v2132
      %v2206 = vpack.c.b16 %v2199, %v2198
      %v2207 = vpack.c.b16 %v2201, %v2200
      %v2208 = vpack.c.b16 %v2203, %v2202
      %v2209 = vpack.c.b16 %v2205, %v2204
      %v2215 = vsel %vm616, %v2139, 0
      %v2218 = vsel %vm616, %v2141, 0
      %v2221 = vsel %vm616, %v2143, 0
      %v2224 = vsel %vm616, %v2145, 0
      %v2227 = vsel %vm616, %v2147, 0
      %v2230 = vsel %vm616, %v2149, 0
      %v2233 = vsel %vm616, %v2151, 0
      %v2236 = vsel %vm616, %v2153, 0
      %v2239 = vsel %vm616, %v2155, 0
      %v2242 = vsel %vm616, %v2157, 0
      %v2245 = vsel %vm616, %v2159, 0
      %v2248 = vsel %vm616, %v2161, 0
      %v2251 = vsel %vm616, %v2163, 0
      %v2254 = vsel %vm616, %v2165, 0
      %v2257 = vsel %vm616, %v2167, 0
      %v2260 = vsel %vm616, %v2169, 0
      %v2263 = vsel %vm616, %v2171, 0
      %v2266 = vsel %vm616, %v2173, 0
      %v2269 = vsel %vm616, %v2175, 0
      %v2272 = vsel %vm616, %v2177, 0
      %v2275 = vsel %vm616, %v2179, 0
      %v2278 = vsel %vm616, %v2181, 0
      %v2281 = vsel %vm616, %v2183, 0
      %v2284 = vsel %vm616, %v2185, 0
      %v2287 = vsel %vm616, %v2187, 0
      %v2290 = vsel %vm616, %v2189, 0
      %v2293 = vsel %vm616, %v2188, 0
      %2295 = vmatprep.subr.bf16.mxu0 0
      %2296 = vmatpush1.bf16.msra.mxu0 0
      %2297 = vmatprep.subr.bf16.mxu0 0
      %2298 = vmatpush1.bf16.msra.mxu0 0
      %2299 = vmatprep.subr.bf16.mxu0 0
      %2300 = vmatpush1.bf16.msra.mxu0 0
      %2301 = vmatprep.subr.bf16.mxu0 0
      %2302 = vmatpush1.bf16.msra.mxu0 0
      %2303 = vmatprep.subr.bf16.mxu0 0
      %2304 = vmatpush1.bf16.msra.mxu0 %v2209
      %2305 = vmatprep.subr.bf16.mxu0 0
      %2306 = vmatpush1.bf16.msra.mxu0 %v2208
      %2307 = vmatprep.subr.bf16.mxu0 0
      %2308 = vmatpush1.bf16.msra.mxu0 %v2207
      %2309 = vmatprep.subr.bf16.mxu0 0
      %2310 = vmatpush1.bf16.msra.mxu0 %v2206
      %2311 = vmatprep.subr.bf16.mxu0 0
      %2312 = vmatpush2.bf16.msra.mxu0 0
      %2313 = vmatprep.subr.bf16.mxu0 0
      %2314 = vmatpush2.bf16.msra.mxu0 0
      %2315 = vmatprep.subr.bf16.mxu0 0
      %2316 = vmatpush2.bf16.msra.mxu0 0
      %2317 = vmatprep.subr.bf16.mxu0 0
      %2318 = vmatpush2.bf16.msra.mxu0 0
      %2319 = vmatprep.subr.bf16.mxu0 0
      %2320 = vmatpush2.bf16.msra.mxu0 0
      %2321 = vmatprep.subr.bf16.mxu0 0
      %2322 = vmatpush2.bf16.msra.mxu0 0
      %2323 = vmatprep.subr.bf16.mxu0 0
      %2324 = vmatpush2.bf16.msra.mxu0 0
      %2325 = vmatprep.subr.bf16.mxu0 0
      %2326 = vmatpush2.bf16.msra.mxu0 0
      %2327 = vmatprep.mubr.bf16.mxu0 0
      %2328 = vmatmul.mubr.bf16.gmra.mxu0 %v2215
      %v2329 = vpop.f32.mrf.mxu0
      %v2330 = vadd.f32 0.0, %v2329
      %v2331 = vpop.f32.mrf.mxu0
      %v2332 = vpop.f32.mrf.mxu0
      %v2333 = vadd.f32 0.0, %v2332
      %v2334 = vpop.f32.mrf.mxu0
      %2335 = vmatprep.mubr.bf16.mxu0 0
      %2336 = vmatmul.mubr.bf16.gmra.mxu0 %v2218
      %v2337 = vpop.f32.mrf.mxu0
      %v2338 = vadd.f32 0.0, %v2337
      %v2339 = vpop.f32.mrf.mxu0
      %v2340 = vpop.f32.mrf.mxu0
      %v2341 = vadd.f32 0.0, %v2340
      %v2342 = vpop.f32.mrf.mxu0
      %2343 = vmatprep.mubr.bf16.mxu0 0
      %2344 = vmatmul.mubr.bf16.gmra.mxu0 %v2221
      %v2345 = vpop.f32.mrf.mxu0
      %v2346 = vadd.f32 0.0, %v2345
      %v2347 = vpop.f32.mrf.mxu0
      %v2348 = vpop.f32.mrf.mxu0
      %v2349 = vadd.f32 0.0, %v2348
      %v2350 = vpop.f32.mrf.mxu0
      %2351 = vmatprep.mubr.bf16.mxu0 0
      %2352 = vmatmul.mubr.bf16.gmra.mxu0 %v2224
      %v2353 = vpop.f32.mrf.mxu0
      %v2354 = vadd.f32 0.0, %v2353
      %v2355 = vpop.f32.mrf.mxu0
      %v2356 = vpop.f32.mrf.mxu0
      %v2357 = vadd.f32 0.0, %v2356
      %v2358 = vpop.f32.mrf.mxu0
      %2359 = vmatprep.mubr.bf16.mxu0 0
      %2360 = vmatmul.mubr.bf16.gmra.mxu0 %v2227
      %v2361 = vpop.f32.mrf.mxu0
      %v2362 = vadd.f32 0.0, %v2361
      %v2363 = vpop.f32.mrf.mxu0
      %v2364 = vpop.f32.mrf.mxu0
      %v2365 = vadd.f32 0.0, %v2364
      %v2366 = vpop.f32.mrf.mxu0
      %2367 = vmatprep.mubr.bf16.mxu0 0
      %2368 = vmatmul.mubr.bf16.gmra.mxu0 %v2230
      %v2369 = vpop.f32.mrf.mxu0
      %v2370 = vadd.f32 0.0, %v2369
      %v2371 = vpop.f32.mrf.mxu0
      %v2372 = vpop.f32.mrf.mxu0
      %v2373 = vadd.f32 0.0, %v2372
      %v2374 = vpop.f32.mrf.mxu0
      %2375 = vmatprep.mubr.bf16.mxu0 0
      %2376 = vmatmul.mubr.bf16.gmra.mxu0 %v2233
      %v2377 = vpop.f32.mrf.mxu0
      %v2378 = vadd.f32 0.0, %v2377
      %v2379 = vpop.f32.mrf.mxu0
      %v2380 = vpop.f32.mrf.mxu0
      %v2381 = vadd.f32 0.0, %v2380
      %v2382 = vpop.f32.mrf.mxu0
      %2383 = vmatprep.mubr.bf16.mxu0 0
      %2384 = vmatmul.mubr.bf16.gmra.mxu0 %v2236
      %v2385 = vpop.f32.mrf.mxu0
      %v2386 = vadd.f32 0.0, %v2385
      %v2387 = vpop.f32.mrf.mxu0
      %v2388 = vpop.f32.mrf.mxu0
      %v2389 = vadd.f32 0.0, %v2388
      %v2390 = vpop.f32.mrf.mxu0
      %2391 = vmatprep.mubr.bf16.mxu0 0
      %2392 = vmatmul.mubr.bf16.gmra.mxu0 %v2239
      %v2393 = vpop.f32.mrf.mxu0
      %v2394 = vadd.f32 0.0, %v2393
      %v2395 = vpop.f32.mrf.mxu0
      %v2396 = vpop.f32.mrf.mxu0
      %v2397 = vadd.f32 0.0, %v2396
      %v2398 = vpop.f32.mrf.mxu0
      %2399 = vmatprep.mubr.bf16.mxu0 0
      %2400 = vmatmul.mubr.bf16.gmra.mxu0 %v2242
      %v2401 = vpop.f32.mrf.mxu0
      %v2402 = vadd.f32 0.0, %v2401
      %v2403 = vpop.f32.mrf.mxu0
      %v2404 = vpop.f32.mrf.mxu0
      %v2405 = vadd.f32 0.0, %v2404
      %v2406 = vpop.f32.mrf.mxu0
      %2407 = vmatprep.mubr.bf16.mxu0 0
      %2408 = vmatmul.mubr.bf16.gmra.mxu0 %v2245
      %v2409 = vpop.f32.mrf.mxu0
      %v2410 = vadd.f32 0.0, %v2409
      %v2411 = vpop.f32.mrf.mxu0
      %v2412 = vpop.f32.mrf.mxu0
      %v2413 = vadd.f32 0.0, %v2412
      %v2414 = vpop.f32.mrf.mxu0
      %2415 = vmatprep.mubr.bf16.mxu0 0
      %2416 = vmatmul.mubr.bf16.gmra.mxu0 %v2248
      %v2417 = vpop.f32.mrf.mxu0
      %v2418 = vadd.f32 0.0, %v2417
      %v2419 = vpop.f32.mrf.mxu0
      %v2420 = vpop.f32.mrf.mxu0
      %v2421 = vadd.f32 0.0, %v2420
      %v2422 = vpop.f32.mrf.mxu0
      %2423 = vmatprep.mubr.bf16.mxu0 0
      %2424 = vmatmul.mubr.bf16.gmra.mxu0 %v2251
      %v2425 = vpop.f32.mrf.mxu0
      %v2426 = vadd.f32 0.0, %v2425
      %v2427 = vpop.f32.mrf.mxu0
      %v2428 = vpop.f32.mrf.mxu0
      %v2429 = vadd.f32 0.0, %v2428
      %v2430 = vpop.f32.mrf.mxu0
      %2431 = vmatprep.mubr.bf16.mxu0 0
      %2432 = vmatmul.mubr.bf16.gmra.mxu0 %v2254
      %v2433 = vpop.f32.mrf.mxu0
      %v2434 = vadd.f32 0.0, %v2433
      %v2435 = vpop.f32.mrf.mxu0
      %v2436 = vpop.f32.mrf.mxu0
      %v2437 = vadd.f32 0.0, %v2436
      %v2438 = vpop.f32.mrf.mxu0
      %2439 = vmatprep.mubr.bf16.mxu0 0
      %2440 = vmatmul.mubr.bf16.gmra.mxu0 %v2257
      %v2441 = vpop.f32.mrf.mxu0
      %v2442 = vadd.f32 0.0, %v2441
      %v2443 = vpop.f32.mrf.mxu0
      %v2444 = vpop.f32.mrf.mxu0
      %v2445 = vadd.f32 0.0, %v2444
      %v2446 = vpop.f32.mrf.mxu0
      %2447 = vmatprep.mubr.bf16.mxu0 0
      %2448 = vmatmul.mubr.bf16.gmra.mxu0 %v2260
      %v2449 = vpop.f32.mrf.mxu0
      %v2450 = vadd.f32 0.0, %v2449
      %v2451 = vpop.f32.mrf.mxu0
      %v2452 = vpop.f32.mrf.mxu0
      %v2453 = vadd.f32 0.0, %v2452
      %v2454 = vpop.f32.mrf.mxu0
      %2455 = vmatprep.mubr.bf16.mxu0 0
      %2456 = vmatmul.mubr.bf16.gmra.mxu0 %v2263
      %v2457 = vpop.f32.mrf.mxu0
      %v2458 = vadd.f32 0.0, %v2457
      %v2459 = vpop.f32.mrf.mxu0
      %v2460 = vpop.f32.mrf.mxu0
      %v2461 = vadd.f32 0.0, %v2460
      %v2462 = vpop.f32.mrf.mxu0
      %2463 = vmatprep.mubr.bf16.mxu0 0
      %2464 = vmatmul.mubr.bf16.gmra.mxu0 %v2266
      %v2465 = vpop.f32.mrf.mxu0
      %v2466 = vadd.f32 0.0, %v2465
      %v2467 = vpop.f32.mrf.mxu0
      %v2468 = vpop.f32.mrf.mxu0
      %v2469 = vadd.f32 0.0, %v2468
      %v2470 = vpop.f32.mrf.mxu0
      %2471 = vmatprep.mubr.bf16.mxu0 0
      %2472 = vmatmul.mubr.bf16.gmra.mxu0 %v2269
      %v2473 = vpop.f32.mrf.mxu0
      %v2474 = vadd.f32 0.0, %v2473
      %v2475 = vpop.f32.mrf.mxu0
      %v2476 = vpop.f32.mrf.mxu0
      %v2477 = vadd.f32 0.0, %v2476
      %v2478 = vpop.f32.mrf.mxu0
      %2479 = vmatprep.mubr.bf16.mxu0 0
      %2480 = vmatmul.mubr.bf16.gmra.mxu0 %v2272
      %v2481 = vpop.f32.mrf.mxu0
      %v2482 = vadd.f32 0.0, %v2481
      %v2483 = vpop.f32.mrf.mxu0
      %v2484 = vpop.f32.mrf.mxu0
      %v2485 = vadd.f32 0.0, %v2484
      %v2486 = vpop.f32.mrf.mxu0
      %2487 = vmatprep.mubr.bf16.mxu0 0
      %2488 = vmatmul.mubr.bf16.gmra.mxu0 %v2275
      %v2489 = vpop.f32.mrf.mxu0
      %v2490 = vadd.f32 0.0, %v2489
      %v2491 = vpop.f32.mrf.mxu0
      %v2492 = vpop.f32.mrf.mxu0
      %v2493 = vadd.f32 0.0, %v2492
      %v2494 = vpop.f32.mrf.mxu0
      %2495 = vmatprep.mubr.bf16.mxu0 0
      %2496 = vmatmul.mubr.bf16.gmra.mxu0 %v2278
      %v2497 = vpop.f32.mrf.mxu0
      %v2498 = vadd.f32 0.0, %v2497
      %v2499 = vpop.f32.mrf.mxu0
      %v2500 = vpop.f32.mrf.mxu0
      %v2501 = vadd.f32 0.0, %v2500
      %v2502 = vpop.f32.mrf.mxu0
      %2503 = vmatprep.mubr.bf16.mxu0 0
      %2504 = vmatmul.mubr.bf16.gmra.mxu0 %v2281
      %v2505 = vpop.f32.mrf.mxu0
      %v2506 = vadd.f32 0.0, %v2505
      %v2507 = vpop.f32.mrf.mxu0
      %v2508 = vpop.f32.mrf.mxu0
      %v2509 = vadd.f32 0.0, %v2508
      %v2510 = vpop.f32.mrf.mxu0
      %2511 = vmatprep.mubr.bf16.mxu0 0
      %2512 = vmatmul.mubr.bf16.gmra.mxu0 %v2284
      %v2513 = vpop.f32.mrf.mxu0
      %v2514 = vadd.f32 0.0, %v2513
      %v2515 = vpop.f32.mrf.mxu0
      %v2516 = vpop.f32.mrf.mxu0
      %v2517 = vadd.f32 0.0, %v2516
      %v2518 = vpop.f32.mrf.mxu0
      %2519 = vmatprep.mubr.bf16.mxu0 0
      %2520 = vmatmul.mubr.bf16.gmra.mxu0 %v2287
      %v2521 = vpop.f32.mrf.mxu0
      %v2522 = vadd.f32 0.0, %v2521
      %v2523 = vpop.f32.mrf.mxu0
      %v2524 = vpop.f32.mrf.mxu0
      %v2525 = vadd.f32 0.0, %v2524
      %v2526 = vpop.f32.mrf.mxu0
      %2527 = vmatprep.mubr.bf16.mxu0 0
      %2528 = vmatmul.mubr.bf16.gmra.mxu0 %v2290
      %v2529 = vpop.f32.mrf.mxu0
      %v2530 = vadd.f32 0.0, %v2529
      %v2531 = vpop.f32.mrf.mxu0
      %v2532 = vpop.f32.mrf.mxu0
      %v2533 = vadd.f32 0.0, %v2532
      %v2534 = vpop.f32.mrf.mxu0
      %2535 = vmatprep.mubr.bf16.mxu0 0
      %2536 = vmatmul.mubr.bf16.gmra.mxu0 %v2293
      %v2537 = vpop.f32.mrf.mxu0
      %v2538 = vadd.f32 0.0, %v2537
      %v2539 = vpop.f32.mrf.mxu0
      %v2540 = vpop.f32.mrf.mxu0
      %v2541 = vpop.f32.mrf.mxu0
      %2542 = vdwg.mxu0
      %v2543 = vadd.f32 %v2070, %v2330
      %v2544 = vadd.f32 %v2071, %v2333
      %v2545 = vadd.f32 %v2072, %v2338
      %v2546 = vadd.f32 %v2073, %v2341
      %v2547 = vadd.f32 %v2074, %v2346
      %v2548 = vadd.f32 %v2075, %v2349
      %v2549 = vadd.f32 %v2076, %v2354
      %v2550 = vadd.f32 %v2077, %v2357
      %v2551 = vadd.f32 %v2078, %v2362
      %v2552 = vadd.f32 %v2079, %v2365
      %v2553 = vadd.f32 %v2080, %v2370
      %v2554 = vadd.f32 %v2081, %v2373
      %v2555 = vadd.f32 %v2082, %v2378
      %v2556 = vadd.f32 %v2083, %v2381
      %v2557 = vadd.f32 %v2084, %v2386
      %v2558 = vadd.f32 %v2085, %v2389
      %v2559 = vadd.f32 %v2086, %v2394
      %v2560 = vadd.f32 %v2087, %v2397
      %v2561 = vadd.f32 %v2088, %v2402
      %v2562 = vadd.f32 %v2089, %v2405
      %v2563 = vadd.f32 %v2090, %v2410
      %v2564 = vadd.f32 %v2091, %v2413
      %v2565 = vadd.f32 %v2092, %v2418
      %v2566 = vadd.f32 %v2093, %v2421
      %v2567 = vadd.f32 %v2094, %v2426
      %v2568 = vadd.f32 %v2095, %v2429
      %v2569 = vadd.f32 %v2096, %v2434
      %v2570 = vadd.f32 %v2097, %v2437
      %v2571 = vadd.f32 %v2098, %v2442
      %v2572 = vadd.f32 %v2099, %v2445
      %v2573 = vadd.f32 %v2100, %v2450
      %v2574 = vadd.f32 %v2101, %v2453
      %v2575 = vadd.f32 %v2102, %v2458
      %v2576 = vadd.f32 %v2103, %v2461
      %v2577 = vadd.f32 %v2104, %v2466
      %v2578 = vadd.f32 %v2105, %v2469
      %v2579 = vadd.f32 %v2106, %v2474
      %v2580 = vadd.f32 %v2107, %v2477
      %v2581 = vadd.f32 %v2108, %v2482
      %v2582 = vadd.f32 %v2109, %v2485
      %v2583 = vadd.f32 %v2110, %v2490
      %v2584 = vadd.f32 %v2111, %v2493
      %v2585 = vadd.f32 %v2112, %v2498
      %v2586 = vadd.f32 %v2113, %v2501
      %v2587 = vadd.f32 %v2114, %v2506
      %v2588 = vadd.f32 %v2115, %v2509
      %v2589 = vadd.f32 %v2116, %v2514
      %v2590 = vadd.f32 %v2117, %v2517
      %v2591 = vadd.f32 %v2118, %v2522
      %v2592 = vadd.f32 %v2119, %v2525
      %v2593 = vadd.f32 %v2120, %v2530
      %v2594 = vadd.f32 %v2121, %v2533
      %v2595 = vadd.f32 %v2122, %v2538
      %v2596 = vld [vmem:[%s2] sm:$0x1]
      %v2598 = vlaneseq
      %v2599 = vshrl.u32 %v2598, 7
      %v2600 = vsub.s32 0, %v2599
      %v2601 = vrot.slane %v2596, %v2600
      %v2603 = vadd.f32 %v2543, %v2601
      %v2604 = vadd.f32 %v2544, %v2601
      %v2605 = vadd.f32 %v2545, %v2601
      %v2606 = vadd.f32 %v2546, %v2601
      %v2607 = vadd.f32 %v2547, %v2601
      %v2608 = vadd.f32 %v2548, %v2601
      %v2609 = vadd.f32 %v2549, %v2601
      %v2610 = vadd.f32 %v2550, %v2601
      %v2611 = vadd.f32 %v2551, %v2601
      %v2612 = vadd.f32 %v2552, %v2601
      %v2613 = vadd.f32 %v2553, %v2601
      %v2614 = vadd.f32 %v2554, %v2601
      %v2615 = vadd.f32 %v2555, %v2601
      %v2616 = vadd.f32 %v2556, %v2601
      %v2617 = vadd.f32 %v2557, %v2601
      %v2618 = vadd.f32 %v2558, %v2601
      %v2619 = vadd.f32 %v2559, %v2601
      %v2620 = vadd.f32 %v2560, %v2601
      %v2621 = vadd.f32 %v2561, %v2601
      %v2622 = vadd.f32 %v2562, %v2601
      %v2623 = vadd.f32 %v2563, %v2601
      %v2624 = vadd.f32 %v2564, %v2601
      %v2625 = vadd.f32 %v2565, %v2601
      %v2626 = vadd.f32 %v2566, %v2601
      %v2627 = vadd.f32 %v2567, %v2601
      %v2628 = vadd.f32 %v2568, %v2601
      %v2629 = vadd.f32 %v2569, %v2601
      %v2630 = vadd.f32 %v2570, %v2601
      %v2631 = vadd.f32 %v2571, %v2601
      %v2632 = vadd.f32 %v2572, %v2601
      %v2633 = vadd.f32 %v2573, %v2601
      %v2634 = vadd.f32 %v2574, %v2601
      %v2635 = vadd.f32 %v2575, %v2601
      %v2636 = vadd.f32 %v2576, %v2601
      %v2637 = vadd.f32 %v2577, %v2601
      %v2638 = vadd.f32 %v2578, %v2601
      %v2639 = vadd.f32 %v2579, %v2601
      %v2640 = vadd.f32 %v2580, %v2601
      %v2641 = vadd.f32 %v2581, %v2601
      %v2642 = vadd.f32 %v2582, %v2601
      %v2643 = vadd.f32 %v2583, %v2601
      %v2644 = vadd.f32 %v2584, %v2601
      %v2645 = vadd.f32 %v2585, %v2601
      %v2646 = vadd.f32 %v2586, %v2601
      %v2647 = vadd.f32 %v2587, %v2601
      %v2648 = vadd.f32 %v2588, %v2601
      %v2649 = vadd.f32 %v2589, %v2601
      %v2650 = vadd.f32 %v2590, %v2601
      %v2651 = vadd.f32 %v2591, %v2601
      %v2652 = vadd.f32 %v2592, %v2601
      %v2653 = vadd.f32 %v2593, %v2601
      %v2654 = vadd.f32 %v2594, %v2601
      %v2655 = vadd.f32 %v2595, %v2601
      %v2656 = vmax.f32 %v2603, 0.0
      %v2657 = vmax.f32 %v2604, 0.0
      %v2658 = vmax.f32 %v2605, 0.0
      %v2659 = vmax.f32 %v2606, 0.0
      %v2660 = vmax.f32 %v2607, 0.0
      %v2661 = vmax.f32 %v2608, 0.0
      %v2662 = vmax.f32 %v2609, 0.0
      %v2663 = vmax.f32 %v2610, 0.0
      %v2664 = vmax.f32 %v2611, 0.0
      %v2665 = vmax.f32 %v2612, 0.0
      %v2666 = vmax.f32 %v2613, 0.0
      %v2667 = vmax.f32 %v2614, 0.0
      %v2668 = vmax.f32 %v2615, 0.0
      %v2669 = vmax.f32 %v2616, 0.0
      %v2670 = vmax.f32 %v2617, 0.0
      %v2671 = vmax.f32 %v2618, 0.0
      %v2672 = vmax.f32 %v2619, 0.0
      %v2673 = vmax.f32 %v2620, 0.0
      %v2674 = vmax.f32 %v2621, 0.0
      %v2675 = vmax.f32 %v2622, 0.0
      %v2676 = vmax.f32 %v2623, 0.0
      %v2677 = vmax.f32 %v2624, 0.0
      %v2678 = vmax.f32 %v2625, 0.0
      %v2679 = vmax.f32 %v2626, 0.0
      %v2680 = vmax.f32 %v2627, 0.0
      %v2681 = vmax.f32 %v2628, 0.0
      %v2682 = vmax.f32 %v2629, 0.0
      %v2683 = vmax.f32 %v2630, 0.0
      %v2684 = vmax.f32 %v2631, 0.0
      %v2685 = vmax.f32 %v2632, 0.0
      %v2686 = vmax.f32 %v2633, 0.0
      %v2687 = vmax.f32 %v2634, 0.0
      %v2688 = vmax.f32 %v2635, 0.0
      %v2689 = vmax.f32 %v2636, 0.0
      %v2690 = vmax.f32 %v2637, 0.0
      %v2691 = vmax.f32 %v2638, 0.0
      %v2692 = vmax.f32 %v2639, 0.0
      %v2693 = vmax.f32 %v2640, 0.0
      %v2694 = vmax.f32 %v2641, 0.0
      %v2695 = vmax.f32 %v2642, 0.0
      %v2696 = vmax.f32 %v2643, 0.0
      %v2697 = vmax.f32 %v2644, 0.0
      %v2698 = vmax.f32 %v2645, 0.0
      %v2699 = vmax.f32 %v2646, 0.0
      %v2700 = vmax.f32 %v2647, 0.0
      %v2701 = vmax.f32 %v2648, 0.0
      %v2702 = vmax.f32 %v2649, 0.0
      %v2703 = vmax.f32 %v2650, 0.0
      %v2704 = vmax.f32 %v2651, 0.0
      %v2705 = vmax.f32 %v2652, 0.0
      %v2706 = vmax.f32 %v2653, 0.0
      %v2707 = vmax.f32 %v2654, 0.0
      %v2708 = vmax.f32 %v2655, 0.0
      %v2709 = vpack.c.bf16 %v2657, %v2656
      %v2710 = vpack.c.bf16 %v2659, %v2658
      %v2711 = vpack.c.bf16 %v2661, %v2660
      %v2712 = vpack.c.bf16 %v2663, %v2662
      %v2713 = vpack.c.bf16 %v2665, %v2664
      %v2714 = vpack.c.bf16 %v2667, %v2666
      %v2715 = vpack.c.bf16 %v2669, %v2668
      %v2716 = vpack.c.bf16 %v2671, %v2670
      %v2717 = vpack.c.bf16 %v2673, %v2672
      %v2718 = vpack.c.bf16 %v2675, %v2674
      %v2719 = vpack.c.bf16 %v2677, %v2676
      %v2720 = vpack.c.bf16 %v2679, %v2678
      %v2721 = vpack.c.bf16 %v2681, %v2680
      %v2722 = vpack.c.bf16 %v2683, %v2682
      %v2723 = vpack.c.bf16 %v2685, %v2684
      %v2724 = vpack.c.bf16 %v2687, %v2686
      %v2725 = vpack.c.bf16 %v2689, %v2688
      %v2726 = vpack.c.bf16 %v2691, %v2690
      %v2727 = vpack.c.bf16 %v2693, %v2692
      %v2728 = vpack.c.bf16 %v2695, %v2694
      %v2729 = vpack.c.bf16 %v2697, %v2696
      %v2730 = vpack.c.bf16 %v2699, %v2698
      %v2731 = vpack.c.bf16 %v2701, %v2700
      %v2732 = vpack.c.bf16 %v2703, %v2702
      %v2733 = vpack.c.bf16 %v2705, %v2704
      %v2734 = vpack.c.bf16 %v2707, %v2706
      %v2735 = vpack.c.bf16 %v2708, %v2708
      %v2763 = vunpack.c.l.b16 %v2709
      %v2764 = vunpack.c.h.b16 %v2709
      %v2765 = vunpack.c.l.b16 %v2710
      %v2766 = vunpack.c.h.b16 %v2710
      %v2767 = vunpack.c.l.b16 %v2711
      %v2768 = vunpack.c.h.b16 %v2711
      %v2769 = vunpack.c.l.b16 %v2712
      %v2770 = vunpack.c.h.b16 %v2712
      %v2771 = vunpack.c.l.b16 %v2713
      %v2772 = vunpack.c.h.b16 %v2713
      %v2773 = vunpack.c.l.b16 %v2714
      %v2774 = vunpack.c.h.b16 %v2714
      %v2775 = vunpack.c.l.b16 %v2715
      %v2776 = vunpack.c.h.b16 %v2715
      %v2777 = vunpack.c.l.b16 %v2716
      %v2778 = vunpack.c.h.b16 %v2716
      %v2779 = vunpack.c.l.b16 %v2717
      %v2780 = vunpack.c.h.b16 %v2717
      %v2781 = vunpack.c.l.b16 %v2718
      %v2782 = vunpack.c.h.b16 %v2718
      %v2783 = vunpack.c.l.b16 %v2719
      %v2784 = vunpack.c.h.b16 %v2719
      %v2785 = vunpack.c.l.b16 %v2720
      %v2786 = vunpack.c.h.b16 %v2720
      %v2787 = vunpack.c.l.b16 %v2721
      %v2788 = vunpack.c.h.b16 %v2721
      %v2789 = vunpack.c.l.b16 %v2722
      %v2790 = vunpack.c.h.b16 %v2722
      %v2791 = vunpack.c.l.b16 %v2723
      %v2792 = vunpack.c.h.b16 %v2723
      %v2793 = vunpack.c.l.b16 %v2724
      %v2794 = vunpack.c.h.b16 %v2724
      %v2795 = vunpack.c.l.b16 %v2725
      %v2796 = vunpack.c.h.b16 %v2725
      %v2797 = vunpack.c.l.b16 %v2726
      %v2798 = vunpack.c.h.b16 %v2726
      %v2799 = vunpack.c.l.b16 %v2727
      %v2800 = vunpack.c.h.b16 %v2727
      %v2801 = vunpack.c.l.b16 %v2728
      %v2802 = vunpack.c.h.b16 %v2728
      %v2803 = vunpack.c.l.b16 %v2729
      %v2804 = vunpack.c.h.b16 %v2729
      %v2805 = vunpack.c.l.b16 %v2730
      %v2806 = vunpack.c.h.b16 %v2730
      %v2807 = vunpack.c.l.b16 %v2731
      %v2808 = vunpack.c.h.b16 %v2731
      %v2809 = vunpack.c.l.b16 %v2732
      %v2810 = vunpack.c.h.b16 %v2732
      %v2811 = vunpack.c.l.b16 %v2733
      %v2812 = vunpack.c.h.b16 %v2733
      %v2813 = vunpack.c.l.b16 %v2734
      %v2814 = vunpack.c.h.b16 %v2734
      %v2815 = vunpack.c.l.b16 %v2735
      %v2816 = vpack.c.b16 %v2763, %v2763
      %v2817 = vpack.c.b16 %v2764, %v2764
      %v2818 = vpack.c.b16 %v2765, %v2765
      %v2819 = vpack.c.b16 %v2766, %v2766
      %v2820 = vpack.c.b16 %v2767, %v2767
      %v2821 = vpack.c.b16 %v2768, %v2768
      %v2822 = vpack.c.b16 %v2769, %v2769
      %v2823 = vpack.c.b16 %v2770, %v2770
      %v2824 = vpack.c.b16 %v2771, %v2771
      %v2825 = vpack.c.b16 %v2772, %v2772
      %v2826 = vpack.c.b16 %v2773, %v2773
      %v2827 = vpack.c.b16 %v2774, %v2774
      %v2828 = vpack.c.b16 %v2775, %v2775
      %v2829 = vpack.c.b16 %v2776, %v2776
      %v2830 = vpack.c.b16 %v2777, %v2777
      %v2831 = vpack.c.b16 %v2778, %v2778
      %v2832 = vpack.c.b16 %v2779, %v2779
      %v2833 = vpack.c.b16 %v2780, %v2780
      %v2834 = vpack.c.b16 %v2781, %v2781
      %v2835 = vpack.c.b16 %v2782, %v2782
      %v2836 = vpack.c.b16 %v2783, %v2783
      %v2837 = vpack.c.b16 %v2784, %v2784
      %v2838 = vpack.c.b16 %v2785, %v2785
      %v2839 = vpack.c.b16 %v2786, %v2786
      %v2840 = vpack.c.b16 %v2787, %v2787
      %v2841 = vpack.c.b16 %v2788, %v2788
      %v2842 = vpack.c.b16 %v2789, %v2789
      %v2843 = vpack.c.b16 %v2790, %v2790
      %v2844 = vpack.c.b16 %v2791, %v2791
      %v2845 = vpack.c.b16 %v2792, %v2792
      %v2846 = vpack.c.b16 %v2793, %v2793
      %v2847 = vpack.c.b16 %v2794, %v2794
      %v2848 = vpack.c.b16 %v2795, %v2795
      %v2849 = vpack.c.b16 %v2796, %v2796
      %v2850 = vpack.c.b16 %v2797, %v2797
      %v2851 = vpack.c.b16 %v2798, %v2798
      %v2852 = vpack.c.b16 %v2799, %v2799
      %v2853 = vpack.c.b16 %v2800, %v2800
      %v2854 = vpack.c.b16 %v2801, %v2801
      %v2855 = vpack.c.b16 %v2802, %v2802
      %v2856 = vpack.c.b16 %v2803, %v2803
      %v2857 = vpack.c.b16 %v2804, %v2804
      %v2858 = vpack.c.b16 %v2805, %v2805
      %v2859 = vpack.c.b16 %v2806, %v2806
      %v2860 = vpack.c.b16 %v2807, %v2807
      %v2861 = vpack.c.b16 %v2808, %v2808
      %v2862 = vpack.c.b16 %v2809, %v2809
      %v2863 = vpack.c.b16 %v2810, %v2810
      %v2864 = vpack.c.b16 %v2811, %v2811
      %v2865 = vpack.c.b16 %v2812, %v2812
      %v2866 = vpack.c.b16 %v2813, %v2813
      %v2867 = vpack.c.b16 %v2814, %v2814
      %v2868 = vpack.c.b16 %v2815, %v2815
      %vm2922 = vcmask 125952
      %2923 = vst.msk [vmem:[%s170] sm:$0xf] %vm2922, %v2816
      %2924 = vst.msk [vmem:[%s170 + $0x4] sm:$0xf] %vm2922, %v2817
      %2925 = vst.msk [vmem:[%s170 + $0x8] sm:$0xf] %vm2922, %v2818
      %2926 = vst.msk [vmem:[%s170 + $0xc] sm:$0xf] %vm2922, %v2819
      %2927 = vst.msk [vmem:[%s170 + $0x10] sm:$0xf] %vm2922, %v2820
      %2928 = vst.msk [vmem:[%s170 + $0x14] sm:$0xf] %vm2922, %v2821
      %2929 = vst.msk [vmem:[%s170 + $0x18] sm:$0xf] %vm2922, %v2822
      %2930 = vst.msk [vmem:[%s170 + $0x1c] sm:$0xf] %vm2922, %v2823
      %2931 = vst.msk [vmem:[%s170 + $0x20] sm:$0xf] %vm2922, %v2824
      %2932 = vst.msk [vmem:[%s170 + $0x24] sm:$0xf] %vm2922, %v2825
      %2933 = vst.msk [vmem:[%s170 + $0x28] sm:$0xf] %vm2922, %v2826
      %2934 = vst.msk [vmem:[%s170 + $0x2c] sm:$0xf] %vm2922, %v2827
      %2935 = vst.msk [vmem:[%s170 + $0x30] sm:$0xf] %vm2922, %v2828
      %2936 = vst.msk [vmem:[%s170 + $0x34] sm:$0xf] %vm2922, %v2829
      %2937 = vst.msk [vmem:[%s170 + $0x38] sm:$0xf] %vm2922, %v2830
      %2938 = vst.msk [vmem:[%s170 + $0x3c] sm:$0xf] %vm2922, %v2831
      %2939 = vst.msk [vmem:[%s170 + $0x40] sm:$0xf] %vm2922, %v2832
      %2940 = vst.msk [vmem:[%s170 + $0x44] sm:$0xf] %vm2922, %v2833
      %2941 = vst.msk [vmem:[%s170 + $0x48] sm:$0xf] %vm2922, %v2834
      %2942 = vst.msk [vmem:[%s170 + $0x4c] sm:$0xf] %vm2922, %v2835
      %2943 = vst.msk [vmem:[%s170 + $0x50] sm:$0xf] %vm2922, %v2836
      %2944 = vst.msk [vmem:[%s170 + $0x54] sm:$0xf] %vm2922, %v2837
      %2945 = vst.msk [vmem:[%s170 + $0x58] sm:$0xf] %vm2922, %v2838
      %2946 = vst.msk [vmem:[%s170 + $0x5c] sm:$0xf] %vm2922, %v2839
      %2947 = vst.msk [vmem:[%s170 + $0x60] sm:$0xf] %vm2922, %v2840
      %2948 = vst.msk [vmem:[%s170 + $0x64] sm:$0xf] %vm2922, %v2841
      %2949 = vst.msk [vmem:[%s170 + $0x68] sm:$0xf] %vm2922, %v2842
      %2950 = vst.msk [vmem:[%s170 + $0x6c] sm:$0xf] %vm2922, %v2843
      %2951 = vst.msk [vmem:[%s170 + $0x70] sm:$0xf] %vm2922, %v2844
      %2952 = vst.msk [vmem:[%s170 + $0x74] sm:$0xf] %vm2922, %v2845
      %2953 = vst.msk [vmem:[%s170 + $0x78] sm:$0xf] %vm2922, %v2846
      %2954 = vst.msk [vmem:[%s170 + $0x7c] sm:$0xf] %vm2922, %v2847
      %2955 = vst.msk [vmem:[%s170 + $0x80] sm:$0xf] %vm2922, %v2848
      %2956 = vst.msk [vmem:[%s170 + $0x84] sm:$0xf] %vm2922, %v2849
      %2957 = vst.msk [vmem:[%s170 + $0x88] sm:$0xf] %vm2922, %v2850
      %2958 = vst.msk [vmem:[%s170 + $0x8c] sm:$0xf] %vm2922, %v2851
      %2959 = vst.msk [vmem:[%s170 + $0x90] sm:$0xf] %vm2922, %v2852
      %2960 = vst.msk [vmem:[%s170 + $0x94] sm:$0xf] %vm2922, %v2853
      %2961 = vst.msk [vmem:[%s170 + $0x98] sm:$0xf] %vm2922, %v2854
      %2962 = vst.msk [vmem:[%s170 + $0x9c] sm:$0xf] %vm2922, %v2855
      %2963 = vst.msk [vmem:[%s170 + $0xa0] sm:$0xf] %vm2922, %v2856
      %2964 = vst.msk [vmem:[%s170 + $0xa4] sm:$0xf] %vm2922, %v2857
      %2965 = vst.msk [vmem:[%s170 + $0xa8] sm:$0xf] %vm2922, %v2858
      %2966 = vst.msk [vmem:[%s170 + $0xac] sm:$0xf] %vm2922, %v2859
      %2967 = vst.msk [vmem:[%s170 + $0xb0] sm:$0xf] %vm2922, %v2860
      %2968 = vst.msk [vmem:[%s170 + $0xb4] sm:$0xf] %vm2922, %v2861
      %2969 = vst.msk [vmem:[%s170 + $0xb8] sm:$0xf] %vm2922, %v2862
      %2970 = vst.msk [vmem:[%s170 + $0xbc] sm:$0xf] %vm2922, %v2863
      %2971 = vst.msk [vmem:[%s170 + $0xc0] sm:$0xf] %vm2922, %v2864
      %2972 = vst.msk [vmem:[%s170 + $0xc4] sm:$0xf] %vm2922, %v2865
      %2973 = vst.msk [vmem:[%s170 + $0xc8] sm:$0xf] %vm2922, %v2866
      %2974 = vst.msk [vmem:[%s170 + $0xcc] sm:$0xf] %vm2922, %v2867
      %vm2975 = vcmask 123904
      %2976 = vst.msk [vmem:[%s170 + $0xd0] sm:$0x3] %vm2975, %v2868
      %p2977 = scmp.lt.s32.totalorder %s14, 1
      %s2978 = scalar_select %p2977, %s14, 1
      %s2979 = smul.addr %s2978, 53
      %s2980 = smul.addr %s2979, 4
      %s2981 = scalar_lea.vmem %s3, %s2980
      // Predicated region
      $region33: #{cnn_model_forward.3} parent=31 // pred_check
        %p2982 = pneg %p100
      $region34: #{cnn_model_forward.3} parent=31 // pred_check_branch
        %2984 = sbr.rel (%p2982) target = $region36
      $region35: #{cnn_model_forward.3} parent=31 // pred_region
        _
      $region36: #{cnn_model_forward.3} parent=31 // pred_fallthru
        _
    $region32: #{cnn_model_forward.3} parent=5 // pred_fallthru
      _
    %p2985 = scmp.le.s32.totalorder 2, %s9
    // Predicated region
    $region37: #{cnn_model_forward.3} parent=5 // pred_check
      %p2986 = pneg %p2985
    $region38: #{cnn_model_forward.3} parent=5 // pred_check_branch
      %2988 = sbr.rel (%p2986) target = $region40
    $region39: #{cnn_model_forward.3} parent=5 // pred_region
      %s2989 = ssub.s32 %s9, 2
      // Predicated region
      $region41: #{cnn_model_forward.3} parent=39 // pred_check
        %p2990 = pneg %p106
      $region42: #{cnn_model_forward.3} parent=39 // pred_check_branch
        %2992 = sbr.rel (%p2990) target = $region44
      $region43: #{cnn_model_forward.3} parent=39 // pred_region
        %p2993 = scmp.lt.s32.totalorder %s15, 1
        %s2994 = scalar_select %p2993, %s15, 1
        %s2995 = smul.addr %s2994, 53
        %s2996 = smul.addr %s2995, 4
        %s2997 = scalar_lea.vmem %s3, %s2996
      $region44: #{cnn_model_forward.3} parent=39 // pred_fallthru
        _
    $region40: #{cnn_model_forward.3} parent=5 // pred_fallthru
      _
  $region6: #{cnn_model_forward.3} parent=0 // loop_footer
    %s13 = sadd.s32 1, %s9
  $region7: #{cnn_model_forward.3} parent=0 // loop_footer_branch
    %8 = sbr.rel target = $region3
  $region8: #{cnn_model_forward.3} parent=0 // loop_exit
    _

// kernel: cnn_model_forward.4
$region0: #{cnn_model_forward.4}
  #allocation0 [shape = 'u32[]', space=smem, size = 0x4, offset = 0x4, fixed_abs, tag = 'smem constant byte address 0x4 - core index']
  #allocation1 [shape = 'u32[144,128]{1,0:T(1,128)}', space=vmem, size = 0x12000, scoped, tag = 'internal scratch']
  %s0 = inlined_call_operand.vmem [shape: bf16[2,104,64], index: 0, kind: input, shape index: {}]
  %s1 = inlined_call_operand.vmem [shape: bf16[2,2,64,32], index: 1, kind: input, shape index: {}]
  %s2 = inlined_call_operand.vmem [shape: f32[1,32], index: 2, kind: input, shape index: {}]
  %s3 = inlined_call_operand.vmem [shape: bf16[2,90,32], index: 3, kind: output, shape index: {}]
  %s4 = sld [smem:[#allocation0]]
  $region45: #{cnn_model_forward.4} parent=0
    _
  %s6 = ssub.s32 1, %s4
  %s7 = scalar_select 0, %s6, %s4
  loop: start=0, step=1, limit=4
  $region2: #{cnn_model_forward.4} parent=0 // loop_pre_header
    _
  $region3: #{cnn_model_forward.4} parent=0 // loop_header
    %s9 = sphi 0, %s13
    %p10 = scmp.ge.s32.totalorder %s9, 4
    %s19 = sphi 0, %s21
    %s22 = sphi 0, %s19
    %s23 = sphi 0, %s22
    %s39 = sphi 0, %s23
    %s43 = sphi 0, %s43
    %s45 = sphi 0, %s43
    %s46 = sphi 0, %s45
    %s60 = sphi 0, %s46
    %s64 = sphi 0, %s64
    %s66 = sphi 0, %s64
    %s67 = sphi 0, %s66
    %s81 = sphi 0, %s67
    %s87 = sphi 0, %s89
    %s90 = sphi 0, %s87
    %s91 = sphi 0, %s90
    %s107 = sphi 0, %s91
  $region4: #{cnn_model_forward.4} parent=0 // loop_header_branch
    %12 = sbr.rel (%p10) target = $region8
  $region5: #{cnn_model_forward.4} parent=0 // loop_body
    %s14 = ssub.s32 %s9, 1
    %s15 = ssub.s32 %s9, 2
    %s16 = sadd.s32 %s9, 1
    %s17 = ssub.s32 %s9, %s16
    %p18 = scmp.eq.s32.totalorder %s17, 0
    %s20 = sadd.s32 %s19, 1
    %s21 = scalar_select %p18, %s19, %s20
    %p24 = pneg %p18
    %p25 = scmp.eq.s32.totalorder %s9, 1
    %p26 = por %p24, %p25
    %p27 = scmp.ne.s32.totalorder %s19, %s22
    %p28 = scmp.eq.s32.totalorder %s9, 0
    %p29 = por %p27, %p28
    %p30 = scmp.ne.s32.totalorder %s19, %s22
    %p31 = scmp.eq.s32.totalorder %s14, 1
    %p32 = por %p30, %p31
    %p33 = scmp.ne.s32.totalorder %s22, %s23
    %p34 = scmp.eq.s32.totalorder %s14, 0
    %p35 = por %p33, %p34
    %p36 = scmp.ne.s32.totalorder %s22, %s23
    %p37 = scmp.eq.s32.totalorder %s15, 1
    %p38 = por %p36, %p37
    %p40 = scmp.ne.s32.totalorder %s23, %s39
    %p41 = scmp.eq.s32.totalorder %s15, 0
    %p42 = por %p40, %p41
    %s44 = sadd.s32 %s43, 1
    %p47 = scmp.eq.s32.totalorder %s9, 1
    %p48 = scmp.ne.s32.totalorder %s43, %s45
    %p49 = scmp.eq.s32.totalorder %s9, 0
    %p50 = por %p48, %p49
    %p51 = scmp.ne.s32.totalorder %s43, %s45
    %p52 = scmp.eq.s32.totalorder %s14, 1
    %p53 = por %p51, %p52
    %p54 = scmp.ne.s32.totalorder %s45, %s46
    %p55 = scmp.eq.s32.totalorder %s14, 0
    %p56 = por %p54, %p55
    %p57 = scmp.ne.s32.totalorder %s45, %s46
    %p58 = scmp.eq.s32.totalorder %s15, 1
    %p59 = por %p57, %p58
    %p61 = scmp.ne.s32.totalorder %s46, %s60
    %p62 = scmp.eq.s32.totalorder %s15, 0
    %p63 = por %p61, %p62
    %s65 = sadd.s32 %s64, 1
    %p68 = scmp.eq.s32.totalorder %s9, 1
    %p69 = scmp.ne.s32.totalorder %s64, %s66
    %p70 = scmp.eq.s32.totalorder %s9, 0
    %p71 = por %p69, %p70
    %p72 = scmp.ne.s32.totalorder %s64, %s66
    %p73 = scmp.eq.s32.totalorder %s14, 1
    %p74 = por %p72, %p73
    %p75 = scmp.ne.s32.totalorder %s66, %s67
    %p76 = scmp.eq.s32.totalorder %s14, 0
    %p77 = por %p75, %p76
    %p78 = scmp.ne.s32.totalorder %s66, %s67
    %p79 = scmp.eq.s32.totalorder %s15, 1
    %p80 = por %p78, %p79
    %p82 = scmp.ne.s32.totalorder %s67, %s81
    %p83 = scmp.eq.s32.totalorder %s15, 0
    %p84 = por %p82, %p83
    %s85 = ssub.s32 %s9, %s16
    %p86 = scmp.eq.s32.totalorder %s85, 0
    %s88 = sadd.s32 %s87, 1
    %s89 = scalar_select %p86, %s87, %s88
    %p92 = pneg %p86
    %p93 = scmp.eq.s32.totalorder %s9, 1
    %p94 = por %p92, %p93
    %p95 = scmp.ne.s32.totalorder %s87, %s90
    %p96 = scmp.eq.s32.totalorder %s9, 0
    %p97 = por %p95, %p96
    %p98 = scmp.ne.s32.totalorder %s87, %s90
    %p99 = scmp.eq.s32.totalorder %s14, 1
    %p100 = por %p98, %p99
    %p101 = scmp.ne.s32.totalorder %s90, %s91
    %p102 = scmp.eq.s32.totalorder %s14, 0
    %p103 = por %p101, %p102
    %p104 = scmp.ne.s32.totalorder %s90, %s91
    %p105 = scmp.eq.s32.totalorder %s15, 1
    %p106 = por %p104, %p105
    %p108 = scmp.ne.s32.totalorder %s91, %s107
    %p109 = scmp.eq.s32.totalorder %s15, 0
    %p110 = por %p108, %p109
    %p111 = scmp.le.s32.totalorder 1, %s9
    %p112 = scmp.lt.s32.totalorder %s9, 3
    %p113 = pnand %p111, %p112
    %p114 = pneg %p113
    // Predicated region
    $region9: #{cnn_model_forward.4} parent=5 // pred_check
      _
    $region10: #{cnn_model_forward.4} parent=5 // pred_check_branch
      %116 = sbr.rel (%p113) target = $region12
    $region11: #{cnn_model_forward.4} parent=5 // pred_region
      %s117 = ssub.s32 %s9, 1
      // Predicated region
      $region13: #{cnn_model_forward.4} parent=11 // pred_check
        %p118 = pneg %p56
      $region14: #{cnn_model_forward.4} parent=11 // pred_check_branch
        %120 = sbr.rel (%p118) target = $region16
      $region15: #{cnn_model_forward.4} parent=11 // pred_region
        _
      $region16: #{cnn_model_forward.4} parent=11 // pred_fallthru
        _
      // Predicated region
      $region17: #{cnn_model_forward.4} parent=11 // pred_check
        %p121 = pneg %p77
      $region18: #{cnn_model_forward.4} parent=11 // pred_check_branch
        %123 = sbr.rel (%p121) target = $region20
      $region19: #{cnn_model_forward.4} parent=11 // pred_region
        _
      $region20: #{cnn_model_forward.4} parent=11 // pred_fallthru
        _
    $region12: #{cnn_model_forward.4} parent=5 // pred_fallthru
      _
    %p124 = scmp.lt.s32.totalorder %s9, 2
    // Predicated region
    $region21: #{cnn_model_forward.4} parent=5 // pred_check
      %p125 = pneg %p124
    $region22: #{cnn_model_forward.4} parent=5 // pred_check_branch
      %127 = sbr.rel (%p125) target = $region24
    $region23: #{cnn_model_forward.4} parent=5 // pred_region
      // Predicated region
      $region25: #{cnn_model_forward.4} parent=23 // pred_check
        %p128 = pneg %p29
      $region26: #{cnn_model_forward.4} parent=23 // pred_check_branch
        %130 = sbr.rel (%p128) target = $region28
      $region27: #{cnn_model_forward.4} parent=23 // pred_region
        %p131 = scmp.lt.s32.totalorder %s9, 1
        %s132 = scalar_select %p131, %s9, 1
        %s133 = smul.addr %s132, 13
        %s134 = smul.addr %s133, 4
        %s135 = scalar_lea.vmem %s0, %s134
      $region28: #{cnn_model_forward.4} parent=23 // pred_fallthru
        _
    $region24: #{cnn_model_forward.4} parent=5 // pred_fallthru
      _
    %p136 = scmp.le.s32.totalorder 1, %s9
    %p137 = scmp.lt.s32.totalorder %s9, 3
    %p138 = pnand %p136, %p137
    %p139 = pneg %p138
    // Predicated region
    $region29: #{cnn_model_forward.4} parent=5 // pred_check
      _
    $region30: #{cnn_model_forward.4} parent=5 // pred_check_branch
      %141 = sbr.rel (%p138) target = $region32
    $region31: #{cnn_model_forward.4} parent=5 // pred_region
      %s142 = ssub.s32 %s9, 1
      %p143 = scmp.lt.s32.totalorder %s14, 1
      %s144 = scalar_select %p143, %s14, 1
      %s145 = smul.addr %s144, 13
      %s146 = smul.addr %s145, 4
      %s147 = scalar_lea.vmem %s0, %s146
      %p148 = pneg %p35
      %p149 = pneg %p32
      %p150 = pneg %p56
      %p151 = pneg %p53
      %p152 = pneg %p77
      %p153 = pneg %p74
      %p154 = pneg %p103
      %p155 = pneg %p100
      %p156 = scmp.lt.s32.totalorder %s14, 1
      %s157 = scalar_select %p156, %s14, 1
      %s158 = smul.addr %s157, 12
      %s159 = smul.addr %s158, 4
      %s160 = scalar_lea.vmem %s3, %s159
      %p161 = scmp.lt.s32.totalorder %s14, 1
      %s162 = scalar_select %p161, %s14, 1
      %s163 = smul.addr %s162, 13
      %s164 = smul.addr %s163, 4
      %s165 = scalar_lea.vmem %s0, %s164
      %p166 = scmp.lt.s32.totalorder %s14, 1
      %s167 = scalar_select %p166, %s14, 1
      %s168 = smul.addr %s167, 12
      %s169 = smul.addr %s168, 4
      %s170 = scalar_lea.vmem %s3, %s169
      %v172 = vld [vmem:[%s165] sm:$0xf]
      %v173 = vld [vmem:[%s165 + $0x4] sm:$0xf]
      %v174 = vld [vmem:[%s165 + $0x8] sm:$0xf]
      %v175 = vld [vmem:[%s165 + $0xc] sm:$0xf]
      %v176 = vld [vmem:[%s165 + $0x10] sm:$0xf]
      %v177 = vld [vmem:[%s165 + $0x14] sm:$0xf]
      %v178 = vld [vmem:[%s165 + $0x18] sm:$0xf]
      %v179 = vld [vmem:[%s165 + $0x1c] sm:$0xf]
      %v180 = vld [vmem:[%s165 + $0x20] sm:$0xf]
      %v181 = vld [vmem:[%s165 + $0x24] sm:$0xf]
      %v182 = vld [vmem:[%s165 + $0x28] sm:$0xf]
      %v183 = vld [vmem:[%s165 + $0x2c] sm:$0x1]
      %v184 = vld [vmem:[%s1] sm:$0xf]
      %v185 = vld [vmem:[%s1 + $0x4] sm:$0xf]
      %v186 = vld [vmem:[%s1 + $0x8] sm:$0xf]
      %v187 = vld [vmem:[%s1 + $0xc] sm:$0xf]
      %v188 = vld [vmem:[%s1 + $0x10] sm:$0xf]
      %v189 = vld [vmem:[%s1 + $0x14] sm:$0xf]
      %v190 = vld [vmem:[%s1 + $0x18] sm:$0xf]
      %v191 = vld [vmem:[%s1 + $0x1c] sm:$0xf]
      %v192 = vld [vmem:[%s165 + $0x2c] sm:$0x3]
      %s193 = scalar_lea.vmem %s1, 32
      %v194 = vld [vmem:[%s193] sm:$0xf]
      %v195 = vld [vmem:[%s193 + $0x4] sm:$0xf]
      %v196 = vld [vmem:[%s193 + $0x8] sm:$0xf]
      %v197 = vld [vmem:[%s193 + $0xc] sm:$0xf]
      %v198 = vld [vmem:[%s193 + $0x10] sm:$0xf]
      %v199 = vld [vmem:[%s193 + $0x14] sm:$0xf]
      %v200 = vld [vmem:[%s193 + $0x18] sm:$0xf]
      %v201 = vld [vmem:[%s193 + $0x1c] sm:$0xf]
      %v214 = vunpack.c.l.b16 %v172
      %v215 = vunpack.c.l.b16 %v173
      %v216 = vunpack.c.l.b16 %v174
      %v217 = vunpack.c.l.b16 %v175
      %v218 = vunpack.c.l.b16 %v176
      %v219 = vunpack.c.l.b16 %v177
      %v220 = vunpack.c.l.b16 %v178
      %v221 = vunpack.c.l.b16 %v179
      %v222 = vunpack.c.l.b16 %v180
      %v223 = vunpack.c.l.b16 %v181
      %v224 = vunpack.c.l.b16 %v182
      %v225 = vunpack.c.l.b16 %v192
      %v226 = vpack.c.b16 %v215, %v214
      %v227 = vpack.c.b16 %v217, %v216
      %v228 = vpack.c.b16 %v219, %v218
      %v229 = vpack.c.b16 %v221, %v220
      %v230 = vpack.c.b16 %v223, %v222
      %v231 = vpack.c.b16 %v225, %v224
      %vm232 = vsmask.f32 7424
      %v234 = vshrl.u32 %v226, 16
      %v236 = vshll.u32 %v226, 16
      %v238 = vrot.slane %v236, 1
      %v239 = vor.u32 %v234, %v238
      %v241 = vshll.u32 %v227, 16
      %v243 = vrot.slane %v241, 1
      %v244 = vsel %vm232, %v239, %v243
      %v245 = vshrl.u32 %v227, 16
      %v247 = vor.u32 %v245, %v243
      %v249 = vshll.u32 %v228, 16
      %v251 = vrot.slane %v249, 1
      %v252 = vsel %vm232, %v247, %v251
      %v253 = vshrl.u32 %v228, 16
      %v255 = vor.u32 %v253, %v251
      %v257 = vshll.u32 %v229, 16
      %v259 = vrot.slane %v257, 1
      %v260 = vsel %vm232, %v255, %v259
      %v261 = vshrl.u32 %v229, 16
      %v263 = vor.u32 %v261, %v259
      %v265 = vshll.u32 %v230, 16
      %v267 = vrot.slane %v265, 1
      %v268 = vsel %vm232, %v263, %v267
      %v269 = vshrl.u32 %v230, 16
      %v271 = vor.u32 %v269, %v267
      %v273 = vshll.u32 %v231, 16
      %v275 = vrot.slane %v273, 1
      %v276 = vsel %vm232, %v271, %v275
      %v277 = vshrl.u32 %v231, 16
      %v279 = vor.u32 %v277, %v275
      %v288 = vunpack.c.l.b16 %v194
      %v289 = vunpack.c.l.b16 %v195
      %v290 = vunpack.c.l.b16 %v196
      %v291 = vunpack.c.l.b16 %v197
      %v292 = vunpack.c.l.b16 %v198
      %v293 = vunpack.c.l.b16 %v199
      %v294 = vunpack.c.l.b16 %v200
      %v295 = vunpack.c.l.b16 %v201
      %v296 = vpack.c.b16 %v289, %v288
      %v297 = vpack.c.b16 %v291, %v290
      %v298 = vpack.c.b16 %v293, %v292
      %v299 = vpack.c.b16 %v295, %v294
      %vm304 = vcmask 523264
      %v306 = vsel %vm304, %v244, 0
      %v309 = vsel %vm304, %v252, 0
      %v312 = vsel %vm304, %v260, 0
      %v315 = vsel %vm304, %v268, 0
      %v318 = vsel %vm304, %v276, 0
      %v321 = vsel %vm304, %v279, 0
      %323 = vmatprep.subr.bf16.mxu0 0
      %324 = vmatpush1.bf16.msra.mxu0 0
      %325 = vmatprep.subr.bf16.mxu0 0
      %326 = vmatpush1.bf16.msra.mxu0 0
      %327 = vmatprep.subr.bf16.mxu0 0
      %328 = vmatpush1.bf16.msra.mxu0 0
      %329 = vmatprep.subr.bf16.mxu0 0
      %330 = vmatpush1.bf16.msra.mxu0 0
      %331 = vmatprep.subr.bf16.mxu0 0
      %332 = vmatpush1.bf16.msra.mxu0 %v299
      %333 = vmatprep.subr.bf16.mxu0 0
      %334 = vmatpush1.bf16.msra.mxu0 %v298
      %335 = vmatprep.subr.bf16.mxu0 0
      %336 = vmatpush1.bf16.msra.mxu0 %v297
      %337 = vmatprep.subr.bf16.mxu0 0
      %338 = vmatpush1.bf16.msra.mxu0 %v296
      %339 = vmatprep.subr.bf16.mxu0 0
      %340 = vmatpush2.bf16.msra.mxu0 0
      %341 = vmatprep.subr.bf16.mxu0 0
      %342 = vmatpush2.bf16.msra.mxu0 0
      %343 = vmatprep.subr.bf16.mxu0 0
      %344 = vmatpush2.bf16.msra.mxu0 0
      %345 = vmatprep.subr.bf16.mxu0 0
      %346 = vmatpush2.bf16.msra.mxu0 0
      %347 = vmatprep.subr.bf16.mxu0 0
      %348 = vmatpush2.bf16.msra.mxu0 0
      %349 = vmatprep.subr.bf16.mxu0 0
      %350 = vmatpush2.bf16.msra.mxu0 0
      %351 = vmatprep.subr.bf16.mxu0 0
      %352 = vmatpush2.bf16.msra.mxu0 0
      %353 = vmatprep.subr.bf16.mxu0 0
      %354 = vmatpush2.bf16.msra.mxu0 0
      %355 = vmatprep.mubr.bf16.mxu0 0
      %356 = vmatmul.mubr.bf16.gmra.mxu0 %v306
      %v357 = vpop.f32.mrf.mxu0
      %v358 = vadd.f32 0.0, %v357
      %v359 = vpop.f32.mrf.mxu0
      %v360 = vpop.f32.mrf.mxu0
      %v361 = vadd.f32 0.0, %v360
      %v362 = vpop.f32.mrf.mxu0
      %363 = vmatprep.mubr.bf16.mxu0 0
      %364 = vmatmul.mubr.bf16.gmra.mxu0 %v309
      %v365 = vpop.f32.mrf.mxu0
      %v366 = vadd.f32 0.0, %v365
      %v367 = vpop.f32.mrf.mxu0
      %v368 = vpop.f32.mrf.mxu0
      %v369 = vadd.f32 0.0, %v368
      %v370 = vpop.f32.mrf.mxu0
      %371 = vmatprep.mubr.bf16.mxu0 0
      %372 = vmatmul.mubr.bf16.gmra.mxu0 %v312
      %v373 = vpop.f32.mrf.mxu0
      %v374 = vadd.f32 0.0, %v373
      %v375 = vpop.f32.mrf.mxu0
      %v376 = vpop.f32.mrf.mxu0
      %v377 = vadd.f32 0.0, %v376
      %v378 = vpop.f32.mrf.mxu0
      %379 = vmatprep.mubr.bf16.mxu0 0
      %380 = vmatmul.mubr.bf16.gmra.mxu0 %v315
      %v381 = vpop.f32.mrf.mxu0
      %v382 = vadd.f32 0.0, %v381
      %v383 = vpop.f32.mrf.mxu0
      %v384 = vpop.f32.mrf.mxu0
      %v385 = vadd.f32 0.0, %v384
      %v386 = vpop.f32.mrf.mxu0
      %387 = vmatprep.mubr.bf16.mxu0 0
      %388 = vmatmul.mubr.bf16.gmra.mxu0 %v318
      %v389 = vpop.f32.mrf.mxu0
      %v390 = vadd.f32 0.0, %v389
      %v391 = vpop.f32.mrf.mxu0
      %v392 = vpop.f32.mrf.mxu0
      %v393 = vadd.f32 0.0, %v392
      %v394 = vpop.f32.mrf.mxu0
      %395 = vmatprep.mubr.bf16.mxu0 0
      %396 = vmatmul.mubr.bf16.gmra.mxu0 %v321
      %v397 = vpop.f32.mrf.mxu0
      %v398 = vadd.f32 0.0, %v397
      %v399 = vpop.f32.mrf.mxu0
      %v400 = vpop.f32.mrf.mxu0
      %v401 = vadd.f32 0.0, %v400
      %v402 = vpop.f32.mrf.mxu0
      %403 = vdwg.mxu0
      %v405 = vunpack.c.l.b16 %v183
      %v406 = vpack.c.b16 %v405, %v224
      %v415 = vunpack.c.l.b16 %v184
      %v416 = vunpack.c.l.b16 %v185
      %v417 = vunpack.c.l.b16 %v186
      %v418 = vunpack.c.l.b16 %v187
      %v419 = vunpack.c.l.b16 %v188
      %v420 = vunpack.c.l.b16 %v189
      %v421 = vunpack.c.l.b16 %v190
      %v422 = vunpack.c.l.b16 %v191
      %v423 = vpack.c.b16 %v416, %v415
      %v424 = vpack.c.b16 %v418, %v417
      %v425 = vpack.c.b16 %v420, %v419
      %v426 = vpack.c.b16 %v422, %v421
      %v431 = vsel %vm304, %v226, 0
      %v433 = vsel %vm304, %v227, 0
      %v435 = vsel %vm304, %v228, 0
      %v437 = vsel %vm304, %v229, 0
      %v439 = vsel %vm304, %v230, 0
      %v442 = vsel %vm304, %v406, 0
      %444 = vmatprep.subr.bf16.mxu0 0
      %445 = vmatpush1.bf16.msra.mxu0 0
      %446 = vmatprep.subr.bf16.mxu0 0
      %447 = vmatpush1.bf16.msra.mxu0 0
      %448 = vmatprep.subr.bf16.mxu0 0
      %449 = vmatpush1.bf16.msra.mxu0 0
      %450 = vmatprep.subr.bf16.mxu0 0
      %451 = vmatpush1.bf16.msra.mxu0 0
      %452 = vmatprep.subr.bf16.mxu0 0
      %453 = vmatpush1.bf16.msra.mxu0 %v426
      %454 = vmatprep.subr.bf16.mxu0 0
      %455 = vmatpush1.bf16.msra.mxu0 %v425
      %456 = vmatprep.subr.bf16.mxu0 0
      %457 = vmatpush1.bf16.msra.mxu0 %v424
      %458 = vmatprep.subr.bf16.mxu0 0
      %459 = vmatpush1.bf16.msra.mxu0 %v423
      %460 = vmatprep.subr.bf16.mxu0 0
      %461 = vmatpush2.bf16.msra.mxu0 0
      %462 = vmatprep.subr.bf16.mxu0 0
      %463 = vmatpush2.bf16.msra.mxu0 0
      %464 = vmatprep.subr.bf16.mxu0 0
      %465 = vmatpush2.bf16.msra.mxu0 0
      %466 = vmatprep.subr.bf16.mxu0 0
      %467 = vmatpush2.bf16.msra.mxu0 0
      %468 = vmatprep.subr.bf16.mxu0 0
      %469 = vmatpush2.bf16.msra.mxu0 0
      %470 = vmatprep.subr.bf16.mxu0 0
      %471 = vmatpush2.bf16.msra.mxu0 0
      %472 = vmatprep.subr.bf16.mxu0 0
      %473 = vmatpush2.bf16.msra.mxu0 0
      %474 = vmatprep.subr.bf16.mxu0 0
      %475 = vmatpush2.bf16.msra.mxu0 0
      %476 = vmatprep.mubr.bf16.mxu0 0
      %477 = vmatmul.mubr.bf16.gmra.mxu0 %v431
      %v478 = vpop.f32.mrf.mxu0
      %v479 = vadd.f32 %v358, %v478
      %v480 = vpop.f32.mrf.mxu0
      %v481 = vpop.f32.mrf.mxu0
      %v482 = vadd.f32 %v361, %v481
      %v483 = vpop.f32.mrf.mxu0
      %484 = vmatprep.mubr.bf16.mxu0 0
      %485 = vmatmul.mubr.bf16.gmra.mxu0 %v433
      %v486 = vpop.f32.mrf.mxu0
      %v487 = vadd.f32 %v366, %v486
      %v488 = vpop.f32.mrf.mxu0
      %v489 = vpop.f32.mrf.mxu0
      %v490 = vadd.f32 %v369, %v489
      %v491 = vpop.f32.mrf.mxu0
      %492 = vmatprep.mubr.bf16.mxu0 0
      %493 = vmatmul.mubr.bf16.gmra.mxu0 %v435
      %v494 = vpop.f32.mrf.mxu0
      %v495 = vadd.f32 %v374, %v494
      %v496 = vpop.f32.mrf.mxu0
      %v497 = vpop.f32.mrf.mxu0
      %v498 = vadd.f32 %v377, %v497
      %v499 = vpop.f32.mrf.mxu0
      %500 = vmatprep.mubr.bf16.mxu0 0
      %501 = vmatmul.mubr.bf16.gmra.mxu0 %v437
      %v502 = vpop.f32.mrf.mxu0
      %v503 = vadd.f32 %v382, %v502
      %v504 = vpop.f32.mrf.mxu0
      %v505 = vpop.f32.mrf.mxu0
      %v506 = vadd.f32 %v385, %v505
      %v507 = vpop.f32.mrf.mxu0
      %508 = vmatprep.mubr.bf16.mxu0 0
      %509 = vmatmul.mubr.bf16.gmra.mxu0 %v439
      %v510 = vpop.f32.mrf.mxu0
      %v511 = vadd.f32 %v390, %v510
      %v512 = vpop.f32.mrf.mxu0
      %v513 = vpop.f32.mrf.mxu0
      %v514 = vadd.f32 %v393, %v513
      %v515 = vpop.f32.mrf.mxu0
      %516 = vmatprep.mubr.bf16.mxu0 0
      %517 = vmatmul.mubr.bf16.gmra.mxu0 %v442
      %v518 = vpop.f32.mrf.mxu0
      %v519 = vadd.f32 %v398, %v518
      %v520 = vpop.f32.mrf.mxu0
      %v521 = vpop.f32.mrf.mxu0
      %v522 = vadd.f32 %v401, %v521
      %v523 = vpop.f32.mrf.mxu0
      %524 = vdwg.mxu0
      %v525 = vld [vmem:[%s165 + $0x4] sm:$0xe]
      %v526 = vld [vmem:[%s165 + $0x8] sm:$0xf]
      %v527 = vld [vmem:[%s165 + $0xc] sm:$0xf]
      %v528 = vld [vmem:[%s165 + $0x10] sm:$0xf]
      %v529 = vld [vmem:[%s165 + $0x14] sm:$0xf]
      %v530 = vld [vmem:[%s165 + $0x18] sm:$0xf]
      %v531 = vld [vmem:[%s165 + $0x1c] sm:$0xf]
      %v532 = vld [vmem:[%s165 + $0x20] sm:$0xf]
      %v533 = vld [vmem:[%s165 + $0x24] sm:$0xf]
      %v534 = vld [vmem:[%s165 + $0x28] sm:$0xf]
      %v535 = vld [vmem:[%s165 + $0x2c] sm:$0xf]
      %v536 = vld [vmem:[%s165 + $0x30] sm:$0x3]
      %s537 = scalar_lea.vmem %s1, 64
      %v538 = vld [vmem:[%s537] sm:$0xf]
      %v539 = vld [vmem:[%s537 + $0x4] sm:$0xf]
      %v540 = vld [vmem:[%s537 + $0x8] sm:$0xf]
      %v541 = vld [vmem:[%s537 + $0xc] sm:$0xf]
      %v542 = vld [vmem:[%s537 + $0x10] sm:$0xf]
      %v543 = vld [vmem:[%s537 + $0x14] sm:$0xf]
      %v544 = vld [vmem:[%s537 + $0x18] sm:$0xf]
      %v545 = vld [vmem:[%s537 + $0x1c] sm:$0xf]
      %v558 = vunpack.c.l.b16 %v525
      %v559 = vunpack.c.l.b16 %v526
      %v560 = vunpack.c.l.b16 %v527
      %v561 = vunpack.c.l.b16 %v528
      %v562 = vunpack.c.l.b16 %v529
      %v563 = vunpack.c.l.b16 %v530
      %v564 = vunpack.c.l.b16 %v531
      %v565 = vunpack.c.l.b16 %v532
      %v566 = vunpack.c.l.b16 %v533
      %v567 = vunpack.c.l.b16 %v534
      %v568 = vunpack.c.l.b16 %v535
      %v569 = vunpack.c.l.b16 %v536
      %v570 = vpack.c.b16 %v559, %v558
      %v571 = vpack.c.b16 %v561, %v560
      %v572 = vpack.c.b16 %v563, %v562
      %v573 = vpack.c.b16 %v565, %v564
      %v574 = vpack.c.b16 %v567, %v566
      %v575 = vpack.c.b16 %v569, %v568
      %vm576 = vcmask 1046528
      %v577 = vrot.slane %v570, 1
      %v578 = vrot.slane %v571, 1
      %v579 = vsel %vm576, %v577, %v578
      %v580 = vrot.slane %v572, 1
      %v581 = vsel %vm576, %v578, %v580
      %v582 = vrot.slane %v573, 1
      %v583 = vsel %vm576, %v580, %v582
      %v584 = vrot.slane %v574, 1
      %v585 = vsel %vm576, %v582, %v584
      %v586 = vrot.slane %v575, 1
      %v587 = vsel %vm576, %v584, %v586
      %v596 = vunpack.c.l.b16 %v538
      %v597 = vunpack.c.l.b16 %v539
      %v598 = vunpack.c.l.b16 %v540
      %v599 = vunpack.c.l.b16 %v541
      %v600 = vunpack.c.l.b16 %v542
      %v601 = vunpack.c.l.b16 %v543
      %v602 = vunpack.c.l.b16 %v544
      %v603 = vunpack.c.l.b16 %v545
      %v604 = vpack.c.b16 %v597, %v596
      %v605 = vpack.c.b16 %v599, %v598
      %v606 = vpack.c.b16 %v601, %v600
      %v607 = vpack.c.b16 %v603, %v602
      %v613 = vsel %vm304, %v579, 0
      %v616 = vsel %vm304, %v581, 0
      %v619 = vsel %vm304, %v583, 0
      %v622 = vsel %vm304, %v585, 0
      %v625 = vsel %vm304, %v587, 0
      %v628 = vsel %vm304, %v586, 0
      %630 = vmatprep.subr.bf16.mxu0 0
      %631 = vmatpush1.bf16.msra.mxu0 0
      %632 = vmatprep.subr.bf16.mxu0 0
      %633 = vmatpush1.bf16.msra.mxu0 0
      %634 = vmatprep.subr.bf16.mxu0 0
      %635 = vmatpush1.bf16.msra.mxu0 0
      %636 = vmatprep.subr.bf16.mxu0 0
      %637 = vmatpush1.bf16.msra.mxu0 0
      %638 = vmatprep.subr.bf16.mxu0 0
      %639 = vmatpush1.bf16.msra.mxu0 %v607
      %640 = vmatprep.subr.bf16.mxu0 0
      %641 = vmatpush1.bf16.msra.mxu0 %v606
      %642 = vmatprep.subr.bf16.mxu0 0
      %643 = vmatpush1.bf16.msra.mxu0 %v605
      %644 = vmatprep.subr.bf16.mxu0 0
      %645 = vmatpush1.bf16.msra.mxu0 %v604
      %646 = vmatprep.subr.bf16.mxu0 0
      %647 = vmatpush2.bf16.msra.mxu0 0
      %648 = vmatprep.subr.bf16.mxu0 0
      %649 = vmatpush2.bf16.msra.mxu0 0
      %650 = vmatprep.subr.bf16.mxu0 0
      %651 = vmatpush2.bf16.msra.mxu0 0
      %652 = vmatprep.subr.bf16.mxu0 0
      %653 = vmatpush2.bf16.msra.mxu0 0
      %654 = vmatprep.subr.bf16.mxu0 0
      %655 = vmatpush2.bf16.msra.mxu0 0
      %656 = vmatprep.subr.bf16.mxu0 0
      %657 = vmatpush2.bf16.msra.mxu0 0
      %658 = vmatprep.subr.bf16.mxu0 0
      %659 = vmatpush2.bf16.msra.mxu0 0
      %660 = vmatprep.subr.bf16.mxu0 0
      %661 = vmatpush2.bf16.msra.mxu0 0
      %662 = vmatprep.mubr.bf16.mxu0 0
      %663 = vmatmul.mubr.bf16.gmra.mxu0 %v613
      %v664 = vpop.f32.mrf.mxu0
      %v665 = vadd.f32 0.0, %v664
      %v666 = vpop.f32.mrf.mxu0
      %v667 = vpop.f32.mrf.mxu0
      %v668 = vadd.f32 0.0, %v667
      %v669 = vpop.f32.mrf.mxu0
      %670 = vmatprep.mubr.bf16.mxu0 0
      %671 = vmatmul.mubr.bf16.gmra.mxu0 %v616
      %v672 = vpop.f32.mrf.mxu0
      %v673 = vadd.f32 0.0, %v672
      %v674 = vpop.f32.mrf.mxu0
      %v675 = vpop.f32.mrf.mxu0
      %v676 = vadd.f32 0.0, %v675
      %v677 = vpop.f32.mrf.mxu0
      %678 = vmatprep.mubr.bf16.mxu0 0
      %679 = vmatmul.mubr.bf16.gmra.mxu0 %v619
      %v680 = vpop.f32.mrf.mxu0
      %v681 = vadd.f32 0.0, %v680
      %v682 = vpop.f32.mrf.mxu0
      %v683 = vpop.f32.mrf.mxu0
      %v684 = vadd.f32 0.0, %v683
      %v685 = vpop.f32.mrf.mxu0
      %686 = vmatprep.mubr.bf16.mxu0 0
      %687 = vmatmul.mubr.bf16.gmra.mxu0 %v622
      %v688 = vpop.f32.mrf.mxu0
      %v689 = vadd.f32 0.0, %v688
      %v690 = vpop.f32.mrf.mxu0
      %v691 = vpop.f32.mrf.mxu0
      %v692 = vadd.f32 0.0, %v691
      %v693 = vpop.f32.mrf.mxu0
      %694 = vmatprep.mubr.bf16.mxu0 0
      %695 = vmatmul.mubr.bf16.gmra.mxu0 %v625
      %v696 = vpop.f32.mrf.mxu0
      %v697 = vadd.f32 0.0, %v696
      %v698 = vpop.f32.mrf.mxu0
      %v699 = vpop.f32.mrf.mxu0
      %v700 = vadd.f32 0.0, %v699
      %v701 = vpop.f32.mrf.mxu0
      %702 = vmatprep.mubr.bf16.mxu0 0
      %703 = vmatmul.mubr.bf16.gmra.mxu0 %v628
      %v704 = vpop.f32.mrf.mxu0
      %v705 = vadd.f32 0.0, %v704
      %v706 = vpop.f32.mrf.mxu0
      %v707 = vpop.f32.mrf.mxu0
      %v708 = vadd.f32 0.0, %v707
      %v709 = vpop.f32.mrf.mxu0
      %710 = vdwg.mxu0
      %v711 = vadd.f32 %v479, %v665
      %v712 = vadd.f32 %v482, %v668
      %v713 = vadd.f32 %v487, %v673
      %v714 = vadd.f32 %v490, %v676
      %v715 = vadd.f32 %v495, %v681
      %v716 = vadd.f32 %v498, %v684
      %v717 = vadd.f32 %v503, %v689
      %v718 = vadd.f32 %v506, %v692
      %v719 = vadd.f32 %v511, %v697
      %v720 = vadd.f32 %v514, %v700
      %v721 = vadd.f32 %v519, %v705
      %v722 = vadd.f32 %v522, %v708
      %v723 = vld [vmem:[%s165 + $0x30] sm:$0x7]
      %s724 = scalar_lea.vmem %s1, 96
      %v725 = vld [vmem:[%s724] sm:$0xf]
      %v726 = vld [vmem:[%s724 + $0x4] sm:$0xf]
      %v727 = vld [vmem:[%s724 + $0x8] sm:$0xf]
      %v728 = vld [vmem:[%s724 + $0xc] sm:$0xf]
      %v729 = vld [vmem:[%s724 + $0x10] sm:$0xf]
      %v730 = vld [vmem:[%s724 + $0x14] sm:$0xf]
      %v731 = vld [vmem:[%s724 + $0x18] sm:$0xf]
      %v732 = vld [vmem:[%s724 + $0x1c] sm:$0xf]
      %v734 = vunpack.c.l.b16 %v723
      %v735 = vpack.c.b16 %v734, %v568
      %vm736 = vsmask.f32 6400
      %v738 = vshrl.u32 %v570, 16
      %v740 = vrot.slane %v738, 1
      %v741 = vshll.u32 %v570, 16
      %v743 = vrot.slane %v741, 2
      %v744 = vor.u32 %v740, %v743
      %v746 = vshrl.u32 %v571, 16
      %v748 = vrot.slane %v746, 1
      %v749 = vshll.u32 %v571, 16
      %v751 = vrot.slane %v749, 2
      %v752 = vor.u32 %v748, %v751
      %v753 = vsel %vm736, %v744, %v752
      %v755 = vshrl.u32 %v572, 16
      %v757 = vrot.slane %v755, 1
      %v758 = vshll.u32 %v572, 16
      %v760 = vrot.slane %v758, 2
      %v761 = vor.u32 %v757, %v760
      %v762 = vsel %vm736, %v752, %v761
      %v764 = vshrl.u32 %v573, 16
      %v766 = vrot.slane %v764, 1
      %v767 = vshll.u32 %v573, 16
      %v769 = vrot.slane %v767, 2
      %v770 = vor.u32 %v766, %v769
      %v771 = vsel %vm736, %v761, %v770
      %v773 = vshrl.u32 %v574, 16
      %v775 = vrot.slane %v773, 1
      %v776 = vshll.u32 %v574, 16
      %v778 = vrot.slane %v776, 2
      %v779 = vor.u32 %v775, %v778
      %v780 = vsel %vm736, %v770, %v779
      %v782 = vshrl.u32 %v735, 16
      %v784 = vrot.slane %v782, 1
      %v785 = vshll.u32 %v735, 16
      %v787 = vrot.slane %v785, 2
      %v788 = vor.u32 %v784, %v787
      %v789 = vsel %vm736, %v779, %v788
      %v798 = vunpack.c.l.b16 %v725
      %v799 = vunpack.c.l.b16 %v726
      %v800 = vunpack.c.l.b16 %v727
      %v801 = vunpack.c.l.b16 %v728
      %v802 = vunpack.c.l.b16 %v729
      %v803 = vunpack.c.l.b16 %v730
      %v804 = vunpack.c.l.b16 %v731
      %v805 = vunpack.c.l.b16 %v732
      %v806 = vpack.c.b16 %v799, %v798
      %v807 = vpack.c.b16 %v801, %v800
      %v808 = vpack.c.b16 %v803, %v802
      %v809 = vpack.c.b16 %v805, %v804
      %v815 = vsel %vm304, %v753, 0
      %v818 = vsel %vm304, %v762, 0
      %v821 = vsel %vm304, %v771, 0
      %v824 = vsel %vm304, %v780, 0
      %v827 = vsel %vm304, %v789, 0
      %v830 = vsel %vm304, %v788, 0
      %832 = vmatprep.subr.bf16.mxu0 0
      %833 = vmatpush1.bf16.msra.mxu0 0
      %834 = vmatprep.subr.bf16.mxu0 0
      %835 = vmatpush1.bf16.msra.mxu0 0
      %836 = vmatprep.subr.bf16.mxu0 0
      %837 = vmatpush1.bf16.msra.mxu0 0
      %838 = vmatprep.subr.bf16.mxu0 0
      %839 = vmatpush1.bf16.msra.mxu0 0
      %840 = vmatprep.subr.bf16.mxu0 0
      %841 = vmatpush1.bf16.msra.mxu0 %v809
      %842 = vmatprep.subr.bf16.mxu0 0
      %843 = vmatpush1.bf16.msra.mxu0 %v808
      %844 = vmatprep.subr.bf16.mxu0 0
      %845 = vmatpush1.bf16.msra.mxu0 %v807
      %846 = vmatprep.subr.bf16.mxu0 0
      %847 = vmatpush1.bf16.msra.mxu0 %v806
      %848 = vmatprep.subr.bf16.mxu0 0
      %849 = vmatpush2.bf16.msra.mxu0 0
      %850 = vmatprep.subr.bf16.mxu0 0
      %851 = vmatpush2.bf16.msra.mxu0 0
      %852 = vmatprep.subr.bf16.mxu0 0
      %853 = vmatpush2.bf16.msra.mxu0 0
      %854 = vmatprep.subr.bf16.mxu0 0
      %855 = vmatpush2.bf16.msra.mxu0 0
      %856 = vmatprep.subr.bf16.mxu0 0
      %857 = vmatpush2.bf16.msra.mxu0 0
      %858 = vmatprep.subr.bf16.mxu0 0
      %859 = vmatpush2.bf16.msra.mxu0 0
      %860 = vmatprep.subr.bf16.mxu0 0
      %861 = vmatpush2.bf16.msra.mxu0 0
      %862 = vmatprep.subr.bf16.mxu0 0
      %863 = vmatpush2.bf16.msra.mxu0 0
      %864 = vmatprep.mubr.bf16.mxu0 0
      %865 = vmatmul.mubr.bf16.gmra.mxu0 %v815
      %v866 = vpop.f32.mrf.mxu0
      %v867 = vadd.f32 0.0, %v866
      %v868 = vpop.f32.mrf.mxu0
      %v869 = vpop.f32.mrf.mxu0
      %v870 = vadd.f32 0.0, %v869
      %v871 = vpop.f32.mrf.mxu0
      %872 = vmatprep.mubr.bf16.mxu0 0
      %873 = vmatmul.mubr.bf16.gmra.mxu0 %v818
      %v874 = vpop.f32.mrf.mxu0
      %v875 = vadd.f32 0.0, %v874
      %v876 = vpop.f32.mrf.mxu0
      %v877 = vpop.f32.mrf.mxu0
      %v878 = vadd.f32 0.0, %v877
      %v879 = vpop.f32.mrf.mxu0
      %880 = vmatprep.mubr.bf16.mxu0 0
      %881 = vmatmul.mubr.bf16.gmra.mxu0 %v821
      %v882 = vpop.f32.mrf.mxu0
      %v883 = vadd.f32 0.0, %v882
      %v884 = vpop.f32.mrf.mxu0
      %v885 = vpop.f32.mrf.mxu0
      %v886 = vadd.f32 0.0, %v885
      %v887 = vpop.f32.mrf.mxu0
      %888 = vmatprep.mubr.bf16.mxu0 0
      %889 = vmatmul.mubr.bf16.gmra.mxu0 %v824
      %v890 = vpop.f32.mrf.mxu0
      %v891 = vadd.f32 0.0, %v890
      %v892 = vpop.f32.mrf.mxu0
      %v893 = vpop.f32.mrf.mxu0
      %v894 = vadd.f32 0.0, %v893
      %v895 = vpop.f32.mrf.mxu0
      %896 = vmatprep.mubr.bf16.mxu0 0
      %897 = vmatmul.mubr.bf16.gmra.mxu0 %v827
      %v898 = vpop.f32.mrf.mxu0
      %v899 = vadd.f32 0.0, %v898
      %v900 = vpop.f32.mrf.mxu0
      %v901 = vpop.f32.mrf.mxu0
      %v902 = vadd.f32 0.0, %v901
      %v903 = vpop.f32.mrf.mxu0
      %904 = vmatprep.mubr.bf16.mxu0 0
      %905 = vmatmul.mubr.bf16.gmra.mxu0 %v830
      %v906 = vpop.f32.mrf.mxu0
      %v907 = vadd.f32 0.0, %v906
      %v908 = vpop.f32.mrf.mxu0
      %v909 = vpop.f32.mrf.mxu0
      %v910 = vadd.f32 0.0, %v909
      %v911 = vpop.f32.mrf.mxu0
      %912 = vdwg.mxu0
      %v913 = vadd.f32 %v711, %v867
      %v914 = vadd.f32 %v712, %v870
      %v915 = vadd.f32 %v713, %v875
      %v916 = vadd.f32 %v714, %v878
      %v917 = vadd.f32 %v715, %v883
      %v918 = vadd.f32 %v716, %v886
      %v919 = vadd.f32 %v717, %v891
      %v920 = vadd.f32 %v718, %v894
      %v921 = vadd.f32 %v719, %v899
      %v922 = vadd.f32 %v720, %v902
      %v923 = vadd.f32 %v721, %v907
      %v924 = vadd.f32 %v722, %v910
      %v925 = vld [vmem:[%s2] sm:$0x1]
      %v927 = vlaneseq
      %v928 = vshrl.u32 %v927, 7
      %v929 = vsub.s32 0, %v928
      %v930 = vrot.slane %v925, %v929
      %v932 = vadd.f32 %v913, %v930
      %v933 = vadd.f32 %v914, %v930
      %v934 = vadd.f32 %v915, %v930
      %v935 = vadd.f32 %v916, %v930
      %v936 = vadd.f32 %v917, %v930
      %v937 = vadd.f32 %v918, %v930
      %v938 = vadd.f32 %v919, %v930
      %v939 = vadd.f32 %v920, %v930
      %v940 = vadd.f32 %v921, %v930
      %v941 = vadd.f32 %v922, %v930
      %v942 = vadd.f32 %v923, %v930
      %v943 = vadd.f32 %v924, %v930
      %v944 = vmax.f32 %v932, 0.0
      %v945 = vmax.f32 %v933, 0.0
      %v946 = vmax.f32 %v934, 0.0
      %v947 = vmax.f32 %v935, 0.0
      %v948 = vmax.f32 %v936, 0.0
      %v949 = vmax.f32 %v937, 0.0
      %v950 = vmax.f32 %v938, 0.0
      %v951 = vmax.f32 %v939, 0.0
      %v952 = vmax.f32 %v940, 0.0
      %v953 = vmax.f32 %v941, 0.0
      %v954 = vmax.f32 %v942, 0.0
      %v955 = vmax.f32 %v943, 0.0
      %v956 = vpack.c.bf16 %v945, %v944
      %v957 = vpack.c.bf16 %v947, %v946
      %v958 = vpack.c.bf16 %v949, %v948
      %v959 = vpack.c.bf16 %v951, %v950
      %v960 = vpack.c.bf16 %v953, %v952
      %v961 = vpack.c.bf16 %v955, %v954
      %v968 = vunpack.c.l.b16 %v956
      %v969 = vunpack.c.h.b16 %v956
      %v970 = vunpack.c.l.b16 %v957
      %v971 = vunpack.c.h.b16 %v957
      %v972 = vunpack.c.l.b16 %v958
      %v973 = vunpack.c.h.b16 %v958
      %v974 = vunpack.c.l.b16 %v959
      %v975 = vunpack.c.h.b16 %v959
      %v976 = vunpack.c.l.b16 %v960
      %v977 = vunpack.c.h.b16 %v960
      %v978 = vunpack.c.l.b16 %v961
      %v979 = vunpack.c.h.b16 %v961
      %v980 = vpack.c.b16 %v968, %v968
      %v981 = vpack.c.b16 %v969, %v969
      %v982 = vpack.c.b16 %v970, %v970
      %v983 = vpack.c.b16 %v971, %v971
      %v984 = vpack.c.b16 %v972, %v972
      %v985 = vpack.c.b16 %v973, %v973
      %v986 = vpack.c.b16 %v974, %v974
      %v987 = vpack.c.b16 %v975, %v975
      %v988 = vpack.c.b16 %v976, %v976
      %v989 = vpack.c.b16 %v977, %v977
      %v990 = vpack.c.b16 %v978, %v978
      %v991 = vpack.c.b16 %v979, %v979
      %vm1004 = vcmask 257024
      %1005 = vst.msk [vmem:[%s170] sm:$0xf] %vm1004, %v980
      %1006 = vst.msk [vmem:[%s170 + $0x4] sm:$0xf] %vm1004, %v981
      %1007 = vst.msk [vmem:[%s170 + $0x8] sm:$0xf] %vm1004, %v982
      %1008 = vst.msk [vmem:[%s170 + $0xc] sm:$0xf] %vm1004, %v983
      %1009 = vst.msk [vmem:[%s170 + $0x10] sm:$0xf] %vm1004, %v984
      %1010 = vst.msk [vmem:[%s170 + $0x14] sm:$0xf] %vm1004, %v985
      %1011 = vst.msk [vmem:[%s170 + $0x18] sm:$0xf] %vm1004, %v986
      %1012 = vst.msk [vmem:[%s170 + $0x1c] sm:$0xf] %vm1004, %v987
      %1013 = vst.msk [vmem:[%s170 + $0x20] sm:$0xf] %vm1004, %v988
      %1014 = vst.msk [vmem:[%s170 + $0x24] sm:$0xf] %vm1004, %v989
      %1015 = vst.msk [vmem:[%s170 + $0x28] sm:$0xf] %vm1004, %v990
      %vm1016 = vcmask 253952
      %1017 = vst.msk [vmem:[%s170 + $0x2c] sm:$0x1] %vm1016, %v991
      %p1018 = scmp.lt.s32.totalorder %s14, 1
      %s1019 = scalar_select %p1018, %s14, 1
      %s1020 = smul.addr %s1019, 12
      %s1021 = smul.addr %s1020, 4
      %s1022 = scalar_lea.vmem %s3, %s1021
      // Predicated region
      $region33: #{cnn_model_forward.4} parent=31 // pred_check
        %p1023 = pneg %p100
      $region34: #{cnn_model_forward.4} parent=31 // pred_check_branch
        %1025 = sbr.rel (%p1023) target = $region36
      $region35: #{cnn_model_forward.4} parent=31 // pred_region
        _
      $region36: #{cnn_model_forward.4} parent=31 // pred_fallthru
        _
    $region32: #{cnn_model_forward.4} parent=5 // pred_fallthru
      _
    %p1026 = scmp.le.s32.totalorder 2, %s9
    // Predicated region
    $region37: #{cnn_model_forward.4} parent=5 // pred_check
      %p1027 = pneg %p1026
    $region38: #{cnn_model_forward.4} parent=5 // pred_check_branch
      %1029 = sbr.rel (%p1027) target = $region40
    $region39: #{cnn_model_forward.4} parent=5 // pred_region
      %s1030 = ssub.s32 %s9, 2
      // Predicated region
      $region41: #{cnn_model_forward.4} parent=39 // pred_check
        %p1031 = pneg %p106
      $region42: #{cnn_model_forward.4} parent=39 // pred_check_branch
        %1033 = sbr.rel (%p1031) target = $region44
      $region43: #{cnn_model_forward.4} parent=39 // pred_region
        %p1034 = scmp.lt.s32.totalorder %s15, 1
        %s1035 = scalar_select %p1034, %s15, 1
        %s1036 = smul.addr %s1035, 12
        %s1037 = smul.addr %s1036, 4
        %s1038 = scalar_lea.vmem %s3, %s1037
      $region44: #{cnn_model_forward.4} parent=39 // pred_fallthru
        _
    $region40: #{cnn_model_forward.4} parent=5 // pred_fallthru
      _
  $region6: #{cnn_model_forward.4} parent=0 // loop_footer
    %s13 = sadd.s32 1, %s9
  $region7: #{cnn_model_forward.4} parent=0 // loop_footer_branch
    %8 = sbr.rel target = $region3
  $region8: #{cnn_model_forward.4} parent=0 // loop_exit
    _

// kernel: cnn_model_forward.5
$region0: #{cnn_model_forward.5}
  #allocation0 [shape = 'u32[]', space=smem, size = 0x4, offset = 0x4, fixed_abs, tag = 'smem constant byte address 0x4 - core index']
  #allocation1 [shape = 'u32[144,128]{1,0:T(1,128)}', space=vmem, size = 0x12000, scoped, tag = 'internal scratch']
  %s0 = inlined_call_operand.vmem [shape: bf16[2,2592], index: 0, kind: input, shape index: {}]
  %s1 = inlined_call_operand.vmem [shape: bf16[2592,256], index: 1, kind: input, shape index: {}]
  %s2 = inlined_call_operand.vmem [shape: f32[1,256], index: 2, kind: input, shape index: {}]
  %s3 = inlined_call_operand.vmem [shape: bf16[256,64], index: 3, kind: input, shape index: {}]
  %s4 = inlined_call_operand.vmem [shape: f32[1,64], index: 4, kind: input, shape index: {}]
  %s5 = inlined_call_operand.vmem [shape: bf16[64,4], index: 5, kind: input, shape index: {}]
  %s6 = inlined_call_operand.vmem [shape: f32[1,4], index: 6, kind: input, shape index: {}]
  %s7 = inlined_call_operand.hbm [shape: f32[2,4], index: 7, kind: output, shape index: {}]
  %s8 = sld [smem:[#allocation0]]
  $region38: #{cnn_model_forward.5} parent=0
    _
  %s10 = ssub.s32 1, %s8
  %s11 = scalar_select 0, %s10, %s8
  $region1: #{cnn_model_forward.5} parent=0
    #allocation2 [shape = 'u8[1024]{0}', space=vmem, size = 0x400, scoped, tag = 'output window, operand 0, single buffered']
    #allocation3 [shape = 's32[1]{0}', space=sflag, size = 0x4, scoped, tag = 'scoped memory for cnn_model_forward.5']
    %12 = vsyncpa [#allocation3], 0
    // Predicated region
    $region2: #{cnn_model_forward.5} parent=1 // pred_check
      _
    $region3: #{cnn_model_forward.5} parent=1 // pred_check_branch
      %14 = sbr.rel (0) target = $region5
    $region4: #{cnn_model_forward.5} parent=1 // pred_region
      _
    $region5: #{cnn_model_forward.5} parent=1 // pred_fallthru
      _
    // Predicated region
    $region6: #{cnn_model_forward.5} parent=1 // pred_check
      _
    $region7: #{cnn_model_forward.5} parent=1 // pred_check_branch
      %16 = sbr.rel (0) target = $region9
    $region8: #{cnn_model_forward.5} parent=1 // pred_region
      _
    $region9: #{cnn_model_forward.5} parent=1 // pred_fallthru
      _
    // Predicated region
    $region10: #{cnn_model_forward.5} parent=1 // pred_check
      _
    $region11: #{cnn_model_forward.5} parent=1 // pred_check_branch
      %18 = sbr.rel (0) target = $region13
    $region12: #{cnn_model_forward.5} parent=1 // pred_region
      _
    $region13: #{cnn_model_forward.5} parent=1 // pred_fallthru
      _
    // Predicated region
    $region14: #{cnn_model_forward.5} parent=1 // pred_check
      _
    $region15: #{cnn_model_forward.5} parent=1 // pred_check_branch
      %20 = sbr.rel (0) target = $region17
    $region16: #{cnn_model_forward.5} parent=1 // pred_region
      _
    $region17: #{cnn_model_forward.5} parent=1 // pred_fallthru
      _
    // Predicated region
    $region18: #{cnn_model_forward.5} parent=1 // pred_check
      _
    $region19: #{cnn_model_forward.5} parent=1 // pred_check_branch
      %22 = sbr.rel (0) target = $region21
    $region20: #{cnn_model_forward.5} parent=1 // pred_region
      _
    $region21: #{cnn_model_forward.5} parent=1 // pred_fallthru
      _
    // Predicated region
    $region22: #{cnn_model_forward.5} parent=1 // pred_check
      _
    $region23: #{cnn_model_forward.5} parent=1 // pred_check_branch
      %24 = sbr.rel (0) target = $region25
    $region24: #{cnn_model_forward.5} parent=1 // pred_region
      _
    $region25: #{cnn_model_forward.5} parent=1 // pred_fallthru
      _
    // Predicated region
    $region26: #{cnn_model_forward.5} parent=1 // pred_check
      _
    $region27: #{cnn_model_forward.5} parent=1 // pred_check_branch
      %26 = sbr.rel (0) target = $region29
    $region28: #{cnn_model_forward.5} parent=1 // pred_region
      _
    $region29: #{cnn_model_forward.5} parent=1 // pred_fallthru
      _
    %v28 = vld [vmem:[%s0] sm:$0xff]
    %v29 = vld [vmem:[%s0 + $0x8] sm:$0xff]
    %v30 = vld [vmem:[%s0 + $0x10] sm:$0x1f]
    %v31 = vld [vmem:[%s1] sm:$0xff]
    %v32 = vld [vmem:[%s1 + $0x8] sm:$0xff]
    %v33 = vld [vmem:[%s1 + $0x10] sm:$0xff]
    %v34 = vld [vmem:[%s1 + $0x18] sm:$0xff]
    %v35 = vld [vmem:[%s1 + $0x20] sm:$0xff]
    %v36 = vld [vmem:[%s1 + $0x28] sm:$0xff]
    %v37 = vld [vmem:[%s1 + $0x30] sm:$0xff]
    %v38 = vld [vmem:[%s1 + $0x38] sm:$0xff]
    %v39 = vld [vmem:[%s1 + $0x40] sm:$0xff]
    %v40 = vld [vmem:[%s1 + $0x48] sm:$0xff]
    %v41 = vld [vmem:[%s1 + $0x50] sm:$0xff]
    %v42 = vld [vmem:[%s1 + $0x58] sm:$0xff]
    %v43 = vld [vmem:[%s1 + $0x60] sm:$0xff]
    %v44 = vld [vmem:[%s1 + $0x68] sm:$0xff]
    %v45 = vld [vmem:[%s1 + $0x70] sm:$0xff]
    %v46 = vld [vmem:[%s1 + $0x78] sm:$0xff]
    %v47 = vld [vmem:[%s1 + $0x80] sm:$0xff]
    %v48 = vld [vmem:[%s1 + $0x88] sm:$0xff]
    %v49 = vld [vmem:[%s1 + $0x90] sm:$0xff]
    %v50 = vld [vmem:[%s1 + $0x98] sm:$0xff]
    %v51 = vld [vmem:[%s1 + $0xa0] sm:$0xff]
    %v52 = vld [vmem:[%s1 + $0xa8] sm:$0xff]
    %v53 = vld [vmem:[%s1 + $0xb0] sm:$0xff]
    %v54 = vld [vmem:[%s1 + $0xb8] sm:$0xff]
    %v55 = vld [vmem:[%s1 + $0xc0] sm:$0xff]
    %v56 = vld [vmem:[%s1 + $0xc8] sm:$0xff]
    %v57 = vld [vmem:[%s1 + $0xd0] sm:$0xff]
    %v58 = vld [vmem:[%s1 + $0xd8] sm:$0xff]
    %v59 = vld [vmem:[%s1 + $0xe0] sm:$0xff]
    %v60 = vld [vmem:[%s1 + $0xe8] sm:$0xff]
    %v61 = vld [vmem:[%s1 + $0xf0] sm:$0xff]
    %v62 = vld [vmem:[%s1 + $0xf8] sm:$0xff]
    %v63 = vld [vmem:[%s1 + $0x100] sm:$0xff]
    %v64 = vld [vmem:[%s1 + $0x108] sm:$0xff]
    %v65 = vld [vmem:[%s1 + $0x110] sm:$0xff]
    %v66 = vld [vmem:[%s1 + $0x118] sm:$0xff]
    %v67 = vld [vmem:[%s1 + $0x120] sm:$0xff]
    %v68 = vld [vmem:[%s1 + $0x128] sm:$0xff]
    %v69 = vld [vmem:[%s1 + $0x130] sm:$0xff]
    %v70 = vld [vmem:[%s1 + $0x138] sm:$0xff]
    %v71 = vld [vmem:[%s1 + $0x140] sm:$0xff]
    %v72 = vld [vmem:[%s1 + $0x148] sm:$0xff]
    %v73 = vld [vmem:[%s1 + $0x150] sm:$0xff]
    %v74 = vld [vmem:[%s1 + $0x158] sm:$0xff]
    %v75 = vld [vmem:[%s1 + $0x160] sm:$0xff]
    %v76 = vld [vmem:[%s1 + $0x168] sm:$0xff]
    %v77 = vld [vmem:[%s1 + $0x170] sm:$0xff]
    %v78 = vld [vmem:[%s1 + $0x178] sm:$0xff]
    %v79 = vld [vmem:[%s1 + $0x180] sm:$0xff]
    %v80 = vld [vmem:[%s1 + $0x188] sm:$0xff]
    %v81 = vld [vmem:[%s1 + $0x190] sm:$0xff]
    %v82 = vld [vmem:[%s1 + $0x198] sm:$0xff]
    %v83 = vld [vmem:[%s1 + $0x1a0] sm:$0xff]
    %v84 = vld [vmem:[%s1 + $0x1a8] sm:$0xff]
    %v85 = vld [vmem:[%s1 + $0x1b0] sm:$0xff]
    %v86 = vld [vmem:[%s1 + $0x1b8] sm:$0xff]
    %v87 = vld [vmem:[%s1 + $0x1c0] sm:$0xff]
    %v88 = vld [vmem:[%s1 + $0x1c8] sm:$0xff]
    %v89 = vld [vmem:[%s1 + $0x1d0] sm:$0xff]
    %v90 = vld [vmem:[%s1 + $0x1d8] sm:$0xff]
    %v91 = vld [vmem:[%s1 + $0x1e0] sm:$0xff]
    %v92 = vld [vmem:[%s1 + $0x1e8] sm:$0xff]
    %v93 = vld [vmem:[%s1 + $0x1f0] sm:$0xff]
    %v94 = vld [vmem:[%s1 + $0x1f8] sm:$0xff]
    %v95 = vld [vmem:[%s1 + $0x200] sm:$0xff]
    %v96 = vld [vmem:[%s1 + $0x208] sm:$0xff]
    %v97 = vld [vmem:[%s1 + $0x210] sm:$0xff]
    %v98 = vld [vmem:[%s1 + $0x218] sm:$0xff]
    %v99 = vld [vmem:[%s1 + $0x220] sm:$0xff]
    %v100 = vld [vmem:[%s1 + $0x228] sm:$0xff]
    %v101 = vld [vmem:[%s1 + $0x230] sm:$0xff]
    %v102 = vld [vmem:[%s1 + $0x238] sm:$0xff]
    %v103 = vld [vmem:[%s1 + $0x240] sm:$0xff]
    %v104 = vld [vmem:[%s1 + $0x248] sm:$0xff]
    %v105 = vld [vmem:[%s1 + $0x250] sm:$0xff]
    %v106 = vld [vmem:[%s1 + $0x258] sm:$0xff]
    %v107 = vld [vmem:[%s1 + $0x260] sm:$0xff]
    %v108 = vld [vmem:[%s1 + $0x268] sm:$0xff]
    %v109 = vld [vmem:[%s1 + $0x270] sm:$0xff]
    %v110 = vld [vmem:[%s1 + $0x278] sm:$0xff]
    %v111 = vld [vmem:[%s1 + $0x280] sm:$0xff]
    %v112 = vld [vmem:[%s1 + $0x288] sm:$0xff]
    %v113 = vld [vmem:[%s1 + $0x290] sm:$0xff]
    %v114 = vld [vmem:[%s1 + $0x298] sm:$0xff]
    %v115 = vld [vmem:[%s1 + $0x2a0] sm:$0xff]
    %v116 = vld [vmem:[%s1 + $0x2a8] sm:$0xff]
    %v117 = vld [vmem:[%s1 + $0x2b0] sm:$0xff]
    %v118 = vld [vmem:[%s1 + $0x2b8] sm:$0xff]
    %v119 = vld [vmem:[%s1 + $0x2c0] sm:$0xff]
    %v120 = vld [vmem:[%s1 + $0x2c8] sm:$0xff]
    %v121 = vld [vmem:[%s1 + $0x2d0] sm:$0xff]
    %v122 = vld [vmem:[%s1 + $0x2d8] sm:$0xff]
    %v123 = vld [vmem:[%s1 + $0x2e0] sm:$0xff]
    %v124 = vld [vmem:[%s1 + $0x2e8] sm:$0xff]
    %v125 = vld [vmem:[%s1 + $0x2f0] sm:$0xff]
    %v126 = vld [vmem:[%s1 + $0x2f8] sm:$0xff]
    %v127 = vld [vmem:[%s1 + $0x300] sm:$0xff]
    %v128 = vld [vmem:[%s1 + $0x308] sm:$0xff]
    %v129 = vld [vmem:[%s1 + $0x310] sm:$0xff]
    %v130 = vld [vmem:[%s1 + $0x318] sm:$0xff]
    %v131 = vld [vmem:[%s1 + $0x320] sm:$0xff]
    %v132 = vld [vmem:[%s1 + $0x328] sm:$0xff]
    %v133 = vld [vmem:[%s1 + $0x330] sm:$0xff]
    %v134 = vld [vmem:[%s1 + $0x338] sm:$0xff]
    %v135 = vld [vmem:[%s1 + $0x340] sm:$0xff]
    %v136 = vld [vmem:[%s1 + $0x348] sm:$0xff]
    %v137 = vld [vmem:[%s1 + $0x350] sm:$0xff]
    %v138 = vld [vmem:[%s1 + $0x358] sm:$0xff]
    %v139 = vld [vmem:[%s1 + $0x360] sm:$0xff]
    %v140 = vld [vmem:[%s1 + $0x368] sm:$0xff]
    %v141 = vld [vmem:[%s1 + $0x370] sm:$0xff]
    %v142 = vld [vmem:[%s1 + $0x378] sm:$0xff]
    %v143 = vld [vmem:[%s1 + $0x380] sm:$0xff]
    %v144 = vld [vmem:[%s1 + $0x388] sm:$0xff]
    %v145 = vld [vmem:[%s1 + $0x390] sm:$0xff]
    %v146 = vld [vmem:[%s1 + $0x398] sm:$0xff]
    %v147 = vld [vmem:[%s1 + $0x3a0] sm:$0xff]
    %v148 = vld [vmem:[%s1 + $0x3a8] sm:$0xff]
    %v149 = vld [vmem:[%s1 + $0x3b0] sm:$0xff]
    %v150 = vld [vmem:[%s1 + $0x3b8] sm:$0xff]
    %v151 = vld [vmem:[%s1 + $0x3c0] sm:$0xff]
    %v152 = vld [vmem:[%s1 + $0x3c8] sm:$0xff]
    %v153 = vld [vmem:[%s1 + $0x3d0] sm:$0xff]
    %v154 = vld [vmem:[%s1 + $0x3d8] sm:$0xff]
    %v155 = vld [vmem:[%s1 + $0x3e0] sm:$0xff]
    %v156 = vld [vmem:[%s1 + $0x3e8] sm:$0xff]
    %v157 = vld [vmem:[%s1 + $0x3f0] sm:$0xff]
    %v158 = vld [vmem:[%s1 + $0x3f8] sm:$0xff]
    %v159 = vld [vmem:[%s1 + $0x400] sm:$0xff]
    %v160 = vld [vmem:[%s1 + $0x408] sm:$0xff]
    %v161 = vld [vmem:[%s1 + $0x410] sm:$0xff]
    %v162 = vld [vmem:[%s1 + $0x418] sm:$0xff]
    %v163 = vld [vmem:[%s1 + $0x420] sm:$0xff]
    %v164 = vld [vmem:[%s1 + $0x428] sm:$0xff]
    %v165 = vld [vmem:[%s1 + $0x430] sm:$0xff]
    %v166 = vld [vmem:[%s1 + $0x438] sm:$0xff]
    %v167 = vld [vmem:[%s1 + $0x440] sm:$0xff]
    %v168 = vld [vmem:[%s1 + $0x448] sm:$0xff]
    %v169 = vld [vmem:[%s1 + $0x450] sm:$0xff]
    %v170 = vld [vmem:[%s1 + $0x458] sm:$0xff]
    %v171 = vld [vmem:[%s1 + $0x460] sm:$0xff]
    %v172 = vld [vmem:[%s1 + $0x468] sm:$0xff]
    %v173 = vld [vmem:[%s1 + $0x470] sm:$0xff]
    %v174 = vld [vmem:[%s1 + $0x478] sm:$0xff]
    %v175 = vld [vmem:[%s1 + $0x480] sm:$0xff]
    %v176 = vld [vmem:[%s1 + $0x488] sm:$0xff]
    %v177 = vld [vmem:[%s1 + $0x490] sm:$0xff]
    %v178 = vld [vmem:[%s1 + $0x498] sm:$0xff]
    %v179 = vld [vmem:[%s1 + $0x4a0] sm:$0xff]
    %v180 = vld [vmem:[%s1 + $0x4a8] sm:$0xff]
    %v181 = vld [vmem:[%s1 + $0x4b0] sm:$0xff]
    %v182 = vld [vmem:[%s1 + $0x4b8] sm:$0xff]
    %v183 = vld [vmem:[%s1 + $0x4c0] sm:$0xff]
    %v184 = vld [vmem:[%s1 + $0x4c8] sm:$0xff]
    %v185 = vld [vmem:[%s1 + $0x4d0] sm:$0xff]
    %v186 = vld [vmem:[%s1 + $0x4d8] sm:$0xff]
    %v187 = vld [vmem:[%s1 + $0x4e0] sm:$0xff]
    %v188 = vld [vmem:[%s1 + $0x4e8] sm:$0xff]
    %v189 = vld [vmem:[%s1 + $0x4f0] sm:$0xff]
    %v190 = vld [vmem:[%s1 + $0x4f8] sm:$0xff]
    %v191 = vld [vmem:[%s1 + $0x500] sm:$0xff]
    %v192 = vld [vmem:[%s1 + $0x508] sm:$0xff]
    %v193 = vld [vmem:[%s1 + $0x510] sm:$0xff]
    %v194 = vld [vmem:[%s1 + $0x518] sm:$0xff]
    %v195 = vld [vmem:[%s1 + $0x520] sm:$0xff]
    %v196 = vld [vmem:[%s1 + $0x528] sm:$0xff]
    %v197 = vld [vmem:[%s1 + $0x530] sm:$0xff]
    %v198 = vld [vmem:[%s1 + $0x538] sm:$0xff]
    %v199 = vld [vmem:[%s1 + $0x540] sm:$0xff]
    %v200 = vld [vmem:[%s1 + $0x548] sm:$0xff]
    %v201 = vld [vmem:[%s1 + $0x550] sm:$0xff]
    %v202 = vld [vmem:[%s1 + $0x558] sm:$0xff]
    %v203 = vld [vmem:[%s1 + $0x560] sm:$0xff]
    %v204 = vld [vmem:[%s1 + $0x568] sm:$0xff]
    %v205 = vld [vmem:[%s1 + $0x570] sm:$0xff]
    %v206 = vld [vmem:[%s1 + $0x578] sm:$0xff]
    %v207 = vld [vmem:[%s1 + $0x580] sm:$0xff]
    %v208 = vld [vmem:[%s1 + $0x588] sm:$0xff]
    %v209 = vld [vmem:[%s1 + $0x590] sm:$0xff]
    %v210 = vld [vmem:[%s1 + $0x598] sm:$0xff]
    %v211 = vld [vmem:[%s1 + $0x5a0] sm:$0xff]
    %v212 = vld [vmem:[%s1 + $0x5a8] sm:$0xff]
    %v213 = vld [vmem:[%s1 + $0x5b0] sm:$0xff]
    %v214 = vld [vmem:[%s1 + $0x5b8] sm:$0xff]
    %v215 = vld [vmem:[%s1 + $0x5c0] sm:$0xff]
    %v216 = vld [vmem:[%s1 + $0x5c8] sm:$0xff]
    %v217 = vld [vmem:[%s1 + $0x5d0] sm:$0xff]
    %v218 = vld [vmem:[%s1 + $0x5d8] sm:$0xff]
    %v219 = vld [vmem:[%s1 + $0x5e0] sm:$0xff]
    %v220 = vld [vmem:[%s1 + $0x5e8] sm:$0xff]
    %v221 = vld [vmem:[%s1 + $0x5f0] sm:$0xff]
    %v222 = vld [vmem:[%s1 + $0x5f8] sm:$0xff]
    %v223 = vld [vmem:[%s1 + $0x600] sm:$0xff]
    %v224 = vld [vmem:[%s1 + $0x608] sm:$0xff]
    %v225 = vld [vmem:[%s1 + $0x610] sm:$0xff]
    %v226 = vld [vmem:[%s1 + $0x618] sm:$0xff]
    %v227 = vld [vmem:[%s1 + $0x620] sm:$0xff]
    %v228 = vld [vmem:[%s1 + $0x628] sm:$0xff]
    %v229 = vld [vmem:[%s1 + $0x630] sm:$0xff]
    %v230 = vld [vmem:[%s1 + $0x638] sm:$0xff]
    %v231 = vld [vmem:[%s1 + $0x640] sm:$0xff]
    %v232 = vld [vmem:[%s1 + $0x648] sm:$0xff]
    %v233 = vld [vmem:[%s1 + $0x650] sm:$0xff]
    %v234 = vld [vmem:[%s1 + $0x658] sm:$0xff]
    %v235 = vld [vmem:[%s1 + $0x660] sm:$0xff]
    %v236 = vld [vmem:[%s1 + $0x668] sm:$0xff]
    %v237 = vld [vmem:[%s1 + $0x670] sm:$0xff]
    %v238 = vld [vmem:[%s1 + $0x678] sm:$0xff]
    %v239 = vld [vmem:[%s1 + $0x680] sm:$0xff]
    %v240 = vld [vmem:[%s1 + $0x688] sm:$0xff]
    %v241 = vld [vmem:[%s1 + $0x690] sm:$0xff]
    %v242 = vld [vmem:[%s1 + $0x698] sm:$0xff]
    %v243 = vld [vmem:[%s1 + $0x6a0] sm:$0xff]
    %v244 = vld [vmem:[%s1 + $0x6a8] sm:$0xff]
    %v245 = vld [vmem:[%s1 + $0x6b0] sm:$0xff]
    %v246 = vld [vmem:[%s1 + $0x6b8] sm:$0xff]
    %v247 = vld [vmem:[%s1 + $0x6c0] sm:$0xff]
    %v248 = vld [vmem:[%s1 + $0x6c8] sm:$0xff]
    %v249 = vld [vmem:[%s1 + $0x6d0] sm:$0xff]
    %v250 = vld [vmem:[%s1 + $0x6d8] sm:$0xff]
    %v251 = vld [vmem:[%s1 + $0x6e0] sm:$0xff]
    %v252 = vld [vmem:[%s1 + $0x6e8] sm:$0xff]
    %v253 = vld [vmem:[%s1 + $0x6f0] sm:$0xff]
    %v254 = vld [vmem:[%s1 + $0x6f8] sm:$0xff]
    %v255 = vld [vmem:[%s1 + $0x700] sm:$0xff]
    %v256 = vld [vmem:[%s1 + $0x708] sm:$0xff]
    %v257 = vld [vmem:[%s1 + $0x710] sm:$0xff]
    %v258 = vld [vmem:[%s1 + $0x718] sm:$0xff]
    %v259 = vld [vmem:[%s1 + $0x720] sm:$0xff]
    %v260 = vld [vmem:[%s1 + $0x728] sm:$0xff]
    %v261 = vld [vmem:[%s1 + $0x730] sm:$0xff]
    %v262 = vld [vmem:[%s1 + $0x738] sm:$0xff]
    %v263 = vld [vmem:[%s1 + $0x740] sm:$0xff]
    %v264 = vld [vmem:[%s1 + $0x748] sm:$0xff]
    %v265 = vld [vmem:[%s1 + $0x750] sm:$0xff]
    %v266 = vld [vmem:[%s1 + $0x758] sm:$0xff]
    %v267 = vld [vmem:[%s1 + $0x760] sm:$0xff]
    %v268 = vld [vmem:[%s1 + $0x768] sm:$0xff]
    %v269 = vld [vmem:[%s1 + $0x770] sm:$0xff]
    %v270 = vld [vmem:[%s1 + $0x778] sm:$0xff]
    %v271 = vld [vmem:[%s1 + $0x780] sm:$0xff]
    %v272 = vld [vmem:[%s1 + $0x788] sm:$0xff]
    %v273 = vld [vmem:[%s1 + $0x790] sm:$0xff]
    %v274 = vld [vmem:[%s1 + $0x798] sm:$0xff]
    %v275 = vld [vmem:[%s1 + $0x7a0] sm:$0xff]
    %v276 = vld [vmem:[%s1 + $0x7a8] sm:$0xff]
    %v277 = vld [vmem:[%s1 + $0x7b0] sm:$0xff]
    %v278 = vld [vmem:[%s1 + $0x7b8] sm:$0xff]
    %v279 = vld [vmem:[%s1 + $0x7c0] sm:$0xff]
    %v280 = vld [vmem:[%s1 + $0x7c8] sm:$0xff]
    %v281 = vld [vmem:[%s1 + $0x7d0] sm:$0xff]
    %v282 = vld [vmem:[%s1 + $0x7d8] sm:$0xff]
    %v283 = vld [vmem:[%s1 + $0x7e0] sm:$0xff]
    %v284 = vld [vmem:[%s1 + $0x7e8] sm:$0xff]
    %v285 = vld [vmem:[%s1 + $0x7f0] sm:$0xff]
    %v286 = vld [vmem:[%s1 + $0x7f8] sm:$0xff]
    %v287 = vld [vmem:[%s1 + $0x800] sm:$0xff]
    %v288 = vld [vmem:[%s1 + $0x808] sm:$0xff]
    %v289 = vld [vmem:[%s1 + $0x810] sm:$0xff]
    %v290 = vld [vmem:[%s1 + $0x818] sm:$0xff]
    %v291 = vld [vmem:[%s1 + $0x820] sm:$0xff]
    %v292 = vld [vmem:[%s1 + $0x828] sm:$0xff]
    %v293 = vld [vmem:[%s1 + $0x830] sm:$0xff]
    %v294 = vld [vmem:[%s1 + $0x838] sm:$0xff]
    %v295 = vld [vmem:[%s1 + $0x840] sm:$0xff]
    %v296 = vld [vmem:[%s1 + $0x848] sm:$0xff]
    %v297 = vld [vmem:[%s1 + $0x850] sm:$0xff]
    %v298 = vld [vmem:[%s1 + $0x858] sm:$0xff]
    %v299 = vld [vmem:[%s1 + $0x860] sm:$0xff]
    %v300 = vld [vmem:[%s1 + $0x868] sm:$0xff]
    %v301 = vld [vmem:[%s1 + $0x870] sm:$0xff]
    %v302 = vld [vmem:[%s1 + $0x878] sm:$0xff]
    %v303 = vld [vmem:[%s1 + $0x880] sm:$0xff]
    %v304 = vld [vmem:[%s1 + $0x888] sm:$0xff]
    %v305 = vld [vmem:[%s1 + $0x890] sm:$0xff]
    %v306 = vld [vmem:[%s1 + $0x898] sm:$0xff]
    %v307 = vld [vmem:[%s1 + $0x8a0] sm:$0xff]
    %v308 = vld [vmem:[%s1 + $0x8a8] sm:$0xff]
    %v309 = vld [vmem:[%s1 + $0x8b0] sm:$0xff]
    %v310 = vld [vmem:[%s1 + $0x8b8] sm:$0xff]
    %v311 = vld [vmem:[%s1 + $0x8c0] sm:$0xff]
    %v312 = vld [vmem:[%s1 + $0x8c8] sm:$0xff]
    %v313 = vld [vmem:[%s1 + $0x8d0] sm:$0xff]
    %v314 = vld [vmem:[%s1 + $0x8d8] sm:$0xff]
    %v315 = vld [vmem:[%s1 + $0x8e0] sm:$0xff]
    %v316 = vld [vmem:[%s1 + $0x8e8] sm:$0xff]
    %v317 = vld [vmem:[%s1 + $0x8f0] sm:$0xff]
    %v318 = vld [vmem:[%s1 + $0x8f8] sm:$0xff]
    %v319 = vld [vmem:[%s1 + $0x900] sm:$0xff]
    %v320 = vld [vmem:[%s1 + $0x908] sm:$0xff]
    %v321 = vld [vmem:[%s1 + $0x910] sm:$0xff]
    %v322 = vld [vmem:[%s1 + $0x918] sm:$0xff]
    %v323 = vld [vmem:[%s1 + $0x920] sm:$0xff]
    %v324 = vld [vmem:[%s1 + $0x928] sm:$0xff]
    %v325 = vld [vmem:[%s1 + $0x930] sm:$0xff]
    %v326 = vld [vmem:[%s1 + $0x938] sm:$0xff]
    %v327 = vld [vmem:[%s1 + $0x940] sm:$0xff]
    %v328 = vld [vmem:[%s1 + $0x948] sm:$0xff]
    %v329 = vld [vmem:[%s1 + $0x950] sm:$0xff]
    %v330 = vld [vmem:[%s1 + $0x958] sm:$0xff]
    %v331 = vld [vmem:[%s1 + $0x960] sm:$0xff]
    %v332 = vld [vmem:[%s1 + $0x968] sm:$0xff]
    %v333 = vld [vmem:[%s1 + $0x970] sm:$0xff]
    %v334 = vld [vmem:[%s1 + $0x978] sm:$0xff]
    %v335 = vld [vmem:[%s1 + $0x980] sm:$0xff]
    %v336 = vld [vmem:[%s1 + $0x988] sm:$0xff]
    %v337 = vld [vmem:[%s1 + $0x990] sm:$0xff]
    %v338 = vld [vmem:[%s1 + $0x998] sm:$0xff]
    %v339 = vld [vmem:[%s1 + $0x9a0] sm:$0xff]
    %v340 = vld [vmem:[%s1 + $0x9a8] sm:$0xff]
    %v341 = vld [vmem:[%s1 + $0x9b0] sm:$0xff]
    %v342 = vld [vmem:[%s1 + $0x9b8] sm:$0xff]
    %v343 = vld [vmem:[%s1 + $0x9c0] sm:$0xff]
    %v344 = vld [vmem:[%s1 + $0x9c8] sm:$0xff]
    %v345 = vld [vmem:[%s1 + $0x9d0] sm:$0xff]
    %v346 = vld [vmem:[%s1 + $0x9d8] sm:$0xff]
    %v347 = vld [vmem:[%s1 + $0x9e0] sm:$0xff]
    %v348 = vld [vmem:[%s1 + $0x9e8] sm:$0xff]
    %v349 = vld [vmem:[%s1 + $0x9f0] sm:$0xff]
    %v350 = vld [vmem:[%s1 + $0x9f8] sm:$0xff]
    %v351 = vld [vmem:[%s1 + $0xa00] sm:$0xff]
    %v352 = vld [vmem:[%s1 + $0xa08] sm:$0xff]
    %v353 = vld [vmem:[%s1 + $0xa10] sm:$0xff]
    %v354 = vld [vmem:[%s1 + $0xa18] sm:$0xff]
    %v355 = vld [vmem:[%s2] sm:$0x3]
    %v357 = vlaneseq
    %v358 = vshrl.u32 %v357, 7
    %v359 = vsub.s32 0, %v358
    %v360 = vrot.slane %v355, %v359
    %v361 = vlaneseq
    %v362 = vshrl.u32 %v361, 7
    %v363 = vsub.s32 1, %v362
    %v364 = vrot.slane %v355, %v363
    %v370 = vcombine.high %v28, %v28
    %v372 = vunpack.c.l.s4 1966171168
    %v373 = vunpack.c.0.s8 %v372
    %v374 = vlaneseq
    %v375 = vshrl.u32 %v374, 7
    %v376 = vsub.s32 %v373, %v375
    %v377 = vrot.slane %v28, %v376
    %v379 = vunpack.c.l.s4 1966171168
    %v380 = vunpack.c.0.s8 %v379
    %v381 = vlaneseq
    %v382 = vshrl.u32 %v381, 7
    %v383 = vsub.s32 %v380, %v382
    %v384 = vrot.slane %v370, %v383
    %v385 = vcombine.high %v377, %v377
    %v386 = vcombine.high %v384, %v384
    %v388 = vunpack.c.l.s4 1966171168
    %v389 = vunpack.c.0.s8 %v388
    %v390 = vlaneseq
    %v391 = vshrl.u32 %v390, 7
    %v392 = vsub.s32 %v389, %v391
    %v393 = vrot.slane %v377, %v392
    %v395 = vunpack.c.l.s4 1966171168
    %v396 = vunpack.c.0.s8 %v395
    %v397 = vlaneseq
    %v398 = vshrl.u32 %v397, 7
    %v399 = vsub.s32 %v396, %v398
    %v400 = vrot.slane %v384, %v399
    %v402 = vunpack.c.l.s4 1966171168
    %v403 = vunpack.c.0.s8 %v402
    %v404 = vlaneseq
    %v405 = vshrl.u32 %v404, 7
    %v406 = vsub.s32 %v403, %v405
    %v407 = vrot.slane %v385, %v406
    %v409 = vunpack.c.l.s4 1966171168
    %v410 = vunpack.c.0.s8 %v409
    %v411 = vlaneseq
    %v412 = vshrl.u32 %v411, 7
    %v413 = vsub.s32 %v410, %v412
    %v414 = vrot.slane %v386, %v413
    %v415 = vcombine.high %v393, %v393
    %v416 = vcombine.high %v400, %v400
    %v417 = vcombine.high %v407, %v407
    %v418 = vcombine.high %v414, %v414
    %v419 = vcombine.high %v29, %v29
    %v421 = vunpack.c.l.s4 1966171168
    %v422 = vunpack.c.0.s8 %v421
    %v423 = vlaneseq
    %v424 = vshrl.u32 %v423, 7
    %v425 = vsub.s32 %v422, %v424
    %v426 = vrot.slane %v29, %v425
    %v428 = vunpack.c.l.s4 1966171168
    %v429 = vunpack.c.0.s8 %v428
    %v430 = vlaneseq
    %v431 = vshrl.u32 %v430, 7
    %v432 = vsub.s32 %v429, %v431
    %v433 = vrot.slane %v419, %v432
    %v434 = vcombine.high %v426, %v426
    %v435 = vcombine.high %v433, %v433
    %v437 = vunpack.c.l.s4 1966171168
    %v438 = vunpack.c.0.s8 %v437
    %v439 = vlaneseq
    %v440 = vshrl.u32 %v439, 7
    %v441 = vsub.s32 %v438, %v440
    %v442 = vrot.slane %v426, %v441
    %v444 = vunpack.c.l.s4 1966171168
    %v445 = vunpack.c.0.s8 %v444
    %v446 = vlaneseq
    %v447 = vshrl.u32 %v446, 7
    %v448 = vsub.s32 %v445, %v447
    %v449 = vrot.slane %v433, %v448
    %v451 = vunpack.c.l.s4 1966171168
    %v452 = vunpack.c.0.s8 %v451
    %v453 = vlaneseq
    %v454 = vshrl.u32 %v453, 7
    %v455 = vsub.s32 %v452, %v454
    %v456 = vrot.slane %v434, %v455
    %v458 = vunpack.c.l.s4 1966171168
    %v459 = vunpack.c.0.s8 %v458
    %v460 = vlaneseq
    %v461 = vshrl.u32 %v460, 7
    %v462 = vsub.s32 %v459, %v461
    %v463 = vrot.slane %v435, %v462
    %v464 = vcombine.high %v442, %v442
    %v465 = vcombine.high %v449, %v449
    %v466 = vcombine.high %v456, %v456
    %v467 = vcombine.high %v463, %v463
    %v468 = vcombine.high %v30, %v30
    %v470 = vunpack.c.l.s4 1966171168
    %v471 = vunpack.c.0.s8 %v470
    %v472 = vlaneseq
    %v473 = vshrl.u32 %v472, 7
    %v474 = vsub.s32 %v471, %v473
    %v475 = vrot.slane %v30, %v474
    %v477 = vunpack.c.l.s4 1966171168
    %v478 = vunpack.c.0.s8 %v477
    %v479 = vlaneseq
    %v480 = vshrl.u32 %v479, 7
    %v481 = vsub.s32 %v478, %v480
    %v482 = vrot.slane %v468, %v481
    %v483 = vcombine.high %v475, %v475
    %v485 = vunpack.c.l.s4 1966171168
    %v486 = vunpack.c.0.s8 %v485
    %v487 = vlaneseq
    %v488 = vshrl.u32 %v487, 7
    %v489 = vsub.s32 %v486, %v488
    %v490 = vrot.slane %v475, %v489
    %v492 = vunpack.c.l.s4 1966171168
    %v493 = vunpack.c.0.s8 %v492
    %v494 = vlaneseq
    %v495 = vshrl.u32 %v494, 7
    %v496 = vsub.s32 %v493, %v495
    %v497 = vrot.slane %v482, %v496
    %v499 = vunpack.c.l.s4 1966171168
    %v500 = vunpack.c.0.s8 %v499
    %v501 = vlaneseq
    %v502 = vshrl.u32 %v501, 7
    %v503 = vsub.s32 %v500, %v502
    %v504 = vrot.slane %v483, %v503
    %v505 = vcombine.high %v490, %v490
    %v506 = vcombine.high %v504, %v504
    %v851 = vunpack.c.l.b16 %v31
    %v852 = vunpack.c.h.b16 %v31
    %v853 = vunpack.c.l.b16 %v32
    %v854 = vunpack.c.h.b16 %v32
    %v855 = vunpack.c.l.b16 %v33
    %v856 = vunpack.c.h.b16 %v33
    %v857 = vunpack.c.l.b16 %v34
    %v858 = vunpack.c.h.b16 %v34
    %v859 = vunpack.c.l.b16 %v35
    %v860 = vunpack.c.h.b16 %v35
    %v861 = vunpack.c.l.b16 %v36
    %v862 = vunpack.c.h.b16 %v36
    %v863 = vunpack.c.l.b16 %v37
    %v864 = vunpack.c.h.b16 %v37
    %v865 = vunpack.c.l.b16 %v38
    %v866 = vunpack.c.h.b16 %v38
    %v867 = vunpack.c.l.b16 %v39
    %v868 = vunpack.c.h.b16 %v39
    %v869 = vunpack.c.l.b16 %v40
    %v870 = vunpack.c.h.b16 %v40
    %v871 = vunpack.c.l.b16 %v41
    %v872 = vunpack.c.h.b16 %v41
    %v873 = vunpack.c.l.b16 %v42
    %v874 = vunpack.c.h.b16 %v42
    %v875 = vunpack.c.l.b16 %v43
    %v876 = vunpack.c.h.b16 %v43
    %v877 = vunpack.c.l.b16 %v44
    %v878 = vunpack.c.h.b16 %v44
    %v879 = vunpack.c.l.b16 %v45
    %v880 = vunpack.c.h.b16 %v45
    %v881 = vunpack.c.l.b16 %v46
    %v882 = vunpack.c.h.b16 %v46
    %v883 = vunpack.c.l.b16 %v47
    %v884 = vunpack.c.h.b16 %v47
    %v885 = vunpack.c.l.b16 %v48
    %v886 = vunpack.c.h.b16 %v48
    %v887 = vunpack.c.l.b16 %v49
    %v888 = vunpack.c.h.b16 %v49
    %v889 = vunpack.c.l.b16 %v50
    %v890 = vunpack.c.h.b16 %v50
    %v891 = vunpack.c.l.b16 %v51
    %v892 = vunpack.c.h.b16 %v51
    %v893 = vunpack.c.l.b16 %v52
    %v894 = vunpack.c.h.b16 %v52
    %v895 = vunpack.c.l.b16 %v53
    %v896 = vunpack.c.h.b16 %v53
    %v897 = vunpack.c.l.b16 %v54
    %v898 = vunpack.c.h.b16 %v54
    %v899 = vunpack.c.l.b16 %v55
    %v900 = vunpack.c.h.b16 %v55
    %v901 = vunpack.c.l.b16 %v56
    %v902 = vunpack.c.h.b16 %v56
    %v903 = vunpack.c.l.b16 %v57
    %v904 = vunpack.c.h.b16 %v57
    %v905 = vunpack.c.l.b16 %v58
    %v906 = vunpack.c.h.b16 %v58
    %v907 = vunpack.c.l.b16 %v59
    %v908 = vunpack.c.h.b16 %v59
    %v909 = vunpack.c.l.b16 %v60
    %v910 = vunpack.c.h.b16 %v60
    %v911 = vunpack.c.l.b16 %v61
    %v912 = vunpack.c.h.b16 %v61
    %v913 = vunpack.c.l.b16 %v62
    %v914 = vunpack.c.h.b16 %v62
    %v915 = vunpack.c.l.b16 %v63
    %v916 = vunpack.c.h.b16 %v63
    %v917 = vunpack.c.l.b16 %v64
    %v918 = vunpack.c.h.b16 %v64
    %v919 = vunpack.c.l.b16 %v65
    %v920 = vunpack.c.h.b16 %v65
    %v921 = vunpack.c.l.b16 %v66
    %v922 = vunpack.c.h.b16 %v66
    %v923 = vunpack.c.l.b16 %v67
    %v924 = vunpack.c.h.b16 %v67
    %v925 = vunpack.c.l.b16 %v68
    %v926 = vunpack.c.h.b16 %v68
    %v927 = vunpack.c.l.b16 %v69
    %v928 = vunpack.c.h.b16 %v69
    %v929 = vunpack.c.l.b16 %v70
    %v930 = vunpack.c.h.b16 %v70
    %v931 = vunpack.c.l.b16 %v71
    %v932 = vunpack.c.h.b16 %v71
    %v933 = vunpack.c.l.b16 %v72
    %v934 = vunpack.c.h.b16 %v72
    %v935 = vunpack.c.l.b16 %v73
    %v936 = vunpack.c.h.b16 %v73
    %v937 = vunpack.c.l.b16 %v74
    %v938 = vunpack.c.h.b16 %v74
    %v939 = vunpack.c.l.b16 %v75
    %v940 = vunpack.c.h.b16 %v75
    %v941 = vunpack.c.l.b16 %v76
    %v942 = vunpack.c.h.b16 %v76
    %v943 = vunpack.c.l.b16 %v77
    %v944 = vunpack.c.h.b16 %v77
    %v945 = vunpack.c.l.b16 %v78
    %v946 = vunpack.c.h.b16 %v78
    %v947 = vunpack.c.l.b16 %v79
    %v948 = vunpack.c.h.b16 %v79
    %v949 = vunpack.c.l.b16 %v80
    %v950 = vunpack.c.h.b16 %v80
    %v951 = vunpack.c.l.b16 %v81
    %v952 = vunpack.c.h.b16 %v81
    %v953 = vunpack.c.l.b16 %v82
    %v954 = vunpack.c.h.b16 %v82
    %v955 = vunpack.c.l.b16 %v83
    %v956 = vunpack.c.h.b16 %v83
    %v957 = vunpack.c.l.b16 %v84
    %v958 = vunpack.c.h.b16 %v84
    %v959 = vunpack.c.l.b16 %v85
    %v960 = vunpack.c.h.b16 %v85
    %v961 = vunpack.c.l.b16 %v86
    %v962 = vunpack.c.h.b16 %v86
    %v963 = vunpack.c.l.b16 %v87
    %v964 = vunpack.c.h.b16 %v87
    %v965 = vunpack.c.l.b16 %v88
    %v966 = vunpack.c.h.b16 %v88
    %v967 = vunpack.c.l.b16 %v89
    %v968 = vunpack.c.h.b16 %v89
    %v969 = vunpack.c.l.b16 %v90
    %v970 = vunpack.c.h.b16 %v90
    %v971 = vunpack.c.l.b16 %v91
    %v972 = vunpack.c.h.b16 %v91
    %v973 = vunpack.c.l.b16 %v92
    %v974 = vunpack.c.h.b16 %v92
    %v975 = vunpack.c.l.b16 %v93
    %v976 = vunpack.c.h.b16 %v93
    %v977 = vunpack.c.l.b16 %v94
    %v978 = vunpack.c.h.b16 %v94
    %v979 = vunpack.c.l.b16 %v95
    %v980 = vunpack.c.h.b16 %v95
    %v981 = vunpack.c.l.b16 %v96
    %v982 = vunpack.c.h.b16 %v96
    %v983 = vunpack.c.l.b16 %v97
    %v984 = vunpack.c.h.b16 %v97
    %v985 = vunpack.c.l.b16 %v98
    %v986 = vunpack.c.h.b16 %v98
    %v987 = vunpack.c.l.b16 %v99
    %v988 = vunpack.c.h.b16 %v99
    %v989 = vunpack.c.l.b16 %v100
    %v990 = vunpack.c.h.b16 %v100
    %v991 = vunpack.c.l.b16 %v101
    %v992 = vunpack.c.h.b16 %v101
    %v993 = vunpack.c.l.b16 %v102
    %v994 = vunpack.c.h.b16 %v102
    %v995 = vunpack.c.l.b16 %v103
    %v996 = vunpack.c.h.b16 %v103
    %v997 = vunpack.c.l.b16 %v104
    %v998 = vunpack.c.h.b16 %v104
    %v999 = vunpack.c.l.b16 %v105
    %v1000 = vunpack.c.h.b16 %v105
    %v1001 = vunpack.c.l.b16 %v106
    %v1002 = vunpack.c.h.b16 %v106
    %v1003 = vunpack.c.l.b16 %v107
    %v1004 = vunpack.c.h.b16 %v107
    %v1005 = vunpack.c.l.b16 %v108
    %v1006 = vunpack.c.h.b16 %v108
    %v1007 = vunpack.c.l.b16 %v109
    %v1008 = vunpack.c.h.b16 %v109
    %v1009 = vunpack.c.l.b16 %v110
    %v1010 = vunpack.c.h.b16 %v110
    %v1011 = vunpack.c.l.b16 %v111
    %v1012 = vunpack.c.h.b16 %v111
    %v1013 = vunpack.c.l.b16 %v112
    %v1014 = vunpack.c.h.b16 %v112
    %v1015 = vunpack.c.l.b16 %v113
    %v1016 = vunpack.c.h.b16 %v113
    %v1017 = vunpack.c.l.b16 %v114
    %v1018 = vunpack.c.h.b16 %v114
    %v1019 = vunpack.c.l.b16 %v115
    %v1020 = vunpack.c.h.b16 %v115
    %v1021 = vunpack.c.l.b16 %v116
    %v1022 = vunpack.c.h.b16 %v116
    %v1023 = vunpack.c.l.b16 %v117
    %v1024 = vunpack.c.h.b16 %v117
    %v1025 = vunpack.c.l.b16 %v118
    %v1026 = vunpack.c.h.b16 %v118
    %v1027 = vunpack.c.l.b16 %v119
    %v1028 = vunpack.c.h.b16 %v119
    %v1029 = vunpack.c.l.b16 %v120
    %v1030 = vunpack.c.h.b16 %v120
    %v1031 = vunpack.c.l.b16 %v121
    %v1032 = vunpack.c.h.b16 %v121
    %v1033 = vunpack.c.l.b16 %v122
    %v1034 = vunpack.c.h.b16 %v122
    %v1035 = vunpack.c.l.b16 %v123
    %v1036 = vunpack.c.h.b16 %v123
    %v1037 = vunpack.c.l.b16 %v124
    %v1038 = vunpack.c.h.b16 %v124
    %v1039 = vunpack.c.l.b16 %v125
    %v1040 = vunpack.c.h.b16 %v125
    %v1041 = vunpack.c.l.b16 %v126
    %v1042 = vunpack.c.h.b16 %v126
    %v1043 = vunpack.c.l.b16 %v127
    %v1044 = vunpack.c.h.b16 %v127
    %v1045 = vunpack.c.l.b16 %v128
    %v1046 = vunpack.c.h.b16 %v128
    %v1047 = vunpack.c.l.b16 %v129
    %v1048 = vunpack.c.h.b16 %v129
    %v1049 = vunpack.c.l.b16 %v130
    %v1050 = vunpack.c.h.b16 %v130
    %v1051 = vunpack.c.l.b16 %v131
    %v1052 = vunpack.c.h.b16 %v131
    %v1053 = vunpack.c.l.b16 %v132
    %v1054 = vunpack.c.h.b16 %v132
    %v1055 = vunpack.c.l.b16 %v133
    %v1056 = vunpack.c.h.b16 %v133
    %v1057 = vunpack.c.l.b16 %v134
    %v1058 = vunpack.c.h.b16 %v134
    %v1059 = vunpack.c.l.b16 %v135
    %v1060 = vunpack.c.h.b16 %v135
    %v1061 = vunpack.c.l.b16 %v136
    %v1062 = vunpack.c.h.b16 %v136
    %v1063 = vunpack.c.l.b16 %v137
    %v1064 = vunpack.c.h.b16 %v137
    %v1065 = vunpack.c.l.b16 %v138
    %v1066 = vunpack.c.h.b16 %v138
    %v1067 = vunpack.c.l.b16 %v139
    %v1068 = vunpack.c.h.b16 %v139
    %v1069 = vunpack.c.l.b16 %v140
    %v1070 = vunpack.c.h.b16 %v140
    %v1071 = vunpack.c.l.b16 %v141
    %v1072 = vunpack.c.h.b16 %v141
    %v1073 = vunpack.c.l.b16 %v142
    %v1074 = vunpack.c.h.b16 %v142
    %v1075 = vunpack.c.l.b16 %v143
    %v1076 = vunpack.c.h.b16 %v143
    %v1077 = vunpack.c.l.b16 %v144
    %v1078 = vunpack.c.h.b16 %v144
    %v1079 = vunpack.c.l.b16 %v145
    %v1080 = vunpack.c.h.b16 %v145
    %v1081 = vunpack.c.l.b16 %v146
    %v1082 = vunpack.c.h.b16 %v146
    %v1083 = vunpack.c.l.b16 %v147
    %v1084 = vunpack.c.h.b16 %v147
    %v1085 = vunpack.c.l.b16 %v148
    %v1086 = vunpack.c.h.b16 %v148
    %v1087 = vunpack.c.l.b16 %v149
    %v1088 = vunpack.c.h.b16 %v149
    %v1089 = vunpack.c.l.b16 %v150
    %v1090 = vunpack.c.h.b16 %v150
    %v1091 = vunpack.c.l.b16 %v151
    %v1092 = vunpack.c.h.b16 %v151
    %v1093 = vunpack.c.l.b16 %v152
    %v1094 = vunpack.c.h.b16 %v152
    %v1095 = vunpack.c.l.b16 %v153
    %v1096 = vunpack.c.h.b16 %v153
    %v1097 = vunpack.c.l.b16 %v154
    %v1098 = vunpack.c.h.b16 %v154
    %v1099 = vunpack.c.l.b16 %v155
    %v1100 = vunpack.c.h.b16 %v155
    %v1101 = vunpack.c.l.b16 %v156
    %v1102 = vunpack.c.h.b16 %v156
    %v1103 = vunpack.c.l.b16 %v157
    %v1104 = vunpack.c.h.b16 %v157
    %v1105 = vunpack.c.l.b16 %v158
    %v1106 = vunpack.c.h.b16 %v158
    %v1107 = vunpack.c.l.b16 %v159
    %v1108 = vunpack.c.h.b16 %v159
    %v1109 = vunpack.c.l.b16 %v160
    %v1110 = vunpack.c.h.b16 %v160
    %v1111 = vunpack.c.l.b16 %v161
    %v1112 = vunpack.c.h.b16 %v161
    %v1113 = vunpack.c.l.b16 %v162
    %v1114 = vunpack.c.h.b16 %v162
    %v1115 = vunpack.c.l.b16 %v163
    %v1116 = vunpack.c.h.b16 %v163
    %v1117 = vunpack.c.l.b16 %v164
    %v1118 = vunpack.c.h.b16 %v164
    %v1119 = vunpack.c.l.b16 %v165
    %v1120 = vunpack.c.h.b16 %v165
    %v1121 = vunpack.c.l.b16 %v166
    %v1122 = vunpack.c.h.b16 %v166
    %v1123 = vunpack.c.l.b16 %v167
    %v1124 = vunpack.c.h.b16 %v167
    %v1125 = vunpack.c.l.b16 %v168
    %v1126 = vunpack.c.h.b16 %v168
    %v1127 = vunpack.c.l.b16 %v169
    %v1128 = vunpack.c.h.b16 %v169
    %v1129 = vunpack.c.l.b16 %v170
    %v1130 = vunpack.c.h.b16 %v170
    %v1131 = vunpack.c.l.b16 %v171
    %v1132 = vunpack.c.h.b16 %v171
    %v1133 = vunpack.c.l.b16 %v172
    %v1134 = vunpack.c.h.b16 %v172
    %v1135 = vunpack.c.l.b16 %v173
    %v1136 = vunpack.c.h.b16 %v173
    %v1137 = vunpack.c.l.b16 %v174
    %v1138 = vunpack.c.h.b16 %v174
    %v1139 = vunpack.c.l.b16 %v175
    %v1140 = vunpack.c.h.b16 %v175
    %v1141 = vunpack.c.l.b16 %v176
    %v1142 = vunpack.c.h.b16 %v176
    %v1143 = vunpack.c.l.b16 %v177
    %v1144 = vunpack.c.h.b16 %v177
    %v1145 = vunpack.c.l.b16 %v178
    %v1146 = vunpack.c.h.b16 %v178
    %v1147 = vunpack.c.l.b16 %v179
    %v1148 = vunpack.c.h.b16 %v179
    %v1149 = vunpack.c.l.b16 %v180
    %v1150 = vunpack.c.h.b16 %v180
    %v1151 = vunpack.c.l.b16 %v181
    %v1152 = vunpack.c.h.b16 %v181
    %v1153 = vunpack.c.l.b16 %v182
    %v1154 = vunpack.c.h.b16 %v182
    %v1155 = vunpack.c.l.b16 %v183
    %v1156 = vunpack.c.h.b16 %v183
    %v1157 = vunpack.c.l.b16 %v184
    %v1158 = vunpack.c.h.b16 %v184
    %v1159 = vunpack.c.l.b16 %v185
    %v1160 = vunpack.c.h.b16 %v185
    %v1161 = vunpack.c.l.b16 %v186
    %v1162 = vunpack.c.h.b16 %v186
    %v1163 = vunpack.c.l.b16 %v187
    %v1164 = vunpack.c.h.b16 %v187
    %v1165 = vunpack.c.l.b16 %v188
    %v1166 = vunpack.c.h.b16 %v188
    %v1167 = vunpack.c.l.b16 %v189
    %v1168 = vunpack.c.h.b16 %v189
    %v1169 = vunpack.c.l.b16 %v190
    %v1170 = vunpack.c.h.b16 %v190
    %v1171 = vunpack.c.l.b16 %v191
    %v1172 = vunpack.c.h.b16 %v191
    %v1173 = vunpack.c.l.b16 %v192
    %v1174 = vunpack.c.h.b16 %v192
    %v1175 = vunpack.c.l.b16 %v193
    %v1176 = vunpack.c.h.b16 %v193
    %v1177 = vunpack.c.l.b16 %v194
    %v1178 = vunpack.c.h.b16 %v194
    %v1179 = vunpack.c.l.b16 %v195
    %v1180 = vunpack.c.h.b16 %v195
    %v1181 = vunpack.c.l.b16 %v196
    %v1182 = vunpack.c.h.b16 %v196
    %v1183 = vunpack.c.l.b16 %v197
    %v1184 = vunpack.c.h.b16 %v197
    %v1185 = vunpack.c.l.b16 %v198
    %v1186 = vunpack.c.h.b16 %v198
    %v1187 = vunpack.c.l.b16 %v199
    %v1188 = vunpack.c.h.b16 %v199
    %v1189 = vunpack.c.l.b16 %v200
    %v1190 = vunpack.c.h.b16 %v200
    %v1191 = vunpack.c.l.b16 %v201
    %v1192 = vunpack.c.h.b16 %v201
    %v1193 = vunpack.c.l.b16 %v202
    %v1194 = vunpack.c.h.b16 %v202
    %v1195 = vunpack.c.l.b16 %v203
    %v1196 = vunpack.c.h.b16 %v203
    %v1197 = vunpack.c.l.b16 %v204
    %v1198 = vunpack.c.h.b16 %v204
    %v1199 = vunpack.c.l.b16 %v205
    %v1200 = vunpack.c.h.b16 %v205
    %v1201 = vunpack.c.l.b16 %v206
    %v1202 = vunpack.c.h.b16 %v206
    %v1203 = vunpack.c.l.b16 %v207
    %v1204 = vunpack.c.h.b16 %v207
    %v1205 = vunpack.c.l.b16 %v208
    %v1206 = vunpack.c.h.b16 %v208
    %v1207 = vunpack.c.l.b16 %v209
    %v1208 = vunpack.c.h.b16 %v209
    %v1209 = vunpack.c.l.b16 %v210
    %v1210 = vunpack.c.h.b16 %v210
    %v1211 = vunpack.c.l.b16 %v211
    %v1212 = vunpack.c.h.b16 %v211
    %v1213 = vunpack.c.l.b16 %v212
    %v1214 = vunpack.c.h.b16 %v212
    %v1215 = vunpack.c.l.b16 %v213
    %v1216 = vunpack.c.h.b16 %v213
    %v1217 = vunpack.c.l.b16 %v214
    %v1218 = vunpack.c.h.b16 %v214
    %v1219 = vunpack.c.l.b16 %v215
    %v1220 = vunpack.c.h.b16 %v215
    %v1221 = vunpack.c.l.b16 %v216
    %v1222 = vunpack.c.h.b16 %v216
    %v1223 = vunpack.c.l.b16 %v217
    %v1224 = vunpack.c.h.b16 %v217
    %v1225 = vunpack.c.l.b16 %v218
    %v1226 = vunpack.c.h.b16 %v218
    %v1227 = vunpack.c.l.b16 %v219
    %v1228 = vunpack.c.h.b16 %v219
    %v1229 = vunpack.c.l.b16 %v220
    %v1230 = vunpack.c.h.b16 %v220
    %v1231 = vunpack.c.l.b16 %v221
    %v1232 = vunpack.c.h.b16 %v221
    %v1233 = vunpack.c.l.b16 %v222
    %v1234 = vunpack.c.h.b16 %v222
    %v1235 = vunpack.c.l.b16 %v223
    %v1236 = vunpack.c.h.b16 %v223
    %v1237 = vunpack.c.l.b16 %v224
    %v1238 = vunpack.c.h.b16 %v224
    %v1239 = vunpack.c.l.b16 %v225
    %v1240 = vunpack.c.h.b16 %v225
    %v1241 = vunpack.c.l.b16 %v226
    %v1242 = vunpack.c.h.b16 %v226
    %v1243 = vunpack.c.l.b16 %v227
    %v1244 = vunpack.c.h.b16 %v227
    %v1245 = vunpack.c.l.b16 %v228
    %v1246 = vunpack.c.h.b16 %v228
    %v1247 = vunpack.c.l.b16 %v229
    %v1248 = vunpack.c.h.b16 %v229
    %v1249 = vunpack.c.l.b16 %v230
    %v1250 = vunpack.c.h.b16 %v230
    %v1251 = vunpack.c.l.b16 %v231
    %v1252 = vunpack.c.h.b16 %v231
    %v1253 = vunpack.c.l.b16 %v232
    %v1254 = vunpack.c.h.b16 %v232
    %v1255 = vunpack.c.l.b16 %v233
    %v1256 = vunpack.c.h.b16 %v233
    %v1257 = vunpack.c.l.b16 %v234
    %v1258 = vunpack.c.h.b16 %v234
    %v1259 = vunpack.c.l.b16 %v235
    %v1260 = vunpack.c.h.b16 %v235
    %v1261 = vunpack.c.l.b16 %v236
    %v1262 = vunpack.c.h.b16 %v236
    %v1263 = vunpack.c.l.b16 %v237
    %v1264 = vunpack.c.h.b16 %v237
    %v1265 = vunpack.c.l.b16 %v238
    %v1266 = vunpack.c.h.b16 %v238
    %v1267 = vunpack.c.l.b16 %v239
    %v1268 = vunpack.c.h.b16 %v239
    %v1269 = vunpack.c.l.b16 %v240
    %v1270 = vunpack.c.h.b16 %v240
    %v1271 = vunpack.c.l.b16 %v241
    %v1272 = vunpack.c.h.b16 %v241
    %v1273 = vunpack.c.l.b16 %v242
    %v1274 = vunpack.c.h.b16 %v242
    %v1275 = vunpack.c.l.b16 %v243
    %v1276 = vunpack.c.h.b16 %v243
    %v1277 = vunpack.c.l.b16 %v244
    %v1278 = vunpack.c.h.b16 %v244
    %v1279 = vunpack.c.l.b16 %v245
    %v1280 = vunpack.c.h.b16 %v245
    %v1281 = vunpack.c.l.b16 %v246
    %v1282 = vunpack.c.h.b16 %v246
    %v1283 = vunpack.c.l.b16 %v247
    %v1284 = vunpack.c.h.b16 %v247
    %v1285 = vunpack.c.l.b16 %v248
    %v1286 = vunpack.c.h.b16 %v248
    %v1287 = vunpack.c.l.b16 %v249
    %v1288 = vunpack.c.h.b16 %v249
    %v1289 = vunpack.c.l.b16 %v250
    %v1290 = vunpack.c.h.b16 %v250
    %v1291 = vunpack.c.l.b16 %v251
    %v1292 = vunpack.c.h.b16 %v251
    %v1293 = vunpack.c.l.b16 %v252
    %v1294 = vunpack.c.h.b16 %v252
    %v1295 = vunpack.c.l.b16 %v253
    %v1296 = vunpack.c.h.b16 %v253
    %v1297 = vunpack.c.l.b16 %v254
    %v1298 = vunpack.c.h.b16 %v254
    %v1299 = vunpack.c.l.b16 %v255
    %v1300 = vunpack.c.h.b16 %v255
    %v1301 = vunpack.c.l.b16 %v256
    %v1302 = vunpack.c.h.b16 %v256
    %v1303 = vunpack.c.l.b16 %v257
    %v1304 = vunpack.c.h.b16 %v257
    %v1305 = vunpack.c.l.b16 %v258
    %v1306 = vunpack.c.h.b16 %v258
    %v1307 = vunpack.c.l.b16 %v259
    %v1308 = vunpack.c.h.b16 %v259
    %v1309 = vunpack.c.l.b16 %v260
    %v1310 = vunpack.c.h.b16 %v260
    %v1311 = vunpack.c.l.b16 %v261
    %v1312 = vunpack.c.h.b16 %v261
    %v1313 = vunpack.c.l.b16 %v262
    %v1314 = vunpack.c.h.b16 %v262
    %v1315 = vunpack.c.l.b16 %v263
    %v1316 = vunpack.c.h.b16 %v263
    %v1317 = vunpack.c.l.b16 %v264
    %v1318 = vunpack.c.h.b16 %v264
    %v1319 = vunpack.c.l.b16 %v265
    %v1320 = vunpack.c.h.b16 %v265
    %v1321 = vunpack.c.l.b16 %v266
    %v1322 = vunpack.c.h.b16 %v266
    %v1323 = vunpack.c.l.b16 %v267
    %v1324 = vunpack.c.h.b16 %v267
    %v1325 = vunpack.c.l.b16 %v268
    %v1326 = vunpack.c.h.b16 %v268
    %v1327 = vunpack.c.l.b16 %v269
    %v1328 = vunpack.c.h.b16 %v269
    %v1329 = vunpack.c.l.b16 %v270
    %v1330 = vunpack.c.h.b16 %v270
    %v1331 = vunpack.c.l.b16 %v271
    %v1332 = vunpack.c.h.b16 %v271
    %v1333 = vunpack.c.l.b16 %v272
    %v1334 = vunpack.c.h.b16 %v272
    %v1335 = vunpack.c.l.b16 %v273
    %v1336 = vunpack.c.h.b16 %v273
    %v1337 = vunpack.c.l.b16 %v274
    %v1338 = vunpack.c.h.b16 %v274
    %v1339 = vunpack.c.l.b16 %v275
    %v1340 = vunpack.c.h.b16 %v275
    %v1341 = vunpack.c.l.b16 %v276
    %v1342 = vunpack.c.h.b16 %v276
    %v1343 = vunpack.c.l.b16 %v277
    %v1344 = vunpack.c.h.b16 %v277
    %v1345 = vunpack.c.l.b16 %v278
    %v1346 = vunpack.c.h.b16 %v278
    %v1347 = vunpack.c.l.b16 %v279
    %v1348 = vunpack.c.h.b16 %v279
    %v1349 = vunpack.c.l.b16 %v280
    %v1350 = vunpack.c.h.b16 %v280
    %v1351 = vunpack.c.l.b16 %v281
    %v1352 = vunpack.c.h.b16 %v281
    %v1353 = vunpack.c.l.b16 %v282
    %v1354 = vunpack.c.h.b16 %v282
    %v1355 = vunpack.c.l.b16 %v283
    %v1356 = vunpack.c.h.b16 %v283
    %v1357 = vunpack.c.l.b16 %v284
    %v1358 = vunpack.c.h.b16 %v284
    %v1359 = vunpack.c.l.b16 %v285
    %v1360 = vunpack.c.h.b16 %v285
    %v1361 = vunpack.c.l.b16 %v286
    %v1362 = vunpack.c.h.b16 %v286
    %v1363 = vunpack.c.l.b16 %v287
    %v1364 = vunpack.c.h.b16 %v287
    %v1365 = vunpack.c.l.b16 %v288
    %v1366 = vunpack.c.h.b16 %v288
    %v1367 = vunpack.c.l.b16 %v289
    %v1368 = vunpack.c.h.b16 %v289
    %v1369 = vunpack.c.l.b16 %v290
    %v1370 = vunpack.c.h.b16 %v290
    %v1371 = vunpack.c.l.b16 %v291
    %v1372 = vunpack.c.h.b16 %v291
    %v1373 = vunpack.c.l.b16 %v292
    %v1374 = vunpack.c.h.b16 %v292
    %v1375 = vunpack.c.l.b16 %v293
    %v1376 = vunpack.c.h.b16 %v293
    %v1377 = vunpack.c.l.b16 %v294
    %v1378 = vunpack.c.h.b16 %v294
    %v1379 = vunpack.c.l.b16 %v295
    %v1380 = vunpack.c.h.b16 %v295
    %v1381 = vunpack.c.l.b16 %v296
    %v1382 = vunpack.c.h.b16 %v296
    %v1383 = vunpack.c.l.b16 %v297
    %v1384 = vunpack.c.h.b16 %v297
    %v1385 = vunpack.c.l.b16 %v298
    %v1386 = vunpack.c.h.b16 %v298
    %v1387 = vunpack.c.l.b16 %v299
    %v1388 = vunpack.c.h.b16 %v299
    %v1389 = vunpack.c.l.b16 %v300
    %v1390 = vunpack.c.h.b16 %v300
    %v1391 = vunpack.c.l.b16 %v301
    %v1392 = vunpack.c.h.b16 %v301
    %v1393 = vunpack.c.l.b16 %v302
    %v1394 = vunpack.c.h.b16 %v302
    %v1395 = vunpack.c.l.b16 %v303
    %v1396 = vunpack.c.h.b16 %v303
    %v1397 = vunpack.c.l.b16 %v304
    %v1398 = vunpack.c.h.b16 %v304
    %v1399 = vunpack.c.l.b16 %v305
    %v1400 = vunpack.c.h.b16 %v305
    %v1401 = vunpack.c.l.b16 %v306
    %v1402 = vunpack.c.h.b16 %v306
    %v1403 = vunpack.c.l.b16 %v307
    %v1404 = vunpack.c.h.b16 %v307
    %v1405 = vunpack.c.l.b16 %v308
    %v1406 = vunpack.c.h.b16 %v308
    %v1407 = vunpack.c.l.b16 %v309
    %v1408 = vunpack.c.h.b16 %v309
    %v1409 = vunpack.c.l.b16 %v310
    %v1410 = vunpack.c.h.b16 %v310
    %v1411 = vunpack.c.l.b16 %v311
    %v1412 = vunpack.c.h.b16 %v311
    %v1413 = vunpack.c.l.b16 %v312
    %v1414 = vunpack.c.h.b16 %v312
    %v1415 = vunpack.c.l.b16 %v313
    %v1416 = vunpack.c.h.b16 %v313
    %v1417 = vunpack.c.l.b16 %v314
    %v1418 = vunpack.c.h.b16 %v314
    %v1419 = vunpack.c.l.b16 %v315
    %v1420 = vunpack.c.h.b16 %v315
    %v1421 = vunpack.c.l.b16 %v316
    %v1422 = vunpack.c.h.b16 %v316
    %v1423 = vunpack.c.l.b16 %v317
    %v1424 = vunpack.c.h.b16 %v317
    %v1425 = vunpack.c.l.b16 %v318
    %v1426 = vunpack.c.h.b16 %v318
    %v1427 = vunpack.c.l.b16 %v319
    %v1428 = vunpack.c.h.b16 %v319
    %v1429 = vunpack.c.l.b16 %v320
    %v1430 = vunpack.c.h.b16 %v320
    %v1431 = vunpack.c.l.b16 %v321
    %v1432 = vunpack.c.h.b16 %v321
    %v1433 = vunpack.c.l.b16 %v322
    %v1434 = vunpack.c.h.b16 %v322
    %v1435 = vunpack.c.l.b16 %v323
    %v1436 = vunpack.c.h.b16 %v323
    %v1437 = vunpack.c.l.b16 %v324
    %v1438 = vunpack.c.h.b16 %v324
    %v1439 = vunpack.c.l.b16 %v325
    %v1440 = vunpack.c.h.b16 %v325
    %v1441 = vunpack.c.l.b16 %v326
    %v1442 = vunpack.c.h.b16 %v326
    %v1443 = vunpack.c.l.b16 %v327
    %v1444 = vunpack.c.h.b16 %v327
    %v1445 = vunpack.c.l.b16 %v328
    %v1446 = vunpack.c.h.b16 %v328
    %v1447 = vunpack.c.l.b16 %v329
    %v1448 = vunpack.c.h.b16 %v329
    %v1449 = vunpack.c.l.b16 %v330
    %v1450 = vunpack.c.h.b16 %v330
    %v1451 = vunpack.c.l.b16 %v331
    %v1452 = vunpack.c.h.b16 %v331
    %v1453 = vunpack.c.l.b16 %v332
    %v1454 = vunpack.c.h.b16 %v332
    %v1455 = vunpack.c.l.b16 %v333
    %v1456 = vunpack.c.h.b16 %v333
    %v1457 = vunpack.c.l.b16 %v334
    %v1458 = vunpack.c.h.b16 %v334
    %v1459 = vunpack.c.l.b16 %v335
    %v1460 = vunpack.c.h.b16 %v335
    %v1461 = vunpack.c.l.b16 %v336
    %v1462 = vunpack.c.h.b16 %v336
    %v1463 = vunpack.c.l.b16 %v337
    %v1464 = vunpack.c.h.b16 %v337
    %v1465 = vunpack.c.l.b16 %v338
    %v1466 = vunpack.c.h.b16 %v338
    %v1467 = vunpack.c.l.b16 %v339
    %v1468 = vunpack.c.h.b16 %v339
    %v1469 = vunpack.c.l.b16 %v340
    %v1470 = vunpack.c.h.b16 %v340
    %v1471 = vunpack.c.l.b16 %v341
    %v1472 = vunpack.c.h.b16 %v341
    %v1473 = vunpack.c.l.b16 %v342
    %v1474 = vunpack.c.h.b16 %v342
    %v1475 = vunpack.c.l.b16 %v343
    %v1476 = vunpack.c.h.b16 %v343
    %v1477 = vunpack.c.l.b16 %v344
    %v1478 = vunpack.c.h.b16 %v344
    %v1479 = vunpack.c.l.b16 %v345
    %v1480 = vunpack.c.h.b16 %v345
    %v1481 = vunpack.c.l.b16 %v346
    %v1482 = vunpack.c.h.b16 %v346
    %v1483 = vunpack.c.l.b16 %v347
    %v1484 = vunpack.c.h.b16 %v347
    %v1485 = vunpack.c.l.b16 %v348
    %v1486 = vunpack.c.h.b16 %v348
    %v1487 = vunpack.c.l.b16 %v349
    %v1488 = vunpack.c.h.b16 %v349
    %v1489 = vunpack.c.l.b16 %v350
    %v1490 = vunpack.c.h.b16 %v350
    %v1491 = vunpack.c.l.b16 %v351
    %v1492 = vunpack.c.h.b16 %v351
    %v1493 = vunpack.c.l.b16 %v352
    %v1494 = vunpack.c.h.b16 %v352
    %v1495 = vunpack.c.l.b16 %v353
    %v1496 = vunpack.c.h.b16 %v353
    %v1497 = vunpack.c.l.b16 %v354
    %v1498 = vunpack.c.h.b16 %v354
    %v1499 = vpack.c.b16 %v853, %v851
    %v1500 = vpack.c.b16 %v854, %v852
    %v1501 = vpack.c.b16 %v857, %v855
    %v1502 = vpack.c.b16 %v858, %v856
    %v1503 = vpack.c.b16 %v861, %v859
    %v1504 = vpack.c.b16 %v862, %v860
    %v1505 = vpack.c.b16 %v865, %v863
    %v1506 = vpack.c.b16 %v866, %v864
    %v1507 = vpack.c.b16 %v869, %v867
    %v1508 = vpack.c.b16 %v870, %v868
    %v1509 = vpack.c.b16 %v873, %v871
    %v1510 = vpack.c.b16 %v874, %v872
    %v1511 = vpack.c.b16 %v877, %v875
    %v1512 = vpack.c.b16 %v878, %v876
    %v1513 = vpack.c.b16 %v881, %v879
    %v1514 = vpack.c.b16 %v882, %v880
    %v1515 = vpack.c.b16 %v885, %v883
    %v1516 = vpack.c.b16 %v886, %v884
    %v1517 = vpack.c.b16 %v889, %v887
    %v1518 = vpack.c.b16 %v890, %v888
    %v1519 = vpack.c.b16 %v893, %v891
    %v1520 = vpack.c.b16 %v894, %v892
    %v1521 = vpack.c.b16 %v897, %v895
    %v1522 = vpack.c.b16 %v898, %v896
    %v1523 = vpack.c.b16 %v901, %v899
    %v1524 = vpack.c.b16 %v902, %v900
    %v1525 = vpack.c.b16 %v905, %v903
    %v1526 = vpack.c.b16 %v906, %v904
    %v1527 = vpack.c.b16 %v909, %v907
    %v1528 = vpack.c.b16 %v910, %v908
    %v1529 = vpack.c.b16 %v913, %v911
    %v1530 = vpack.c.b16 %v914, %v912
    %v1531 = vpack.c.b16 %v917, %v915
    %v1532 = vpack.c.b16 %v918, %v916
    %v1533 = vpack.c.b16 %v921, %v919
    %v1534 = vpack.c.b16 %v922, %v920
    %v1535 = vpack.c.b16 %v925, %v923
    %v1536 = vpack.c.b16 %v926, %v924
    %v1537 = vpack.c.b16 %v929, %v927
    %v1538 = vpack.c.b16 %v930, %v928
    %v1539 = vpack.c.b16 %v933, %v931
    %v1540 = vpack.c.b16 %v934, %v932
    %v1541 = vpack.c.b16 %v937, %v935
    %v1542 = vpack.c.b16 %v938, %v936
    %v1543 = vpack.c.b16 %v941, %v939
    %v1544 = vpack.c.b16 %v942, %v940
    %v1545 = vpack.c.b16 %v945, %v943
    %v1546 = vpack.c.b16 %v946, %v944
    %v1547 = vpack.c.b16 %v949, %v947
    %v1548 = vpack.c.b16 %v950, %v948
    %v1549 = vpack.c.b16 %v953, %v951
    %v1550 = vpack.c.b16 %v954, %v952
    %v1551 = vpack.c.b16 %v957, %v955
    %v1552 = vpack.c.b16 %v958, %v956
    %v1553 = vpack.c.b16 %v961, %v959
    %v1554 = vpack.c.b16 %v962, %v960
    %v1555 = vpack.c.b16 %v965, %v963
    %v1556 = vpack.c.b16 %v966, %v964
    %v1557 = vpack.c.b16 %v969, %v967
    %v1558 = vpack.c.b16 %v970, %v968
    %v1559 = vpack.c.b16 %v973, %v971
    %v1560 = vpack.c.b16 %v974, %v972
    %v1561 = vpack.c.b16 %v977, %v975
    %v1562 = vpack.c.b16 %v978, %v976
    %v1563 = vpack.c.b16 %v981, %v979
    %v1564 = vpack.c.b16 %v982, %v980
    %v1565 = vpack.c.b16 %v985, %v983
    %v1566 = vpack.c.b16 %v986, %v984
    %v1567 = vpack.c.b16 %v989, %v987
    %v1568 = vpack.c.b16 %v990, %v988
    %v1569 = vpack.c.b16 %v993, %v991
    %v1570 = vpack.c.b16 %v994, %v992
    %v1571 = vpack.c.b16 %v997, %v995
    %v1572 = vpack.c.b16 %v998, %v996
    %v1573 = vpack.c.b16 %v1001, %v999
    %v1574 = vpack.c.b16 %v1002, %v1000
    %v1575 = vpack.c.b16 %v1005, %v1003
    %v1576 = vpack.c.b16 %v1006, %v1004
    %v1577 = vpack.c.b16 %v1009, %v1007
    %v1578 = vpack.c.b16 %v1010, %v1008
    %v1579 = vpack.c.b16 %v1013, %v1011
    %v1580 = vpack.c.b16 %v1014, %v1012
    %v1581 = vpack.c.b16 %v1017, %v1015
    %v1582 = vpack.c.b16 %v1018, %v1016
    %v1583 = vpack.c.b16 %v1021, %v1019
    %v1584 = vpack.c.b16 %v1022, %v1020
    %v1585 = vpack.c.b16 %v1025, %v1023
    %v1586 = vpack.c.b16 %v1026, %v1024
    %v1587 = vpack.c.b16 %v1029, %v1027
    %v1588 = vpack.c.b16 %v1030, %v1028
    %v1589 = vpack.c.b16 %v1033, %v1031
    %v1590 = vpack.c.b16 %v1034, %v1032
    %v1591 = vpack.c.b16 %v1037, %v1035
    %v1592 = vpack.c.b16 %v1038, %v1036
    %v1593 = vpack.c.b16 %v1041, %v1039
    %v1594 = vpack.c.b16 %v1042, %v1040
    %v1595 = vpack.c.b16 %v1045, %v1043
    %v1596 = vpack.c.b16 %v1046, %v1044
    %v1597 = vpack.c.b16 %v1049, %v1047
    %v1598 = vpack.c.b16 %v1050, %v1048
    %v1599 = vpack.c.b16 %v1053, %v1051
    %v1600 = vpack.c.b16 %v1054, %v1052
    %v1601 = vpack.c.b16 %v1057, %v1055
    %v1602 = vpack.c.b16 %v1058, %v1056
    %v1603 = vpack.c.b16 %v1061, %v1059
    %v1604 = vpack.c.b16 %v1062, %v1060
    %v1605 = vpack.c.b16 %v1065, %v1063
    %v1606 = vpack.c.b16 %v1066, %v1064
    %v1607 = vpack.c.b16 %v1069, %v1067
    %v1608 = vpack.c.b16 %v1070, %v1068
    %v1609 = vpack.c.b16 %v1073, %v1071
    %v1610 = vpack.c.b16 %v1074, %v1072
    %v1611 = vpack.c.b16 %v1077, %v1075
    %v1612 = vpack.c.b16 %v1078, %v1076
    %v1613 = vpack.c.b16 %v1081, %v1079
    %v1614 = vpack.c.b16 %v1082, %v1080
    %v1615 = vpack.c.b16 %v1085, %v1083
    %v1616 = vpack.c.b16 %v1086, %v1084
    %v1617 = vpack.c.b16 %v1089, %v1087
    %v1618 = vpack.c.b16 %v1090, %v1088
    %v1619 = vpack.c.b16 %v1093, %v1091
    %v1620 = vpack.c.b16 %v1094, %v1092
    %v1621 = vpack.c.b16 %v1097, %v1095
    %v1622 = vpack.c.b16 %v1098, %v1096
    %v1623 = vpack.c.b16 %v1101, %v1099
    %v1624 = vpack.c.b16 %v1102, %v1100
    %v1625 = vpack.c.b16 %v1105, %v1103
    %v1626 = vpack.c.b16 %v1106, %v1104
    %v1627 = vpack.c.b16 %v1109, %v1107
    %v1628 = vpack.c.b16 %v1110, %v1108
    %v1629 = vpack.c.b16 %v1113, %v1111
    %v1630 = vpack.c.b16 %v1114, %v1112
    %v1631 = vpack.c.b16 %v1117, %v1115
    %v1632 = vpack.c.b16 %v1118, %v1116
    %v1633 = vpack.c.b16 %v1121, %v1119
    %v1634 = vpack.c.b16 %v1122, %v1120
    %v1635 = vpack.c.b16 %v1125, %v1123
    %v1636 = vpack.c.b16 %v1126, %v1124
    %v1637 = vpack.c.b16 %v1129, %v1127
    %v1638 = vpack.c.b16 %v1130, %v1128
    %v1639 = vpack.c.b16 %v1133, %v1131
    %v1640 = vpack.c.b16 %v1134, %v1132
    %v1641 = vpack.c.b16 %v1137, %v1135
    %v1642 = vpack.c.b16 %v1138, %v1136
    %v1643 = vpack.c.b16 %v1141, %v1139
    %v1644 = vpack.c.b16 %v1142, %v1140
    %v1645 = vpack.c.b16 %v1145, %v1143
    %v1646 = vpack.c.b16 %v1146, %v1144
    %v1647 = vpack.c.b16 %v1149, %v1147
    %v1648 = vpack.c.b16 %v1150, %v1148
    %v1649 = vpack.c.b16 %v1153, %v1151
    %v1650 = vpack.c.b16 %v1154, %v1152
    %v1651 = vpack.c.b16 %v1157, %v1155
    %v1652 = vpack.c.b16 %v1158, %v1156
    %v1653 = vpack.c.b16 %v1161, %v1159
    %v1654 = vpack.c.b16 %v1162, %v1160
    %v1655 = vpack.c.b16 %v1165, %v1163
    %v1656 = vpack.c.b16 %v1166, %v1164
    %v1657 = vpack.c.b16 %v1169, %v1167
    %v1658 = vpack.c.b16 %v1170, %v1168
    %v1659 = vpack.c.b16 %v1173, %v1171
    %v1660 = vpack.c.b16 %v1174, %v1172
    %v1661 = vpack.c.b16 %v1177, %v1175
    %v1662 = vpack.c.b16 %v1178, %v1176
    %v1663 = vpack.c.b16 %v1181, %v1179
    %v1664 = vpack.c.b16 %v1182, %v1180
    %v1665 = vpack.c.b16 %v1185, %v1183
    %v1666 = vpack.c.b16 %v1186, %v1184
    %v1667 = vpack.c.b16 %v1189, %v1187
    %v1668 = vpack.c.b16 %v1190, %v1188
    %v1669 = vpack.c.b16 %v1193, %v1191
    %v1670 = vpack.c.b16 %v1194, %v1192
    %v1671 = vpack.c.b16 %v1197, %v1195
    %v1672 = vpack.c.b16 %v1198, %v1196
    %v1673 = vpack.c.b16 %v1201, %v1199
    %v1674 = vpack.c.b16 %v1202, %v1200
    %v1675 = vpack.c.b16 %v1205, %v1203
    %v1676 = vpack.c.b16 %v1206, %v1204
    %v1677 = vpack.c.b16 %v1209, %v1207
    %v1678 = vpack.c.b16 %v1210, %v1208
    %v1679 = vpack.c.b16 %v1213, %v1211
    %v1680 = vpack.c.b16 %v1214, %v1212
    %v1681 = vpack.c.b16 %v1217, %v1215
    %v1682 = vpack.c.b16 %v1218, %v1216
    %v1683 = vpack.c.b16 %v1221, %v1219
    %v1684 = vpack.c.b16 %v1222, %v1220
    %v1685 = vpack.c.b16 %v1225, %v1223
    %v1686 = vpack.c.b16 %v1226, %v1224
    %v1687 = vpack.c.b16 %v1229, %v1227
    %v1688 = vpack.c.b16 %v1230, %v1228
    %v1689 = vpack.c.b16 %v1233, %v1231
    %v1690 = vpack.c.b16 %v1234, %v1232
    %v1691 = vpack.c.b16 %v1237, %v1235
    %v1692 = vpack.c.b16 %v1238, %v1236
    %v1693 = vpack.c.b16 %v1241, %v1239
    %v1694 = vpack.c.b16 %v1242, %v1240
    %v1695 = vpack.c.b16 %v1245, %v1243
    %v1696 = vpack.c.b16 %v1246, %v1244
    %v1697 = vpack.c.b16 %v1249, %v1247
    %v1698 = vpack.c.b16 %v1250, %v1248
    %v1699 = vpack.c.b16 %v1253, %v1251
    %v1700 = vpack.c.b16 %v1254, %v1252
    %v1701 = vpack.c.b16 %v1257, %v1255
    %v1702 = vpack.c.b16 %v1258, %v1256
    %v1703 = vpack.c.b16 %v1261, %v1259
    %v1704 = vpack.c.b16 %v1262, %v1260
    %v1705 = vpack.c.b16 %v1265, %v1263
    %v1706 = vpack.c.b16 %v1266, %v1264
    %v1707 = vpack.c.b16 %v1269, %v1267
    %v1708 = vpack.c.b16 %v1270, %v1268
    %v1709 = vpack.c.b16 %v1273, %v1271
    %v1710 = vpack.c.b16 %v1274, %v1272
    %v1711 = vpack.c.b16 %v1277, %v1275
    %v1712 = vpack.c.b16 %v1278, %v1276
    %v1713 = vpack.c.b16 %v1281, %v1279
    %v1714 = vpack.c.b16 %v1282, %v1280
    %v1715 = vpack.c.b16 %v1285, %v1283
    %v1716 = vpack.c.b16 %v1286, %v1284
    %v1717 = vpack.c.b16 %v1289, %v1287
    %v1718 = vpack.c.b16 %v1290, %v1288
    %v1719 = vpack.c.b16 %v1293, %v1291
    %v1720 = vpack.c.b16 %v1294, %v1292
    %v1721 = vpack.c.b16 %v1297, %v1295
    %v1722 = vpack.c.b16 %v1298, %v1296
    %v1723 = vpack.c.b16 %v1301, %v1299
    %v1724 = vpack.c.b16 %v1302, %v1300
    %v1725 = vpack.c.b16 %v1305, %v1303
    %v1726 = vpack.c.b16 %v1306, %v1304
    %v1727 = vpack.c.b16 %v1309, %v1307
    %v1728 = vpack.c.b16 %v1310, %v1308
    %v1729 = vpack.c.b16 %v1313, %v1311
    %v1730 = vpack.c.b16 %v1314, %v1312
    %v1731 = vpack.c.b16 %v1317, %v1315
    %v1732 = vpack.c.b16 %v1318, %v1316
    %v1733 = vpack.c.b16 %v1321, %v1319
    %v1734 = vpack.c.b16 %v1322, %v1320
    %v1735 = vpack.c.b16 %v1325, %v1323
    %v1736 = vpack.c.b16 %v1326, %v1324
    %v1737 = vpack.c.b16 %v1329, %v1327
    %v1738 = vpack.c.b16 %v1330, %v1328
    %v1739 = vpack.c.b16 %v1333, %v1331
    %v1740 = vpack.c.b16 %v1334, %v1332
    %v1741 = vpack.c.b16 %v1337, %v1335
    %v1742 = vpack.c.b16 %v1338, %v1336
    %v1743 = vpack.c.b16 %v1341, %v1339
    %v1744 = vpack.c.b16 %v1342, %v1340
    %v1745 = vpack.c.b16 %v1345, %v1343
    %v1746 = vpack.c.b16 %v1346, %v1344
    %v1747 = vpack.c.b16 %v1349, %v1347
    %v1748 = vpack.c.b16 %v1350, %v1348
    %v1749 = vpack.c.b16 %v1353, %v1351
    %v1750 = vpack.c.b16 %v1354, %v1352
    %v1751 = vpack.c.b16 %v1357, %v1355
    %v1752 = vpack.c.b16 %v1358, %v1356
    %v1753 = vpack.c.b16 %v1361, %v1359
    %v1754 = vpack.c.b16 %v1362, %v1360
    %v1755 = vpack.c.b16 %v1365, %v1363
    %v1756 = vpack.c.b16 %v1366, %v1364
    %v1757 = vpack.c.b16 %v1369, %v1367
    %v1758 = vpack.c.b16 %v1370, %v1368
    %v1759 = vpack.c.b16 %v1373, %v1371
    %v1760 = vpack.c.b16 %v1374, %v1372
    %v1761 = vpack.c.b16 %v1377, %v1375
    %v1762 = vpack.c.b16 %v1378, %v1376
    %v1763 = vpack.c.b16 %v1381, %v1379
    %v1764 = vpack.c.b16 %v1382, %v1380
    %v1765 = vpack.c.b16 %v1385, %v1383
    %v1766 = vpack.c.b16 %v1386, %v1384
    %v1767 = vpack.c.b16 %v1389, %v1387
    %v1768 = vpack.c.b16 %v1390, %v1388
    %v1769 = vpack.c.b16 %v1393, %v1391
    %v1770 = vpack.c.b16 %v1394, %v1392
    %v1771 = vpack.c.b16 %v1397, %v1395
    %v1772 = vpack.c.b16 %v1398, %v1396
    %v1773 = vpack.c.b16 %v1401, %v1399
    %v1774 = vpack.c.b16 %v1402, %v1400
    %v1775 = vpack.c.b16 %v1405, %v1403
    %v1776 = vpack.c.b16 %v1406, %v1404
    %v1777 = vpack.c.b16 %v1409, %v1407
    %v1778 = vpack.c.b16 %v1410, %v1408
    %v1779 = vpack.c.b16 %v1413, %v1411
    %v1780 = vpack.c.b16 %v1414, %v1412
    %v1781 = vpack.c.b16 %v1417, %v1415
    %v1782 = vpack.c.b16 %v1418, %v1416
    %v1783 = vpack.c.b16 %v1421, %v1419
    %v1784 = vpack.c.b16 %v1422, %v1420
    %v1785 = vpack.c.b16 %v1425, %v1423
    %v1786 = vpack.c.b16 %v1426, %v1424
    %v1787 = vpack.c.b16 %v1429, %v1427
    %v1788 = vpack.c.b16 %v1430, %v1428
    %v1789 = vpack.c.b16 %v1433, %v1431
    %v1790 = vpack.c.b16 %v1434, %v1432
    %v1791 = vpack.c.b16 %v1437, %v1435
    %v1792 = vpack.c.b16 %v1438, %v1436
    %v1793 = vpack.c.b16 %v1441, %v1439
    %v1794 = vpack.c.b16 %v1442, %v1440
    %v1795 = vpack.c.b16 %v1445, %v1443
    %v1796 = vpack.c.b16 %v1446, %v1444
    %v1797 = vpack.c.b16 %v1449, %v1447
    %v1798 = vpack.c.b16 %v1450, %v1448
    %v1799 = vpack.c.b16 %v1453, %v1451
    %v1800 = vpack.c.b16 %v1454, %v1452
    %v1801 = vpack.c.b16 %v1457, %v1455
    %v1802 = vpack.c.b16 %v1458, %v1456
    %v1803 = vpack.c.b16 %v1461, %v1459
    %v1804 = vpack.c.b16 %v1462, %v1460
    %v1805 = vpack.c.b16 %v1465, %v1463
    %v1806 = vpack.c.b16 %v1466, %v1464
    %v1807 = vpack.c.b16 %v1469, %v1467
    %v1808 = vpack.c.b16 %v1470, %v1468
    %v1809 = vpack.c.b16 %v1473, %v1471
    %v1810 = vpack.c.b16 %v1474, %v1472
    %v1811 = vpack.c.b16 %v1477, %v1475
    %v1812 = vpack.c.b16 %v1478, %v1476
    %v1813 = vpack.c.b16 %v1481, %v1479
    %v1814 = vpack.c.b16 %v1482, %v1480
    %v1815 = vpack.c.b16 %v1485, %v1483
    %v1816 = vpack.c.b16 %v1486, %v1484
    %v1817 = vpack.c.b16 %v1489, %v1487
    %v1818 = vpack.c.b16 %v1490, %v1488
    %v1819 = vpack.c.b16 %v1493, %v1491
    %v1820 = vpack.c.b16 %v1494, %v1492
    %v1821 = vpack.c.b16 %v1497, %v1495
    %v1822 = vpack.c.b16 %v1498, %v1496
    %vm2147 = vcmask 261120
    %v2149 = vsel %vm2147, %v497, 0
    %2151 = vmatprep.subr.bf16.mxu0 %v1514
    %2152 = vmatpush1.bf16.msra.mxu0 %v1513
    %2153 = vmatprep.subr.bf16.mxu0 %v1512
    %2154 = vmatpush1.bf16.msra.mxu0 %v1511
    %2155 = vmatprep.subr.bf16.mxu0 %v1510
    %2156 = vmatpush1.bf16.msra.mxu0 %v1509
    %2157 = vmatprep.subr.bf16.mxu0 %v1508
    %2158 = vmatpush1.bf16.msra.mxu0 %v1507
    %2159 = vmatprep.subr.bf16.mxu0 %v1506
    %2160 = vmatpush1.bf16.msra.mxu0 %v1505
    %2161 = vmatprep.subr.bf16.mxu0 %v1504
    %2162 = vmatpush1.bf16.msra.mxu0 %v1503
    %2163 = vmatprep.subr.bf16.mxu0 %v1502
    %2164 = vmatpush1.bf16.msra.mxu0 %v1501
    %2165 = vmatprep.subr.bf16.mxu0 %v1500
    %2166 = vmatpush1.bf16.msra.mxu0 %v1499
    %2167 = vmatprep.subr.bf16.mxu0 %v1530
    %2168 = vmatpush2.bf16.msra.mxu0 %v1529
    %2169 = vmatprep.subr.bf16.mxu0 %v1528
    %2170 = vmatpush2.bf16.msra.mxu0 %v1527
    %2171 = vmatprep.subr.bf16.mxu0 %v1526
    %2172 = vmatpush2.bf16.msra.mxu0 %v1525
    %2173 = vmatprep.subr.bf16.mxu0 %v1524
    %2174 = vmatpush2.bf16.msra.mxu0 %v1523
    %2175 = vmatprep.subr.bf16.mxu0 %v1522
    %2176 = vmatpush2.bf16.msra.mxu0 %v1521
    %2177 = vmatprep.subr.bf16.mxu0 %v1520
    %2178 = vmatpush2.bf16.msra.mxu0 %v1519
    %2179 = vmatprep.subr.bf16.mxu0 %v1518
    %2180 = vmatpush2.bf16.msra.mxu0 %v1517
    %2181 = vmatprep.subr.bf16.mxu0 %v1516
    %2182 = vmatpush2.bf16.msra.mxu0 %v1515
    %2183 = vmatprep.mubr.bf16.mxu0 %v407
    %2184 = vmatmul.mubr.bf16.gmra.mxu0 %v393
    %v2185 = vpop.f32.mrf.mxu0
    %v2186 = vadd.f32 %v360, %v2185
    %v2187 = vpop.f32.mrf.mxu0
    %v2188 = vadd.f32 %v364, %v2187
    %v2189 = vpop.f32.mrf.mxu0
    %v2190 = vpop.f32.mrf.mxu0
    %2191 = vdwg.mxu0
    %2192 = vmatprep.subr.bf16.mxu0 %v1546
    %2193 = vmatpush1.bf16.msra.mxu0 %v1545
    %2194 = vmatprep.subr.bf16.mxu0 %v1544
    %2195 = vmatpush1.bf16.msra.mxu0 %v1543
    %2196 = vmatprep.subr.bf16.mxu0 %v1542
    %2197 = vmatpush1.bf16.msra.mxu0 %v1541
    %2198 = vmatprep.subr.bf16.mxu0 %v1540
    %2199 = vmatpush1.bf16.msra.mxu0 %v1539
    %2200 = vmatprep.subr.bf16.mxu0 %v1538
    %2201 = vmatpush1.bf16.msra.mxu0 %v1537
    %2202 = vmatprep.subr.bf16.mxu0 %v1536
    %2203 = vmatpush1.bf16.msra.mxu0 %v1535
    %2204 = vmatprep.subr.bf16.mxu0 %v1534
    %2205 = vmatpush1.bf16.msra.mxu0 %v1533
    %2206 = vmatprep.subr.bf16.mxu0 %v1532
    %2207 = vmatpush1.bf16.msra.mxu0 %v1531
    %2208 = vmatprep.subr.bf16.mxu0 %v1562
    %2209 = vmatpush2.bf16.msra.mxu0 %v1561
    %2210 = vmatprep.subr.bf16.mxu0 %v1560
    %2211 = vmatpush2.bf16.msra.mxu0 %v1559
    %2212 = vmatprep.subr.bf16.mxu0 %v1558
    %2213 = vmatpush2.bf16.msra.mxu0 %v1557
    %2214 = vmatprep.subr.bf16.mxu0 %v1556
    %2215 = vmatpush2.bf16.msra.mxu0 %v1555
    %2216 = vmatprep.subr.bf16.mxu0 %v1554
    %2217 = vmatpush2.bf16.msra.mxu0 %v1553
    %2218 = vmatprep.subr.bf16.mxu0 %v1552
    %2219 = vmatpush2.bf16.msra.mxu0 %v1551
    %2220 = vmatprep.subr.bf16.mxu0 %v1550
    %2221 = vmatpush2.bf16.msra.mxu0 %v1549
    %2222 = vmatprep.subr.bf16.mxu0 %v1548
    %2223 = vmatpush2.bf16.msra.mxu0 %v1547
    %2224 = vmatprep.mubr.bf16.mxu0 %v417
    %2225 = vmatmul.mubr.bf16.gmra.mxu0 %v415
    %v2226 = vpop.f32.mrf.mxu0
    %v2227 = vadd.f32 %v2186, %v2226
    %v2228 = vpop.f32.mrf.mxu0
    %v2229 = vadd.f32 %v2188, %v2228
    %v2230 = vpop.f32.mrf.mxu0
    %v2231 = vpop.f32.mrf.mxu0
    %2232 = vdwg.mxu0
    %2233 = vmatprep.subr.bf16.mxu0 %v1578
    %2234 = vmatpush1.bf16.msra.mxu0 %v1577
    %2235 = vmatprep.subr.bf16.mxu0 %v1576
    %2236 = vmatpush1.bf16.msra.mxu0 %v1575
    %2237 = vmatprep.subr.bf16.mxu0 %v1574
    %2238 = vmatpush1.bf16.msra.mxu0 %v1573
    %2239 = vmatprep.subr.bf16.mxu0 %v1572
    %2240 = vmatpush1.bf16.msra.mxu0 %v1571
    %2241 = vmatprep.subr.bf16.mxu0 %v1570
    %2242 = vmatpush1.bf16.msra.mxu0 %v1569
    %2243 = vmatprep.subr.bf16.mxu0 %v1568
    %2244 = vmatpush1.bf16.msra.mxu0 %v1567
    %2245 = vmatprep.subr.bf16.mxu0 %v1566
    %2246 = vmatpush1.bf16.msra.mxu0 %v1565
    %2247 = vmatprep.subr.bf16.mxu0 %v1564
    %2248 = vmatpush1.bf16.msra.mxu0 %v1563
    %2249 = vmatprep.subr.bf16.mxu0 %v1594
    %2250 = vmatpush2.bf16.msra.mxu0 %v1593
    %2251 = vmatprep.subr.bf16.mxu0 %v1592
    %2252 = vmatpush2.bf16.msra.mxu0 %v1591
    %2253 = vmatprep.subr.bf16.mxu0 %v1590
    %2254 = vmatpush2.bf16.msra.mxu0 %v1589
    %2255 = vmatprep.subr.bf16.mxu0 %v1588
    %2256 = vmatpush2.bf16.msra.mxu0 %v1587
    %2257 = vmatprep.subr.bf16.mxu0 %v1586
    %2258 = vmatpush2.bf16.msra.mxu0 %v1585
    %2259 = vmatprep.subr.bf16.mxu0 %v1584
    %2260 = vmatpush2.bf16.msra.mxu0 %v1583
    %2261 = vmatprep.subr.bf16.mxu0 %v1582
    %2262 = vmatpush2.bf16.msra.mxu0 %v1581
    %2263 = vmatprep.subr.bf16.mxu0 %v1580
    %2264 = vmatpush2.bf16.msra.mxu0 %v1579
    %2265 = vmatprep.mubr.bf16.mxu0 %v414
    %2266 = vmatmul.mubr.bf16.gmra.mxu0 %v400
    %v2267 = vpop.f32.mrf.mxu0
    %v2268 = vadd.f32 %v2227, %v2267
    %v2269 = vpop.f32.mrf.mxu0
    %v2270 = vadd.f32 %v2229, %v2269
    %v2271 = vpop.f32.mrf.mxu0
    %v2272 = vpop.f32.mrf.mxu0
    %2273 = vdwg.mxu0
    %2274 = vmatprep.subr.bf16.mxu0 %v1610
    %2275 = vmatpush1.bf16.msra.mxu0 %v1609
    %2276 = vmatprep.subr.bf16.mxu0 %v1608
    %2277 = vmatpush1.bf16.msra.mxu0 %v1607
    %2278 = vmatprep.subr.bf16.mxu0 %v1606
    %2279 = vmatpush1.bf16.msra.mxu0 %v1605
    %2280 = vmatprep.subr.bf16.mxu0 %v1604
    %2281 = vmatpush1.bf16.msra.mxu0 %v1603
    %2282 = vmatprep.subr.bf16.mxu0 %v1602
    %2283 = vmatpush1.bf16.msra.mxu0 %v1601
    %2284 = vmatprep.subr.bf16.mxu0 %v1600
    %2285 = vmatpush1.bf16.msra.mxu0 %v1599
    %2286 = vmatprep.subr.bf16.mxu0 %v1598
    %2287 = vmatpush1.bf16.msra.mxu0 %v1597
    %2288 = vmatprep.subr.bf16.mxu0 %v1596
    %2289 = vmatpush1.bf16.msra.mxu0 %v1595
    %2290 = vmatprep.subr.bf16.mxu0 %v1626
    %2291 = vmatpush2.bf16.msra.mxu0 %v1625
    %2292 = vmatprep.subr.bf16.mxu0 %v1624
    %2293 = vmatpush2.bf16.msra.mxu0 %v1623
    %2294 = vmatprep.subr.bf16.mxu0 %v1622
    %2295 = vmatpush2.bf16.msra.mxu0 %v1621
    %2296 = vmatprep.subr.bf16.mxu0 %v1620
    %2297 = vmatpush2.bf16.msra.mxu0 %v1619
    %2298 = vmatprep.subr.bf16.mxu0 %v1618
    %2299 = vmatpush2.bf16.msra.mxu0 %v1617
    %2300 = vmatprep.subr.bf16.mxu0 %v1616
    %2301 = vmatpush2.bf16.msra.mxu0 %v1615
    %2302 = vmatprep.subr.bf16.mxu0 %v1614
    %2303 = vmatpush2.bf16.msra.mxu0 %v1613
    %2304 = vmatprep.subr.bf16.mxu0 %v1612
    %2305 = vmatpush2.bf16.msra.mxu0 %v1611
    %2306 = vmatprep.mubr.bf16.mxu0 %v418
    %2307 = vmatmul.mubr.bf16.gmra.mxu0 %v416
    %v2308 = vpop.f32.mrf.mxu0
    %v2309 = vadd.f32 %v2268, %v2308
    %v2310 = vpop.f32.mrf.mxu0
    %v2311 = vadd.f32 %v2270, %v2310
    %v2312 = vpop.f32.mrf.mxu0
    %v2313 = vpop.f32.mrf.mxu0
    %2314 = vdwg.mxu0
    %2315 = vmatprep.subr.bf16.mxu0 %v1642
    %2316 = vmatpush1.bf16.msra.mxu0 %v1641
    %2317 = vmatprep.subr.bf16.mxu0 %v1640
    %2318 = vmatpush1.bf16.msra.mxu0 %v1639
    %2319 = vmatprep.subr.bf16.mxu0 %v1638
    %2320 = vmatpush1.bf16.msra.mxu0 %v1637
    %2321 = vmatprep.subr.bf16.mxu0 %v1636
    %2322 = vmatpush1.bf16.msra.mxu0 %v1635
    %2323 = vmatprep.subr.bf16.mxu0 %v1634
    %2324 = vmatpush1.bf16.msra.mxu0 %v1633
    %2325 = vmatprep.subr.bf16.mxu0 %v1632
    %2326 = vmatpush1.bf16.msra.mxu0 %v1631
    %2327 = vmatprep.subr.bf16.mxu0 %v1630
    %2328 = vmatpush1.bf16.msra.mxu0 %v1629
    %2329 = vmatprep.subr.bf16.mxu0 %v1628
    %2330 = vmatpush1.bf16.msra.mxu0 %v1627
    %2331 = vmatprep.subr.bf16.mxu0 %v1658
    %2332 = vmatpush2.bf16.msra.mxu0 %v1657
    %2333 = vmatprep.subr.bf16.mxu0 %v1656
    %2334 = vmatpush2.bf16.msra.mxu0 %v1655
    %2335 = vmatprep.subr.bf16.mxu0 %v1654
    %2336 = vmatpush2.bf16.msra.mxu0 %v1653
    %2337 = vmatprep.subr.bf16.mxu0 %v1652
    %2338 = vmatpush2.bf16.msra.mxu0 %v1651
    %2339 = vmatprep.subr.bf16.mxu0 %v1650
    %2340 = vmatpush2.bf16.msra.mxu0 %v1649
    %2341 = vmatprep.subr.bf16.mxu0 %v1648
    %2342 = vmatpush2.bf16.msra.mxu0 %v1647
    %2343 = vmatprep.subr.bf16.mxu0 %v1646
    %2344 = vmatpush2.bf16.msra.mxu0 %v1645
    %2345 = vmatprep.subr.bf16.mxu0 %v1644
    %2346 = vmatpush2.bf16.msra.mxu0 %v1643
    %2347 = vmatprep.mubr.bf16.mxu0 %v456
    %2348 = vmatmul.mubr.bf16.gmra.mxu0 %v442
    %v2349 = vpop.f32.mrf.mxu0
    %v2350 = vadd.f32 %v2309, %v2349
    %v2351 = vpop.f32.mrf.mxu0
    %v2352 = vadd.f32 %v2311, %v2351
    %v2353 = vpop.f32.mrf.mxu0
    %v2354 = vpop.f32.mrf.mxu0
    %2355 = vdwg.mxu0
    %2356 = vmatprep.subr.bf16.mxu0 %v1674
    %2357 = vmatpush1.bf16.msra.mxu0 %v1673
    %2358 = vmatprep.subr.bf16.mxu0 %v1672
    %2359 = vmatpush1.bf16.msra.mxu0 %v1671
    %2360 = vmatprep.subr.bf16.mxu0 %v1670
    %2361 = vmatpush1.bf16.msra.mxu0 %v1669
    %2362 = vmatprep.subr.bf16.mxu0 %v1668
    %2363 = vmatpush1.bf16.msra.mxu0 %v1667
    %2364 = vmatprep.subr.bf16.mxu0 %v1666
    %2365 = vmatpush1.bf16.msra.mxu0 %v1665
    %2366 = vmatprep.subr.bf16.mxu0 %v1664
    %2367 = vmatpush1.bf16.msra.mxu0 %v1663
    %2368 = vmatprep.subr.bf16.mxu0 %v1662
    %2369 = vmatpush1.bf16.msra.mxu0 %v1661
    %2370 = vmatprep.subr.bf16.mxu0 %v1660
    %2371 = vmatpush1.bf16.msra.mxu0 %v1659
    %2372 = vmatprep.subr.bf16.mxu0 %v1690
    %2373 = vmatpush2.bf16.msra.mxu0 %v1689
    %2374 = vmatprep.subr.bf16.mxu0 %v1688
    %2375 = vmatpush2.bf16.msra.mxu0 %v1687
    %2376 = vmatprep.subr.bf16.mxu0 %v1686
    %2377 = vmatpush2.bf16.msra.mxu0 %v1685
    %2378 = vmatprep.subr.bf16.mxu0 %v1684
    %2379 = vmatpush2.bf16.msra.mxu0 %v1683
    %2380 = vmatprep.subr.bf16.mxu0 %v1682
    %2381 = vmatpush2.bf16.msra.mxu0 %v1681
    %2382 = vmatprep.subr.bf16.mxu0 %v1680
    %2383 = vmatpush2.bf16.msra.mxu0 %v1679
    %2384 = vmatprep.subr.bf16.mxu0 %v1678
    %2385 = vmatpush2.bf16.msra.mxu0 %v1677
    %2386 = vmatprep.subr.bf16.mxu0 %v1676
    %2387 = vmatpush2.bf16.msra.mxu0 %v1675
    %2388 = vmatprep.mubr.bf16.mxu0 %v466
    %2389 = vmatmul.mubr.bf16.gmra.mxu0 %v464
    %v2390 = vpop.f32.mrf.mxu0
    %v2391 = vadd.f32 %v2350, %v2390
    %v2392 = vpop.f32.mrf.mxu0
    %v2393 = vadd.f32 %v2352, %v2392
    %v2394 = vpop.f32.mrf.mxu0
    %v2395 = vpop.f32.mrf.mxu0
    %2396 = vdwg.mxu0
    %2397 = vmatprep.subr.bf16.mxu0 %v1706
    %2398 = vmatpush1.bf16.msra.mxu0 %v1705
    %2399 = vmatprep.subr.bf16.mxu0 %v1704
    %2400 = vmatpush1.bf16.msra.mxu0 %v1703
    %2401 = vmatprep.subr.bf16.mxu0 %v1702
    %2402 = vmatpush1.bf16.msra.mxu0 %v1701
    %2403 = vmatprep.subr.bf16.mxu0 %v1700
    %2404 = vmatpush1.bf16.msra.mxu0 %v1699
    %2405 = vmatprep.subr.bf16.mxu0 %v1698
    %2406 = vmatpush1.bf16.msra.mxu0 %v1697
    %2407 = vmatprep.subr.bf16.mxu0 %v1696
    %2408 = vmatpush1.bf16.msra.mxu0 %v1695
    %2409 = vmatprep.subr.bf16.mxu0 %v1694
    %2410 = vmatpush1.bf16.msra.mxu0 %v1693
    %2411 = vmatprep.subr.bf16.mxu0 %v1692
    %2412 = vmatpush1.bf16.msra.mxu0 %v1691
    %2413 = vmatprep.subr.bf16.mxu0 %v1722
    %2414 = vmatpush2.bf16.msra.mxu0 %v1721
    %2415 = vmatprep.subr.bf16.mxu0 %v1720
    %2416 = vmatpush2.bf16.msra.mxu0 %v1719
    %2417 = vmatprep.subr.bf16.mxu0 %v1718
    %2418 = vmatpush2.bf16.msra.mxu0 %v1717
    %2419 = vmatprep.subr.bf16.mxu0 %v1716
    %2420 = vmatpush2.bf16.msra.mxu0 %v1715
    %2421 = vmatprep.subr.bf16.mxu0 %v1714
    %2422 = vmatpush2.bf16.msra.mxu0 %v1713
    %2423 = vmatprep.subr.bf16.mxu0 %v1712
    %2424 = vmatpush2.bf16.msra.mxu0 %v1711
    %2425 = vmatprep.subr.bf16.mxu0 %v1710
    %2426 = vmatpush2.bf16.msra.mxu0 %v1709
    %2427 = vmatprep.subr.bf16.mxu0 %v1708
    %2428 = vmatpush2.bf16.msra.mxu0 %v1707
    %2429 = vmatprep.mubr.bf16.mxu0 %v463
    %2430 = vmatmul.mubr.bf16.gmra.mxu0 %v449
    %v2431 = vpop.f32.mrf.mxu0
    %v2432 = vadd.f32 %v2391, %v2431
    %v2433 = vpop.f32.mrf.mxu0
    %v2434 = vadd.f32 %v2393, %v2433
    %v2435 = vpop.f32.mrf.mxu0
    %v2436 = vpop.f32.mrf.mxu0
    %2437 = vdwg.mxu0
    %2438 = vmatprep.subr.bf16.mxu0 %v1738
    %2439 = vmatpush1.bf16.msra.mxu0 %v1737
    %2440 = vmatprep.subr.bf16.mxu0 %v1736
    %2441 = vmatpush1.bf16.msra.mxu0 %v1735
    %2442 = vmatprep.subr.bf16.mxu0 %v1734
    %2443 = vmatpush1.bf16.msra.mxu0 %v1733
    %2444 = vmatprep.subr.bf16.mxu0 %v1732
    %2445 = vmatpush1.bf16.msra.mxu0 %v1731
    %2446 = vmatprep.subr.bf16.mxu0 %v1730
    %2447 = vmatpush1.bf16.msra.mxu0 %v1729
    %2448 = vmatprep.subr.bf16.mxu0 %v1728
    %2449 = vmatpush1.bf16.msra.mxu0 %v1727
    %2450 = vmatprep.subr.bf16.mxu0 %v1726
    %2451 = vmatpush1.bf16.msra.mxu0 %v1725
    %2452 = vmatprep.subr.bf16.mxu0 %v1724
    %2453 = vmatpush1.bf16.msra.mxu0 %v1723
    %2454 = vmatprep.subr.bf16.mxu0 %v1754
    %2455 = vmatpush2.bf16.msra.mxu0 %v1753
    %2456 = vmatprep.subr.bf16.mxu0 %v1752
    %2457 = vmatpush2.bf16.msra.mxu0 %v1751
    %2458 = vmatprep.subr.bf16.mxu0 %v1750
    %2459 = vmatpush2.bf16.msra.mxu0 %v1749
    %2460 = vmatprep.subr.bf16.mxu0 %v1748
    %2461 = vmatpush2.bf16.msra.mxu0 %v1747
    %2462 = vmatprep.subr.bf16.mxu0 %v1746
    %2463 = vmatpush2.bf16.msra.mxu0 %v1745
    %2464 = vmatprep.subr.bf16.mxu0 %v1744
    %2465 = vmatpush2.bf16.msra.mxu0 %v1743
    %2466 = vmatprep.subr.bf16.mxu0 %v1742
    %2467 = vmatpush2.bf16.msra.mxu0 %v1741
    %2468 = vmatprep.subr.bf16.mxu0 %v1740
    %2469 = vmatpush2.bf16.msra.mxu0 %v1739
    %2470 = vmatprep.mubr.bf16.mxu0 %v467
    %2471 = vmatmul.mubr.bf16.gmra.mxu0 %v465
    %v2472 = vpop.f32.mrf.mxu0
    %v2473 = vadd.f32 %v2432, %v2472
    %v2474 = vpop.f32.mrf.mxu0
    %v2475 = vadd.f32 %v2434, %v2474
    %v2476 = vpop.f32.mrf.mxu0
    %v2477 = vpop.f32.mrf.mxu0
    %2478 = vdwg.mxu0
    %2479 = vmatprep.subr.bf16.mxu0 %v1770
    %2480 = vmatpush1.bf16.msra.mxu0 %v1769
    %2481 = vmatprep.subr.bf16.mxu0 %v1768
    %2482 = vmatpush1.bf16.msra.mxu0 %v1767
    %2483 = vmatprep.subr.bf16.mxu0 %v1766
    %2484 = vmatpush1.bf16.msra.mxu0 %v1765
    %2485 = vmatprep.subr.bf16.mxu0 %v1764
    %2486 = vmatpush1.bf16.msra.mxu0 %v1763
    %2487 = vmatprep.subr.bf16.mxu0 %v1762
    %2488 = vmatpush1.bf16.msra.mxu0 %v1761
    %2489 = vmatprep.subr.bf16.mxu0 %v1760
    %2490 = vmatpush1.bf16.msra.mxu0 %v1759
    %2491 = vmatprep.subr.bf16.mxu0 %v1758
    %2492 = vmatpush1.bf16.msra.mxu0 %v1757
    %2493 = vmatprep.subr.bf16.mxu0 %v1756
    %2494 = vmatpush1.bf16.msra.mxu0 %v1755
    %2495 = vmatprep.subr.bf16.mxu0 %v1786
    %2496 = vmatpush2.bf16.msra.mxu0 %v1785
    %2497 = vmatprep.subr.bf16.mxu0 %v1784
    %2498 = vmatpush2.bf16.msra.mxu0 %v1783
    %2499 = vmatprep.subr.bf16.mxu0 %v1782
    %2500 = vmatpush2.bf16.msra.mxu0 %v1781
    %2501 = vmatprep.subr.bf16.mxu0 %v1780
    %2502 = vmatpush2.bf16.msra.mxu0 %v1779
    %2503 = vmatprep.subr.bf16.mxu0 %v1778
    %2504 = vmatpush2.bf16.msra.mxu0 %v1777
    %2505 = vmatprep.subr.bf16.mxu0 %v1776
    %2506 = vmatpush2.bf16.msra.mxu0 %v1775
    %2507 = vmatprep.subr.bf16.mxu0 %v1774
    %2508 = vmatpush2.bf16.msra.mxu0 %v1773
    %2509 = vmatprep.subr.bf16.mxu0 %v1772
    %2510 = vmatpush2.bf16.msra.mxu0 %v1771
    %2511 = vmatprep.mubr.bf16.mxu0 %v504
    %2512 = vmatmul.mubr.bf16.gmra.mxu0 %v490
    %v2513 = vpop.f32.mrf.mxu0
    %v2514 = vadd.f32 %v2473, %v2513
    %v2515 = vpop.f32.mrf.mxu0
    %v2516 = vadd.f32 %v2475, %v2515
    %v2517 = vpop.f32.mrf.mxu0
    %v2518 = vpop.f32.mrf.mxu0
    %2519 = vdwg.mxu0
    %2520 = vmatprep.subr.bf16.mxu0 %v1802
    %2521 = vmatpush1.bf16.msra.mxu0 %v1801
    %2522 = vmatprep.subr.bf16.mxu0 %v1800
    %2523 = vmatpush1.bf16.msra.mxu0 %v1799
    %2524 = vmatprep.subr.bf16.mxu0 %v1798
    %2525 = vmatpush1.bf16.msra.mxu0 %v1797
    %2526 = vmatprep.subr.bf16.mxu0 %v1796
    %2527 = vmatpush1.bf16.msra.mxu0 %v1795
    %2528 = vmatprep.subr.bf16.mxu0 %v1794
    %2529 = vmatpush1.bf16.msra.mxu0 %v1793
    %2530 = vmatprep.subr.bf16.mxu0 %v1792
    %2531 = vmatpush1.bf16.msra.mxu0 %v1791
    %2532 = vmatprep.subr.bf16.mxu0 %v1790
    %2533 = vmatpush1.bf16.msra.mxu0 %v1789
    %2534 = vmatprep.subr.bf16.mxu0 %v1788
    %2535 = vmatpush1.bf16.msra.mxu0 %v1787
    %2536 = vmatprep.subr.bf16.mxu0 %v1818
    %2537 = vmatpush2.bf16.msra.mxu0 %v1817
    %2538 = vmatprep.subr.bf16.mxu0 %v1816
    %2539 = vmatpush2.bf16.msra.mxu0 %v1815
    %2540 = vmatprep.subr.bf16.mxu0 %v1814
    %2541 = vmatpush2.bf16.msra.mxu0 %v1813
    %2542 = vmatprep.subr.bf16.mxu0 %v1812
    %2543 = vmatpush2.bf16.msra.mxu0 %v1811
    %2544 = vmatprep.subr.bf16.mxu0 %v1810
    %2545 = vmatpush2.bf16.msra.mxu0 %v1809
    %2546 = vmatprep.subr.bf16.mxu0 %v1808
    %2547 = vmatpush2.bf16.msra.mxu0 %v1807
    %2548 = vmatprep.subr.bf16.mxu0 %v1806
    %2549 = vmatpush2.bf16.msra.mxu0 %v1805
    %2550 = vmatprep.subr.bf16.mxu0 %v1804
    %2551 = vmatpush2.bf16.msra.mxu0 %v1803
    %2552 = vmatprep.mubr.bf16.mxu0 %v506
    %2553 = vmatmul.mubr.bf16.gmra.mxu0 %v505
    %v2554 = vpop.f32.mrf.mxu0
    %v2555 = vadd.f32 %v2514, %v2554
    %v2556 = vpop.f32.mrf.mxu0
    %v2557 = vadd.f32 %v2516, %v2556
    %v2558 = vpop.f32.mrf.mxu0
    %v2559 = vpop.f32.mrf.mxu0
    %2560 = vdwg.mxu0
    %2561 = vmatprep.subr.bf16.mxu0 0
    %2562 = vmatpush1.bf16.msra.mxu0 0
    %2563 = vmatprep.subr.bf16.mxu0 0
    %2564 = vmatpush1.bf16.msra.mxu0 0
    %2565 = vmatprep.subr.bf16.mxu0 0
    %2566 = vmatpush1.bf16.msra.mxu0 0
    %2567 = vmatprep.subr.bf16.mxu0 0
    %2568 = vmatpush1.bf16.msra.mxu0 0
    %2569 = vmatprep.subr.bf16.mxu0 0
    %2570 = vmatpush1.bf16.msra.mxu0 0
    %2571 = vmatprep.subr.bf16.mxu0 0
    %2572 = vmatpush1.bf16.msra.mxu0 0
    %2573 = vmatprep.subr.bf16.mxu0 %v1822
    %2574 = vmatpush1.bf16.msra.mxu0 %v1821
    %2575 = vmatprep.subr.bf16.mxu0 %v1820
    %2576 = vmatpush1.bf16.msra.mxu0 %v1819
    %2577 = vmatprep.subr.bf16.mxu0 0
    %2578 = vmatpush2.bf16.msra.mxu0 0
    %2579 = vmatprep.subr.bf16.mxu0 0
    %2580 = vmatpush2.bf16.msra.mxu0 0
    %2581 = vmatprep.subr.bf16.mxu0 0
    %2582 = vmatpush2.bf16.msra.mxu0 0
    %2583 = vmatprep.subr.bf16.mxu0 0
    %2584 = vmatpush2.bf16.msra.mxu0 0
    %2585 = vmatprep.subr.bf16.mxu0 0
    %2586 = vmatpush2.bf16.msra.mxu0 0
    %2587 = vmatprep.subr.bf16.mxu0 0
    %2588 = vmatpush2.bf16.msra.mxu0 0
    %2589 = vmatprep.subr.bf16.mxu0 0
    %2590 = vmatpush2.bf16.msra.mxu0 0
    %2591 = vmatprep.subr.bf16.mxu0 0
    %2592 = vmatpush2.bf16.msra.mxu0 0
    %2593 = vmatprep.mubr.bf16.mxu0 0
    %2594 = vmatmul.mubr.bf16.gmra.mxu0 %v2149
    %v2595 = vpop.f32.mrf.mxu0
    %v2596 = vadd.f32 %v2555, %v2595
    %v2597 = vpop.f32.mrf.mxu0
    %v2598 = vadd.f32 %v2557, %v2597
    %v2599 = vpop.f32.mrf.mxu0
    %v2600 = vpop.f32.mrf.mxu0
    %2601 = vdwg.mxu0
    %v2602 = vmax.f32 %v2596, 0.0
    %v2603 = vmax.f32 %v2598, 0.0
    %v2604 = vpack.c.bf16 %v2602, %v2602
    %v2605 = vpack.c.bf16 %v2603, %v2603
    %v2606 = vld [vmem:[%s3] sm:$0xf]
    %v2607 = vld [vmem:[%s3 + $0x4] sm:$0xf]
    %v2608 = vld [vmem:[%s3 + $0x8] sm:$0xf]
    %v2609 = vld [vmem:[%s3 + $0xc] sm:$0xf]
    %v2610 = vld [vmem:[%s3 + $0x10] sm:$0xf]
    %v2611 = vld [vmem:[%s3 + $0x14] sm:$0xf]
    %v2612 = vld [vmem:[%s3 + $0x18] sm:$0xf]
    %v2613 = vld [vmem:[%s3 + $0x1c] sm:$0xf]
    %v2614 = vld [vmem:[%s3 + $0x20] sm:$0xf]
    %v2615 = vld [vmem:[%s3 + $0x24] sm:$0xf]
    %v2616 = vld [vmem:[%s3 + $0x28] sm:$0xf]
    %v2617 = vld [vmem:[%s3 + $0x2c] sm:$0xf]
    %v2618 = vld [vmem:[%s3 + $0x30] sm:$0xf]
    %v2619 = vld [vmem:[%s3 + $0x34] sm:$0xf]
    %v2620 = vld [vmem:[%s3 + $0x38] sm:$0xf]
    %v2621 = vld [vmem:[%s3 + $0x3c] sm:$0xf]
    %v2622 = vld [vmem:[%s3 + $0x40] sm:$0xf]
    %v2623 = vld [vmem:[%s3 + $0x44] sm:$0xf]
    %v2624 = vld [vmem:[%s3 + $0x48] sm:$0xf]
    %v2625 = vld [vmem:[%s3 + $0x4c] sm:$0xf]
    %v2626 = vld [vmem:[%s3 + $0x50] sm:$0xf]
    %v2627 = vld [vmem:[%s3 + $0x54] sm:$0xf]
    %v2628 = vld [vmem:[%s3 + $0x58] sm:$0xf]
    %v2629 = vld [vmem:[%s3 + $0x5c] sm:$0xf]
    %v2630 = vld [vmem:[%s3 + $0x60] sm:$0xf]
    %v2631 = vld [vmem:[%s3 + $0x64] sm:$0xf]
    %v2632 = vld [vmem:[%s3 + $0x68] sm:$0xf]
    %v2633 = vld [vmem:[%s3 + $0x6c] sm:$0xf]
    %v2634 = vld [vmem:[%s3 + $0x70] sm:$0xf]
    %v2635 = vld [vmem:[%s3 + $0x74] sm:$0xf]
    %v2636 = vld [vmem:[%s3 + $0x78] sm:$0xf]
    %v2637 = vld [vmem:[%s3 + $0x7c] sm:$0xf]
    %v2638 = vld [vmem:[%s4] sm:$0x1]
    %v2640 = vlaneseq
    %v2641 = vshrl.u32 %v2640, 7
    %v2642 = vsub.s32 0, %v2641
    %v2643 = vrot.slane %v2638, %v2642
    %v2677 = vunpack.c.l.b16 %v2606
    %v2678 = vunpack.c.l.b16 %v2607
    %v2679 = vunpack.c.l.b16 %v2608
    %v2680 = vunpack.c.l.b16 %v2609
    %v2681 = vunpack.c.l.b16 %v2610
    %v2682 = vunpack.c.l.b16 %v2611
    %v2683 = vunpack.c.l.b16 %v2612
    %v2684 = vunpack.c.l.b16 %v2613
    %v2685 = vunpack.c.l.b16 %v2614
    %v2686 = vunpack.c.l.b16 %v2615
    %v2687 = vunpack.c.l.b16 %v2616
    %v2688 = vunpack.c.l.b16 %v2617
    %v2689 = vunpack.c.l.b16 %v2618
    %v2690 = vunpack.c.l.b16 %v2619
    %v2691 = vunpack.c.l.b16 %v2620
    %v2692 = vunpack.c.l.b16 %v2621
    %v2693 = vunpack.c.l.b16 %v2622
    %v2694 = vunpack.c.l.b16 %v2623
    %v2695 = vunpack.c.l.b16 %v2624
    %v2696 = vunpack.c.l.b16 %v2625
    %v2697 = vunpack.c.l.b16 %v2626
    %v2698 = vunpack.c.l.b16 %v2627
    %v2699 = vunpack.c.l.b16 %v2628
    %v2700 = vunpack.c.l.b16 %v2629
    %v2701 = vunpack.c.l.b16 %v2630
    %v2702 = vunpack.c.l.b16 %v2631
    %v2703 = vunpack.c.l.b16 %v2632
    %v2704 = vunpack.c.l.b16 %v2633
    %v2705 = vunpack.c.l.b16 %v2634
    %v2706 = vunpack.c.l.b16 %v2635
    %v2707 = vunpack.c.l.b16 %v2636
    %v2708 = vunpack.c.l.b16 %v2637
    %v2709 = vpack.c.b16 %v2678, %v2677
    %v2710 = vpack.c.b16 %v2680, %v2679
    %v2711 = vpack.c.b16 %v2682, %v2681
    %v2712 = vpack.c.b16 %v2684, %v2683
    %v2713 = vpack.c.b16 %v2686, %v2685
    %v2714 = vpack.c.b16 %v2688, %v2687
    %v2715 = vpack.c.b16 %v2690, %v2689
    %v2716 = vpack.c.b16 %v2692, %v2691
    %v2717 = vpack.c.b16 %v2694, %v2693
    %v2718 = vpack.c.b16 %v2696, %v2695
    %v2719 = vpack.c.b16 %v2698, %v2697
    %v2720 = vpack.c.b16 %v2700, %v2699
    %v2721 = vpack.c.b16 %v2702, %v2701
    %v2722 = vpack.c.b16 %v2704, %v2703
    %v2723 = vpack.c.b16 %v2706, %v2705
    %v2724 = vpack.c.b16 %v2708, %v2707
    %2741 = vmatprep.subr.bf16.mxu0 0
    %2742 = vmatpush1.bf16.msra.mxu0 %v2716
    %2743 = vmatprep.subr.bf16.mxu0 0
    %2744 = vmatpush1.bf16.msra.mxu0 %v2715
    %2745 = vmatprep.subr.bf16.mxu0 0
    %2746 = vmatpush1.bf16.msra.mxu0 %v2714
    %2747 = vmatprep.subr.bf16.mxu0 0
    %2748 = vmatpush1.bf16.msra.mxu0 %v2713
    %2749 = vmatprep.subr.bf16.mxu0 0
    %2750 = vmatpush1.bf16.msra.mxu0 %v2712
    %2751 = vmatprep.subr.bf16.mxu0 0
    %2752 = vmatpush1.bf16.msra.mxu0 %v2711
    %2753 = vmatprep.subr.bf16.mxu0 0
    %2754 = vmatpush1.bf16.msra.mxu0 %v2710
    %2755 = vmatprep.subr.bf16.mxu0 0
    %2756 = vmatpush1.bf16.msra.mxu0 %v2709
    %2757 = vmatprep.subr.bf16.mxu0 0
    %2758 = vmatpush2.bf16.msra.mxu0 %v2724
    %2759 = vmatprep.subr.bf16.mxu0 0
    %2760 = vmatpush2.bf16.msra.mxu0 %v2723
    %2761 = vmatprep.subr.bf16.mxu0 0
    %2762 = vmatpush2.bf16.msra.mxu0 %v2722
    %2763 = vmatprep.subr.bf16.mxu0 0
    %2764 = vmatpush2.bf16.msra.mxu0 %v2721
    %2765 = vmatprep.subr.bf16.mxu0 0
    %2766 = vmatpush2.bf16.msra.mxu0 %v2720
    %2767 = vmatprep.subr.bf16.mxu0 0
    %2768 = vmatpush2.bf16.msra.mxu0 %v2719
    %2769 = vmatprep.subr.bf16.mxu0 0
    %2770 = vmatpush2.bf16.msra.mxu0 %v2718
    %2771 = vmatprep.subr.bf16.mxu0 0
    %2772 = vmatpush2.bf16.msra.mxu0 %v2717
    %2773 = vmatprep.mubr.bf16.mxu0 %v2605
    %2774 = vmatmul.mubr.bf16.gmra.mxu0 %v2604
    %v2775 = vpop.f32.mrf.mxu0
    %v2776 = vadd.f32 %v2643, %v2775
    %v2777 = vpop.f32.mrf.mxu0
    %v2778 = vpop.f32.mrf.mxu0
    %v2779 = vpop.f32.mrf.mxu0
    %2780 = vdwg.mxu0
    %v2781 = vmax.f32 %v2776, 0.0
    %v2782 = vpack.c.bf16 %v2781, %v2781
    %v2783 = vld [vmem:[%s5] sm:$0xf]
    %v2784 = vld [vmem:[%s5 + $0x4] sm:$0xf]
    %v2785 = vld [vmem:[%s5 + $0x8] sm:$0xf]
    %v2786 = vld [vmem:[%s5 + $0xc] sm:$0xf]
    %v2787 = vld [vmem:[%s5 + $0x10] sm:$0xf]
    %v2788 = vld [vmem:[%s5 + $0x14] sm:$0xf]
    %v2789 = vld [vmem:[%s5 + $0x18] sm:$0xf]
    %v2790 = vld [vmem:[%s5 + $0x1c] sm:$0xf]
    %v2791 = vld [vmem:[%s6] sm:$0x1]
    %v2793 = vlaneseq
    %v2794 = vshrl.u32 %v2793, 7
    %v2795 = vsub.s32 0, %v2794
    %v2796 = vrot.slane %v2791, %v2795
    %v2806 = vunpack.c.l.b16 %v2783
    %v2807 = vunpack.c.l.b16 %v2784
    %v2808 = vunpack.c.l.b16 %v2785
    %v2809 = vunpack.c.l.b16 %v2786
    %v2810 = vunpack.c.l.b16 %v2787
    %v2811 = vunpack.c.l.b16 %v2788
    %v2812 = vunpack.c.l.b16 %v2789
    %v2813 = vunpack.c.l.b16 %v2790
    %v2814 = vpack.c.b16 %v2807, %v2806
    %v2815 = vpack.c.b16 %v2809, %v2808
    %v2816 = vpack.c.b16 %v2811, %v2810
    %v2817 = vpack.c.b16 %v2813, %v2812
    %vm2822 = vcmask 523264
    %v2824 = vsel %vm2822, %v2782, 0
    %2826 = vmatprep.subr.bf16.mxu0 0
    %2827 = vmatpush1.bf16.msra.mxu0 0
    %2828 = vmatprep.subr.bf16.mxu0 0
    %2829 = vmatpush1.bf16.msra.mxu0 0
    %2830 = vmatprep.subr.bf16.mxu0 0
    %2831 = vmatpush1.bf16.msra.mxu0 0
    %2832 = vmatprep.subr.bf16.mxu0 0
    %2833 = vmatpush1.bf16.msra.mxu0 0
    %2834 = vmatprep.subr.bf16.mxu0 0
    %2835 = vmatpush1.bf16.msra.mxu0 %v2817
    %2836 = vmatprep.subr.bf16.mxu0 0
    %2837 = vmatpush1.bf16.msra.mxu0 %v2816
    %2838 = vmatprep.subr.bf16.mxu0 0
    %2839 = vmatpush1.bf16.msra.mxu0 %v2815
    %2840 = vmatprep.subr.bf16.mxu0 0
    %2841 = vmatpush1.bf16.msra.mxu0 %v2814
    %2842 = vmatprep.subr.bf16.mxu0 0
    %2843 = vmatpush2.bf16.msra.mxu0 0
    %2844 = vmatprep.subr.bf16.mxu0 0
    %2845 = vmatpush2.bf16.msra.mxu0 0
    %2846 = vmatprep.subr.bf16.mxu0 0
    %2847 = vmatpush2.bf16.msra.mxu0 0
    %2848 = vmatprep.subr.bf16.mxu0 0
    %2849 = vmatpush2.bf16.msra.mxu0 0
    %2850 = vmatprep.subr.bf16.mxu0 0
    %2851 = vmatpush2.bf16.msra.mxu0 0
    %2852 = vmatprep.subr.bf16.mxu0 0
    %2853 = vmatpush2.bf16.msra.mxu0 0
    %2854 = vmatprep.subr.bf16.mxu0 0
    %2855 = vmatpush2.bf16.msra.mxu0 0
    %2856 = vmatprep.subr.bf16.mxu0 0
    %2857 = vmatpush2.bf16.msra.mxu0 0
    %2858 = vmatprep.mubr.bf16.mxu0 0
    %2859 = vmatmul.mubr.bf16.gmra.mxu0 %v2824
    %v2860 = vpop.f32.mrf.mxu0
    %v2861 = vadd.f32 %v2796, %v2860
    %v2862 = vpop.f32.mrf.mxu0
    %v2863 = vpop.f32.mrf.mxu0
    %v2864 = vpop.f32.mrf.mxu0
    %2865 = vdwg.mxu0
    %vm2866 = vcmask 25600
    %2867 = vst.msk [vmem:[#allocation2] sm:$0x3] %vm2866, %v2861
    // Predicated region
    $region30: #{cnn_model_forward.5} parent=1 // pred_check
      _
    $region31: #{cnn_model_forward.5} parent=1 // pred_check_branch
      %2869 = sbr.rel (0) target = $region33
    $region32: #{cnn_model_forward.5} parent=1 // pred_region
      %s2871 = ssub.s32 32, 32
      %2872 = vsyncadd [#allocation3], %s2871
      %s2874 = sshll.u32 [#allocation2], 4
      %s2875 = int_to_ptr.vmem [resolvable:$true] %s2874
      %2877 = dma.vmem_to_hbm [thread:$0]  %s2875, 32, %s7, [#allocation3]
    $region33: #{cnn_model_forward.5} parent=1 // pred_fallthru
      _
    // Predicated region
    $region34: #{cnn_model_forward.5} parent=1 // pred_check
      _
    $region35: #{cnn_model_forward.5} parent=1 // pred_check_branch
      %2879 = sbr.rel (0) target = $region37
    $region36: #{cnn_model_forward.5} parent=1 // pred_region
      %2880 = dma.done [#allocation3], 32
    $region37: #{cnn_model_forward.5} parent=1 // pred_fallthru
      _
    %2881 = vsyncpa [#allocation3], 1

</llo_original>
